<compile_context>
chip_gen: v6e
topology: v6e:2x2x1
jax: 0.10.0
libtpu: 0.0.40
codegen_flags: <defaults>
</compile_context>

<pallas_src>
import math

import jax
import jax.numpy as jnp
from jax.experimental import pallas as pl
from jax.experimental.pallas import tpu as pltpu

_MIB = 1024 * 1024


# ---------------------------------------------------------------------------
# Generation-aware VMEM budgeting & tiling helpers
# ---------------------------------------------------------------------------
def _tpu_vmem_capacity_bytes():
    """Physical VMEM per TensorCore; conservative 64 MiB fallback (safe on all gens)."""
    try:
        return int(pltpu.get_tpu_info().vmem_capacity_bytes)
    except Exception:
        return 64 * _MIB


def _vmem_budget():
    cap = _tpu_vmem_capacity_bytes()
    if cap <= 64 * _MIB:
        # v7x-like: 64 MiB physical, 2 TCs per chip.  Leave room for Mosaic
        # internal scratch / semaphores.
        return dict(scoped_cap=52 * _MIB, resident_threshold=36 * _MIB,
                    small_vmem=True)
    # v5e / v6e: 128 MiB physical, 1 TC.
    return dict(scoped_cap=96 * _MIB, resident_threshold=80 * _MIB,
                small_vmem=False)


def _vmem_limit(est_bytes, scoped_cap):
    """Scoped-VMEM request: estimate with headroom, clamped to the per-gen cap."""
    want = max(int(1.5 * est_bytes), 32 * _MIB)
    return int(min(want, scoped_cap))


def _sublane_granularity(dtype):
    """Packed sublane count: 8 rows f32, 16 bf16, 32 int8/fp8."""
    itemsize = jnp.dtype(dtype).itemsize
    return {4: 8, 2: 16, 1: 32}.get(itemsize, 8)


def _pick_tile(dim, cap, gran):
    """Largest tile <= cap that divides `dim` and is a multiple of `gran`.

    Falls back to the full dim (always legal as a single block) when the dim
    is small or has no aligned divisor.
    """
    if dim <= cap:
        return dim
    t = (cap // gran) * gran
    while t >= gran:
        if dim % t == 0:
            return t
        t -= gran
    return dim


# ---------------------------------------------------------------------------
# Kernel 1a: fused Linear + residual, W fully resident in VMEM (small D).
# ---------------------------------------------------------------------------
def _residual_linear_resident_kernel(x_ref, w_ref, b_ref, o_ref):
    x = x_ref[...]                                             # (tm, D)
    y = jnp.dot(x, w_ref[...], preferred_element_type=jnp.float32)
    y = y + b_ref[...].astype(jnp.float32)                     # bias (1, D)
    o_ref[...] = (y + x.astype(jnp.float32)).astype(o_ref.dtype)


# ---------------------------------------------------------------------------
# Kernel 1b: fused Linear + residual, full (M, N, K) tiling + f32 accumulator.
# W is square and the N/K tile sizes are tied, so the x matmul tile at
# k == j is exactly the residual tile for output block (i, j): fold it into
# the accumulator instead of streaming a second copy of x from HBM.
# ---------------------------------------------------------------------------
def _residual_linear_tiled_kernel(x_ref, w_ref, b_ref, o_ref, acc_ref):
    j = pl.program_id(1)
    k = pl.program_id(2)

    @pl.when(k == 0)
    def _():
        acc_ref[...] = jnp.zeros_like(acc_ref)

    acc_ref[...] += jnp.dot(x_ref[...], w_ref[...],
                            preferred_element_type=jnp.float32)

    @pl.when(k == j)
    def _():
        acc_ref[...] += x_ref[...].astype(jnp.float32)   # residual, once per (i, j)

    @pl.when(k == pl.num_programs(2) - 1)
    def _():
        o_ref[...] = (acc_ref[...]
                      + b_ref[...].astype(jnp.float32)).astype(o_ref.dtype)


def residual_add_linear(x, w, b, *, tm=None, tn=None, tk=None,
                        force_tiled=False):
    """out = (x @ w + b) + x in a single fused Pallas kernel.

    x: (..., D), w: (D, D) (square, required so the residual can be folded
    from the matmul x stream), b: (D,).
    """
    D = x.shape[-1]
    assert w.shape == (D, D) and b.shape == (D,)
    M = math.prod(x.shape[:-1])
    x2 = x.reshape(M, D)
    b2 = b.reshape(1, D)
    itemsize = jnp.dtype(x.dtype).itemsize
    gran_m = _sublane_granularity(x.dtype)
    budget = _vmem_budget()

    # Generation-aware tile defaults (overridable by the caller).
    if tm is None:
        tm = 256 if budget["small_vmem"] else 512
    if tn is None:
        tn = 256 if budget["small_vmem"] else 512
    if tk is None:
        tk = tn

    # ---------------- W-resident fast path ----------------
    tm_a = _pick_tile(M, tm, gran_m)
    if budget["small_vmem"] and M > gran_m and M // tm_a < 2:
        # v7x: 2 TensorCores -> make sure the 1-D "parallel" grid has >= 2
        # steps so both cores get work.
        tm_a = _pick_tile(M, max(M // 2, gran_m), gran_m)

    resident_bytes = (D * D * itemsize              # W (single-buffered)
                      + 2 * 2 * tm_a * D * itemsize  # x in + out (double-buffered)
                      + D * itemsize)                # bias (single-buffered)
    use_resident = (not force_tiled) and resident_bytes <= budget["resident_threshold"]

    if use_resident:
        def _call(single_buffer_weights):
            if single_buffer_weights:
                # Constant block index -> double-buffering buys nothing;
                # single-buffer to halve W's VMEM footprint.
                w_spec = pl.BlockSpec((D, D), lambda i: (0, 0),
                                      pipeline_mode=pl.Buffered(1))
                b_spec = pl.BlockSpec((1, D), lambda i: (0, 0),
                                      pipeline_mode=pl.Buffered(1))
            else:
                w_spec = pl.BlockSpec((D, D), lambda i: (0, 0))
                b_spec = pl.BlockSpec((1, D), lambda i: (0, 0))
            return pl.pallas_call(
                _residual_linear_resident_kernel,
                out_shape=jax.ShapeDtypeStruct((M, D), x.dtype),
                grid_spec=pltpu.PrefetchScalarGridSpec(
                    num_scalar_prefetch=0,
                    grid=(M // tm_a,),
                    in_specs=[
                        pl.BlockSpec((tm_a, D), lambda i: (i, 0)),   # x tile
                        w_spec,                                      # W resident
                        b_spec,                                      # bias resident
                    ],
                    out_specs=pl.BlockSpec((tm_a, D), lambda i: (i, 0)),
                ),
                compiler_params=pltpu.CompilerParams(
                    dimension_semantics=("parallel",),
                    vmem_limit_bytes=_vmem_limit(resident_bytes,
                                                 budget["scoped_cap"]),
                ),
            )(x2, w, b2)

        try:
            out2 = _call(True)
        except Exception:
            # pipeline_mode=pl.Buffered(1) unsupported on this jax/Mosaic
            # build: fall back to default double-buffered specs.
            out2 = _call(False)
        return out2.reshape(x.shape)

    # ---------------- Fully tiled (M, N, K) path ----------------
    tm_b = _pick_tile(M, tm, gran_m)
    tnk = _pick_tile(D, min(tn, tk), 128)     # N and K tiles tied (square W)
    grid = (M // tm_b, D // tnk, D // tnk)
    tiled_bytes = (2 * (tm_b * tnk            # x tiles (double-buffered)
                        + tnk * tnk           # W tiles
                        + tnk                 # bias
                        + tm_b * tnk) * itemsize   # out tiles
                   + tm_b * tnk * 4)          # f32 accumulator

    out2 = pl.pallas_call(
        _residual_linear_tiled_kernel,
        out_shape=jax.ShapeDtypeStruct((M, D), x.dtype),
        grid_spec=pltpu.PrefetchScalarGridSpec(
            num_scalar_prefetch=0,
            grid=grid,
            in_specs=[
                pl.BlockSpec((tm_b, tnk), lambda i, j, k: (i, k)),   # x (matmul + residual)
                pl.BlockSpec((tnk, tnk), lambda i, j, k: (k, j)),    # W
                pl.BlockSpec((1, tnk), lambda i, j, k: (0, j)),      # bias
            ],
            out_specs=pl.BlockSpec((tm_b, tnk), lambda i, j, k: (i, j)),
            scratch_shapes=[pltpu.VMEM((tm_b, tnk), jnp.float32)],
        ),
        compiler_params=pltpu.CompilerParams(
            dimension_semantics=("parallel", "parallel", "arbitrary"),
            vmem_limit_bytes=_vmem_limit(tiled_bytes, budget["scoped_cap"]),
        ),
    )(x2, w, b2)
    return out2.reshape(x.shape)


# ---------------------------------------------------------------------------
# Kernel 2: generic elementwise residual add (arbitrary precomputed fn(x)).
# ---------------------------------------------------------------------------
def _residual_add_kernel(fn_out_ref, res_ref, o_ref):
    o_ref[...] = fn_out_ref[...] + res_ref[...]


def residual_add(fn_out, res, *, tm=512, tn=1024):
    """out = fn_out + res, tiled, output aliased onto fn_out (in place).

    NOTE: this standalone kernel is purely HBM-bound (3 streams) and acts as
    an optimization barrier to producer fusion.  Prefer residual_add_linear
    (fused matmul+bias+residual) or letting XLA fuse the add into fn(x); the
    in-place benefit of the alias also requires fn_out to be donatable
    (no live reference held by the caller), otherwise XLA inserts a copy.
    """
    assert fn_out.shape == res.shape and fn_out.dtype == res.dtype
    shape = fn_out.shape
    D = shape[-1]
    M = math.prod(shape[:-1])
    a2 = fn_out.reshape(M, D)
    r2 = res.reshape(M, D)
    itemsize = jnp.dtype(fn_out.dtype).itemsize
    budget = _vmem_budget()

    tm_ = _pick_tile(M, tm, _sublane_granularity(fn_out.dtype))
    tn_ = _pick_tile(D, tn, 128)
    est = 3 * 2 * tm_ * tn_ * itemsize   # 3 arrays x 2 buffers

    out2 = pl.pallas_call(
        _residual_add_kernel,
        out_shape=jax.ShapeDtypeStruct((M, D), fn_out.dtype),
        grid=(M // tm_, D // tn_),
        in_specs=[
            pl.BlockSpec((tm_, tn_), lambda i, j: (i, j)),
            pl.BlockSpec((tm_, tn_), lambda i, j: (i, j)),
        ],
        out_specs=pl.BlockSpec((tm_, tn_), lambda i, j: (i, j)),
        input_output_aliases={0: 0},   # write the sum in place over fn_out
        compiler_params=pltpu.CompilerParams(
            dimension_semantics=("parallel", "parallel"),
            vmem_limit_bytes=_vmem_limit(est, budget["scoped_cap"]),
        ),
    )(a2, r2)
    return out2.reshape(shape)


class ResidualAdd:
    """JAX/Pallas equivalent of the PyTorch ResidualAdd wrapper.

    For the hot path (fn == Linear with square weight) prefer
    residual_add_linear, which fuses fn + the residual add into one kernel
    and avoids an extra HBM round trip of fn(x).
    """

    def __init__(self, fn):
        self.fn = fn

    def __call__(self, x, **kwargs):
        res = x
        y = self.fn(x, **kwargs)
        return residual_add(y, res)


if __name__ == "__main__":
    # Full-f32 matmul passes so the Pallas kernel and the XLA reference agree.
    jax.config.update("jax_default_matmul_precision", "highest")

    key = jax.random.PRNGKey(0)
    kx, kw, kb = jax.random.split(key, 3)

    B, S, D = 2, 64, 256      # hidden dim a multiple of 128 (lane-dense tiles)
    x = jax.random.normal(kx, (B, S, D), dtype=jnp.float32)
    w = (jax.random.normal(kw, (D, D), dtype=jnp.float32) / jnp.sqrt(D))
    b = jax.random.normal(kb, (D,), dtype=jnp.float32) * 0.01

    ref = jnp.einsum("bsd,de->bse", x, w) + b + x

    # Path A: W resident (single-buffered) in VMEM, grid over M only.
    out_resident = jax.block_until_ready(residual_add_linear(x, w, b))

    # Path B: full (M, N, K) tiling with f32 accumulator and the residual
    # folded from the x matmul stream at k == j (forced here so the
    # multi-grid-point accumulate/finalize logic is exercised at small size).
    out_tiled = jax.block_until_ready(
        residual_add_linear(x, w, b, force_tiled=True, tm=64, tn=128, tk=128))

    # Generic wrapper path: fn computed in JAX, residual add done in Pallas.
    module = ResidualAdd(lambda t: jnp.einsum("bsd,de->bse", t, w) + b)
    out_generic = jax.block_until_ready(module(x))

    assert out_resident.shape == (B, S, D)
    assert jnp.allclose(out_resident, ref, atol=2e-3, rtol=2e-3)
    assert jnp.allclose(out_tiled, ref, atol=2e-3, rtol=2e-3)
    assert jnp.allclose(out_generic, ref, atol=2e-3, rtol=2e-3)
    print("KERNEL_OK")
</pallas_src>

<mosaic_0001>
module attributes {stable_mosaic.version = 11 : i64} {
  func.func @_residual_linear_resident_kernel(%arg0: i32, %arg1: memref<64x256xf32, #tpu.memory_space<vmem>>, %arg2: memref<256x256xf32, #tpu.memory_space<vmem>>, %arg3: memref<1x256xf32, #tpu.memory_space<vmem>>, %arg4: memref<64x256xf32, #tpu.memory_space<vmem>>) attributes {dimension_semantics = [#tpu.dimension_semantics<parallel>], iteration_bounds = array<i64: 2>, scalar_prefetch = 0 : i64, scratch_operands = 0 : i64, tpu.core_type = #tpu.core_type<tc>, window_params = [{transform_indices = @transform_0, window_bounds = array<i64: 64, 256>}, {pipeline_mode = #tpu.pipeline_mode<synchronous>, transform_indices = @transform_1, window_bounds = array<i64: 256, 256>}, {pipeline_mode = #tpu.pipeline_mode<synchronous>, transform_indices = @transform_2, window_bounds = array<i64: 1, 256>}, {transform_indices = @transform_3, window_bounds = array<i64: 64, 256>}]} {
    %c0 = arith.constant 0 : index
    %c0_0 = arith.constant 0 : index
    %0 = vector.load %arg1[%c0, %c0_0] : memref<64x256xf32, #tpu.memory_space<vmem>>, vector<64x256xf32>
    %c0_1 = arith.constant 0 : index
    %c0_2 = arith.constant 0 : index
    %1 = vector.load %arg2[%c0_1, %c0_2] : memref<256x256xf32, #tpu.memory_space<vmem>>, vector<256x256xf32>
    %cst = arith.constant dense<0.000000e+00> : vector<64x256xf32>
    %2 = tpu.matmul %0, %1, %cst {dimension_numbers = #tpu.dot_dimension_numbers<[1], [0], [0], [1], [0, 0, 1, 1], [], []>, precision = #tpu.contract_precision<fp32>} : vector<64x256xf32>, vector<256x256xf32>, vector<64x256xf32> -> vector<64x256xf32>
    %c0_3 = arith.constant 0 : index
    %c0_4 = arith.constant 0 : index
    %3 = vector.load %arg3[%c0_3, %c0_4] : memref<1x256xf32, #tpu.memory_space<vmem>>, vector<1x256xf32>
    %4 = vector.broadcast %3 : vector<1x256xf32> to vector<64x256xf32>
    %5 = arith.addf %2, %4 : vector<64x256xf32>
    %6 = arith.addf %5, %0 : vector<64x256xf32>
    %c0_5 = arith.constant 0 : index
    %c0_6 = arith.constant 0 : index
    %7 = vector.load %arg4[%c0_5, %c0_6] : memref<64x256xf32, #tpu.memory_space<vmem>>, vector<64x256xf32>
    tpu.vector_store %arg4[%c0_5, %c0_6], %6 {strides = array<i32>} : memref<64x256xf32, #tpu.memory_space<vmem>>, vector<64x256xf32>,
    return
  }
  func.func @transform_0(%arg0: i32) -> (i32, i32) {
    %c0_i32 = arith.constant 0 : i32
    %c0_i32_0 = arith.constant 0 : i32
    return %arg0, %c0_i32 : i32, i32
  }
  func.func @transform_1(%arg0: i32) -> (i32, i32) {
    %c0_i32 = arith.constant 0 : i32
    %c0_i32_0 = arith.constant 0 : i32
    %c0_i32_1 = arith.constant 0 : i32
    return %c0_i32, %c0_i32_0 : i32, i32
  }
  func.func @transform_2(%arg0: i32) -> (i32, i32) {
    %c0_i32 = arith.constant 0 : i32
    %c0_i32_0 = arith.constant 0 : i32
    %c0_i32_1 = arith.constant 0 : i32
    return %c0_i32, %c0_i32_0 : i32, i32
  }
  func.func @transform_3(%arg0: i32) -> (i32, i32) {
    %c0_i32 = arith.constant 0 : i32
    %c0_i32_0 = arith.constant 0 : i32
    return %arg0, %c0_i32 : i32, i32
  }
}

module attributes {stable_mosaic.version = 11 : i64} {
  func.func @_residual_linear_resident_kernel(%arg0: i32, %arg1: memref<64x256xf32, #tpu.memory_space<vmem>>, %arg2: memref<256x256xf32, #tpu.memory_space<vmem>>, %arg3: memref<1x256xf32, #tpu.memory_space<vmem>>, %arg4: memref<64x256xf32, #tpu.memory_space<vmem>>) attributes {dimension_semantics = [#tpu.dimension_semantics<parallel>], iteration_bounds = array<i64: 2>, scalar_prefetch = 0 : i64, scratch_operands = 0 : i64, tpu.core_type = #tpu.core_type<tc>, window_params = [{transform_indices = @transform_0, window_bounds = array<i64: 64, 256>}, {pipeline_mode = #tpu.pipeline_mode<synchronous>, transform_indices = @transform_1, window_bounds = array<i64: 256, 256>}, {pipeline_mode = #tpu.pipeline_mode<synchronous>, transform_indices = @transform_2, window_bounds = array<i64: 1, 256>}, {transform_indices = @transform_3, window_bounds = array<i64: 64, 256>}]} {
    %c0 = arith.constant 0 : index
    %c0_0 = arith.constant 0 : index
    %0 = vector.load %arg1[%c0, %c0_0] : memref<64x256xf32, #tpu.memory_space<vmem>>, vector<64x256xf32>
    %c0_1 = arith.constant 0 : index
    %c0_2 = arith.constant 0 : index
    %1 = vector.load %arg2[%c0_1, %c0_2] : memref<256x256xf32, #tpu.memory_space<vmem>>, vector<256x256xf32>
    %cst = arith.constant dense<0.000000e+00> : vector<64x256xf32>
    %2 = tpu.matmul %0, %1, %cst {dimension_numbers = #tpu.dot_dimension_numbers<[1], [0], [0], [1], [0, 0, 1, 1], [], []>, precision = #tpu.contract_precision<fp32>} : vector<64x256xf32>, vector<256x256xf32>, vector<64x256xf32> -> vector<64x256xf32>
    %c0_3 = arith.constant 0 : index
    %c0_4 = arith.constant 0 : index
    %3 = vector.load %arg3[%c0_3, %c0_4] : memref<1x256xf32, #tpu.memory_space<vmem>>, vector<1x256xf32>
    %4 = vector.broadcast %3 : vector<1x256xf32> to vector<64x256xf32>
    %5 = arith.addf %2, %4 : vector<64x256xf32>
    %6 = arith.addf %5, %0 : vector<64x256xf32>
    %c0_5 = arith.constant 0 : index
    %c0_6 = arith.constant 0 : index
    %7 = vector.load %arg4[%c0_5, %c0_6] : memref<64x256xf32, #tpu.memory_space<vmem>>, vector<64x256xf32>
    tpu.vector_store %arg4[%c0_5, %c0_6], %6 {strides = array<i32>} : memref<64x256xf32, #tpu.memory_space<vmem>>, vector<64x256xf32>,
    return
  }
  func.func @transform_0(%arg0: i32) -> (i32, i32) {
    %c0_i32 = arith.constant 0 : i32
    %c0_i32_0 = arith.constant 0 : i32
    return %arg0, %c0_i32 : i32, i32
  }
  func.func @transform_1(%arg0: i32) -> (i32, i32) {
    %c0_i32 = arith.constant 0 : i32
    %c0_i32_0 = arith.constant 0 : i32
    %c0_i32_1 = arith.constant 0 : i32
    return %c0_i32, %c0_i32_0 : i32, i32
  }
  func.func @transform_2(%arg0: i32) -> (i32, i32) {
    %c0_i32 = arith.constant 0 : i32
    %c0_i32_0 = arith.constant 0 : i32
    %c0_i32_1 = arith.constant 0 : i32
    return %c0_i32, %c0_i32_0 : i32, i32
  }
  func.func @transform_3(%arg0: i32) -> (i32, i32) {
    %c0_i32 = arith.constant 0 : i32
    %c0_i32_0 = arith.constant 0 : i32
    return %arg0, %c0_i32 : i32, i32
  }
}

</mosaic_0001>

<llo_original>
// kernel: tpu_custom_call.1
$region0: #{tpu_custom_call.1}
  #allocation0 [shape = 'u32[]', space=smem, size = 0x4, offset = 0x4, fixed_abs, tag = 'smem constant byte address 0x4 - core index']
  #allocation1 [shape = 'u32[144,128]{1,0:T(1,128)}', space=vmem, size = 0x12000, scoped, tag = 'internal scratch']
  %s0 = inlined_call_operand.hbm [shape: f32[128,256], index: 0, kind: input, shape index: {}]
  %s1 = inlined_call_operand.hbm [shape: f32[256,256], index: 1, kind: input, shape index: {}]
  %s2 = inlined_call_operand.vmem [shape: f32[1,256], index: 2, kind: input, shape index: {}]
  %s3 = inlined_call_operand.hbm [shape: f32[128,256], index: 3, kind: output, shape index: {}]
  %s4 = sld [smem:[#allocation0]]
  $region53: #{tpu_custom_call.1} parent=0
    _
  %s6 = ssub.s32 1, %s4
  %s7 = scalar_select 0, %s6, %s4
  $region1: #{tpu_custom_call.1} parent=0
    #allocation2 [shape = 'u8[131072]{0}', space=vmem, size = 0x20000, scoped, tag = 'input window, operand 0']
    #allocation3 [shape = 's32[2]{0}', space=sflag, size = 0x8, scoped, tag = 'scoped memory for tpu_custom_call.1']
    #allocation4 [shape = 's32[2]{0}', space=sflag, size = 0x8, scoped, tag = 'scoped memory for tpu_custom_call.1']
    #allocation5 [shape = 'u8[262144]{0}', space=vmem, size = 0x40000, scoped, tag = 'input window, operand 1, single buffered']
    #allocation6 [shape = 's32[1]{0}', space=sflag, size = 0x4, scoped, tag = 'scoped memory for tpu_custom_call.1']
    #allocation7 [shape = 'u8[131072]{0}', space=vmem, size = 0x20000, scoped, tag = 'output window, operand 0']
    %8 = vsyncpa [#allocation3], 0
    %s9 = scalar_lea.sflag [#allocation3], 1
    %10 = vsyncpa %s9, 0
    %11 = vsyncpa [#allocation6], 0
    %12 = vsyncpa [#allocation4], 0
    %s13 = scalar_lea.sflag [#allocation4], 1
    %14 = vsyncpa %s13, 0
    loop: start=0, step=1, limit=4
    $region2: #{tpu_custom_call.1} parent=1 // loop_pre_header
      _
    $region3: #{tpu_custom_call.1} parent=1 // loop_header
      %s16 = sphi 0, %s20
      %p17 = scmp.ge.s32.totalorder %s16, 4
      %s26 = sphi 0, %s28
      %s29 = sphi 0, %s26
      %s30 = sphi 0, %s29
      %s46 = sphi 0, %s30
      %s50 = sphi 0, %s50
      %s52 = sphi 0, %s50
      %s53 = sphi 0, %s52
      %s67 = sphi 0, %s53
      %s71 = sphi 0, %s71
      %s73 = sphi 0, %s71
      %s74 = sphi 0, %s73
      %s88 = sphi 0, %s74
      %s94 = sphi 0, %s96
      %s97 = sphi 0, %s94
      %s98 = sphi 0, %s97
      %s114 = sphi 0, %s98
    $region4: #{tpu_custom_call.1} parent=1 // loop_header_branch
      %19 = sbr.rel (%p17) target = $region8
    $region5: #{tpu_custom_call.1} parent=1 // loop_body
      %s21 = ssub.s32 %s16, 1
      %s22 = ssub.s32 %s16, 2
      %s23 = sadd.s32 %s16, 1
      %s24 = ssub.s32 %s16, %s23
      %p25 = scmp.eq.s32.totalorder %s24, 0
      %s27 = sadd.s32 %s26, 1
      %s28 = scalar_select %p25, %s26, %s27
      %p31 = pneg %p25
      %p32 = scmp.eq.s32.totalorder %s16, 1
      %p33 = por %p31, %p32
      %p34 = scmp.ne.s32.totalorder %s26, %s29
      %p35 = scmp.eq.s32.totalorder %s16, 0
      %p36 = por %p34, %p35
      %p37 = scmp.ne.s32.totalorder %s26, %s29
      %p38 = scmp.eq.s32.totalorder %s21, 1
      %p39 = por %p37, %p38
      %p40 = scmp.ne.s32.totalorder %s29, %s30
      %p41 = scmp.eq.s32.totalorder %s21, 0
      %p42 = por %p40, %p41
      %p43 = scmp.ne.s32.totalorder %s29, %s30
      %p44 = scmp.eq.s32.totalorder %s22, 1
      %p45 = por %p43, %p44
      %p47 = scmp.ne.s32.totalorder %s30, %s46
      %p48 = scmp.eq.s32.totalorder %s22, 0
      %p49 = por %p47, %p48
      %s51 = sadd.s32 %s50, 1
      %p54 = scmp.eq.s32.totalorder %s16, 1
      %p55 = scmp.ne.s32.totalorder %s50, %s52
      %p56 = scmp.eq.s32.totalorder %s16, 0
      %p57 = por %p55, %p56
      %p58 = scmp.ne.s32.totalorder %s50, %s52
      %p59 = scmp.eq.s32.totalorder %s21, 1
      %p60 = por %p58, %p59
      %p61 = scmp.ne.s32.totalorder %s52, %s53
      %p62 = scmp.eq.s32.totalorder %s21, 0
      %p63 = por %p61, %p62
      %p64 = scmp.ne.s32.totalorder %s52, %s53
      %p65 = scmp.eq.s32.totalorder %s22, 1
      %p66 = por %p64, %p65
      %p68 = scmp.ne.s32.totalorder %s53, %s67
      %p69 = scmp.eq.s32.totalorder %s22, 0
      %p70 = por %p68, %p69
      %s72 = sadd.s32 %s71, 1
      %p75 = scmp.eq.s32.totalorder %s16, 1
      %p76 = scmp.ne.s32.totalorder %s71, %s73
      %p77 = scmp.eq.s32.totalorder %s16, 0
      %p78 = por %p76, %p77
      %p79 = scmp.ne.s32.totalorder %s71, %s73
      %p80 = scmp.eq.s32.totalorder %s21, 1
      %p81 = por %p79, %p80
      %p82 = scmp.ne.s32.totalorder %s73, %s74
      %p83 = scmp.eq.s32.totalorder %s21, 0
      %p84 = por %p82, %p83
      %p85 = scmp.ne.s32.totalorder %s73, %s74
      %p86 = scmp.eq.s32.totalorder %s22, 1
      %p87 = por %p85, %p86
      %p89 = scmp.ne.s32.totalorder %s74, %s88
      %p90 = scmp.eq.s32.totalorder %s22, 0
      %p91 = por %p89, %p90
      %s92 = ssub.s32 %s16, %s23
      %p93 = scmp.eq.s32.totalorder %s92, 0
      %s95 = sadd.s32 %s94, 1
      %s96 = scalar_select %p93, %s94, %s95
      %p99 = pneg %p93
      %p100 = scmp.eq.s32.totalorder %s16, 1
      %p101 = por %p99, %p100
      %p102 = scmp.ne.s32.totalorder %s94, %s97
      %p103 = scmp.eq.s32.totalorder %s16, 0
      %p104 = por %p102, %p103
      %p105 = scmp.ne.s32.totalorder %s94, %s97
      %p106 = scmp.eq.s32.totalorder %s21, 1
      %p107 = por %p105, %p106
      %p108 = scmp.ne.s32.totalorder %s97, %s98
      %p109 = scmp.eq.s32.totalorder %s21, 0
      %p110 = por %p108, %p109
      %p111 = scmp.ne.s32.totalorder %s97, %s98
      %p112 = scmp.eq.s32.totalorder %s22, 1
      %p113 = por %p111, %p112
      %p115 = scmp.ne.s32.totalorder %s98, %s114
      %p116 = scmp.eq.s32.totalorder %s22, 0
      %p117 = por %p115, %p116
      %p118 = scmp.le.s32.totalorder 1, %s16
      %p119 = scmp.lt.s32.totalorder %s16, 3
      %p120 = pnand %p118, %p119
      %p121 = pneg %p120
      // Predicated region
      $region9: #{tpu_custom_call.1} parent=5 // pred_check
        _
      $region10: #{tpu_custom_call.1} parent=5 // pred_check_branch
        %123 = sbr.rel (%p120) target = $region12
      $region11: #{tpu_custom_call.1} parent=5 // pred_region
        %s124 = ssub.s32 %s16, 1
        // Predicated region
        $region13: #{tpu_custom_call.1} parent=11 // pred_check
          %p125 = pneg %p63
        $region14: #{tpu_custom_call.1} parent=11 // pred_check_branch
          %127 = sbr.rel (%p125) target = $region16
        $region15: #{tpu_custom_call.1} parent=11 // pred_region
          %s129 = ssub.s32 8192, 8192
          %130 = vsyncadd [#allocation6], %s129
          %s131 = sshll.u32 [#allocation5], 4
          %s132 = int_to_ptr.vmem [resolvable:$true] %s131
          %137 = dma.hbm_to_vmem [thread:$0]  %s1, 8192, %s132, [#allocation6], 256, 256, 16
        $region16: #{tpu_custom_call.1} parent=11 // pred_fallthru
          _
        // Predicated region
        $region17: #{tpu_custom_call.1} parent=11 // pred_check
          %p138 = pneg %p84
        $region18: #{tpu_custom_call.1} parent=11 // pred_check_branch
          %140 = sbr.rel (%p138) target = $region20
        $region19: #{tpu_custom_call.1} parent=11 // pred_region
          _
        $region20: #{tpu_custom_call.1} parent=11 // pred_fallthru
          _
      $region12: #{tpu_custom_call.1} parent=5 // pred_fallthru
        _
      %p141 = scmp.lt.s32.totalorder %s16, 2
      // Predicated region
      $region21: #{tpu_custom_call.1} parent=5 // pred_check
        %p142 = pneg %p141
      $region22: #{tpu_custom_call.1} parent=5 // pred_check_branch
        %144 = sbr.rel (%p142) target = $region24
      $region23: #{tpu_custom_call.1} parent=5 // pred_region
        // Predicated region
        $region25: #{tpu_custom_call.1} parent=23 // pred_check
          %p145 = pneg %p36
        $region26: #{tpu_custom_call.1} parent=23 // pred_check_branch
          %147 = sbr.rel (%p145) target = $region28
        $region27: #{tpu_custom_call.1} parent=23 // pred_region
          %s148 = sand.u32 %s26, 1
          %s149 = scalar_lea.sflag [#allocation3], %s148
          %s150 = sand.u32 %s26, 1
          %s151 = smul.addr %s150, 128
          %s152 = scalar_lea.vmem [#allocation2], %s151
          %s153 = smul.u32 8, %s16
          %s155 = ssub.s32 2048, 2048
          %156 = vsyncadd %s149, %s155
          %s157 = smul.addr %s153, 2
          %s158 = smul.addr %s157, 128
          %s159 = scalar_lea.hbm %s0, %s158
          %s160 = sshll.u32 %s152, 4
          %s161 = int_to_ptr.vmem [resolvable:$true] %s160
          %166 = dma.hbm_to_vmem [thread:$0]  %s159, 2048, %s161, %s149, 256, 256, 16
        $region28: #{tpu_custom_call.1} parent=23 // pred_fallthru
          _
      $region24: #{tpu_custom_call.1} parent=5 // pred_fallthru
        _
      %p167 = scmp.le.s32.totalorder 1, %s16
      %p168 = scmp.lt.s32.totalorder %s16, 3
      %p169 = pnand %p167, %p168
      %p170 = pneg %p169
      // Predicated region
      $region29: #{tpu_custom_call.1} parent=5 // pred_check
        _
      $region30: #{tpu_custom_call.1} parent=5 // pred_check_branch
        %172 = sbr.rel (%p169) target = $region32
      $region31: #{tpu_custom_call.1} parent=5 // pred_region
        %s173 = ssub.s32 %s16, 1
        %s174 = sand.u32 %s29, 1
        %s175 = scalar_lea.sflag [#allocation3], %s174
        %s176 = sand.u32 %s29, 1
        %s177 = smul.addr %s176, 128
        %s178 = scalar_lea.vmem [#allocation2], %s177
        // Predicated region
        $region33: #{tpu_custom_call.1} parent=31 // pred_check
          %p179 = pneg %p42
        $region34: #{tpu_custom_call.1} parent=31 // pred_check_branch
          %181 = sbr.rel (%p179) target = $region36
        $region35: #{tpu_custom_call.1} parent=31 // pred_region
          %182 = dma.done %s175, 2048
        $region36: #{tpu_custom_call.1} parent=31 // pred_fallthru
          _
        // Predicated region
        $region37: #{tpu_custom_call.1} parent=31 // pred_check
          %p183 = pneg %p63
        $region38: #{tpu_custom_call.1} parent=31 // pred_check_branch
          %185 = sbr.rel (%p183) target = $region40
        $region39: #{tpu_custom_call.1} parent=31 // pred_region
          %186 = dma.done [#allocation6], 8192
        $region40: #{tpu_custom_call.1} parent=31 // pred_fallthru
          _
        %s187 = sand.u32 %s29, 1
        %s188 = scalar_lea.sflag [#allocation3], %s187
        %s189 = sand.u32 %s29, 1
        %s190 = smul.addr %s189, 128
        %s191 = scalar_lea.vmem [#allocation2], %s190
        %p192 = pneg %p42
        %p193 = pneg %p39
        %p194 = pneg %p63
        %p195 = pneg %p60
        %p196 = pneg %p84
        %p197 = pneg %p81
        %p198 = pneg %p110
        %p199 = pneg %p107
        %s200 = sand.u32 %s97, 1
        %s201 = scalar_lea.sflag [#allocation4], %s200
        %s202 = sand.u32 %s97, 1
        %s203 = smul.addr %s202, 128
        %s204 = scalar_lea.vmem [#allocation7], %s203
        %s205 = smul.u32 8, %s21
        %s206 = smul.u32 8, %s21
        %v207 = vld [vmem:[%s178] sm:$0xff]
        %v208 = vld [vmem:[%s178 + $0x8] sm:$0xff]
        %v209 = vld [vmem:[%s178 + $0x10] sm:$0xff]
        %v210 = vld [vmem:[%s178 + $0x18] sm:$0xff]
        %v211 = vld [vmem:[%s178 + $0x20] sm:$0xff]
        %v212 = vld [vmem:[%s178 + $0x28] sm:$0xff]
        %v213 = vld [vmem:[%s178 + $0x30] sm:$0xff]
        %v214 = vld [vmem:[%s178 + $0x38] sm:$0xff]
        %v215 = vld [vmem:[%s178 + $0x40] sm:$0xff]
        %v216 = vld [vmem:[%s178 + $0x48] sm:$0xff]
        %v217 = vld [vmem:[%s178 + $0x50] sm:$0xff]
        %v218 = vld [vmem:[%s178 + $0x58] sm:$0xff]
        %v219 = vld [vmem:[%s178 + $0x60] sm:$0xff]
        %v220 = vld [vmem:[%s178 + $0x68] sm:$0xff]
        %v221 = vld [vmem:[%s178 + $0x70] sm:$0xff]
        %v222 = vld [vmem:[%s178 + $0x78] sm:$0xff]
        %v223 = vld [vmem:[#allocation5] sm:$0xff]
        %v224 = vld [vmem:[#allocation5 + $0x8] sm:$0xff]
        %v225 = vld [vmem:[#allocation5 + $0x10] sm:$0xff]
        %v226 = vld [vmem:[#allocation5 + $0x18] sm:$0xff]
        %v227 = vld [vmem:[#allocation5 + $0x20] sm:$0xff]
        %v228 = vld [vmem:[#allocation5 + $0x28] sm:$0xff]
        %v229 = vld [vmem:[#allocation5 + $0x30] sm:$0xff]
        %v230 = vld [vmem:[#allocation5 + $0x38] sm:$0xff]
        %v231 = vld [vmem:[#allocation5 + $0x40] sm:$0xff]
        %v232 = vld [vmem:[#allocation5 + $0x48] sm:$0xff]
        %v233 = vld [vmem:[#allocation5 + $0x50] sm:$0xff]
        %v234 = vld [vmem:[#allocation5 + $0x58] sm:$0xff]
        %v235 = vld [vmem:[#allocation5 + $0x60] sm:$0xff]
        %v236 = vld [vmem:[#allocation5 + $0x68] sm:$0xff]
        %v237 = vld [vmem:[#allocation5 + $0x70] sm:$0xff]
        %v238 = vld [vmem:[#allocation5 + $0x78] sm:$0xff]
        %v239 = vld [vmem:[#allocation5 + $0x80] sm:$0xff]
        %v240 = vld [vmem:[#allocation5 + $0x88] sm:$0xff]
        %v241 = vld [vmem:[#allocation5 + $0x90] sm:$0xff]
        %v242 = vld [vmem:[#allocation5 + $0x98] sm:$0xff]
        %v243 = vld [vmem:[#allocation5 + $0xa0] sm:$0xff]
        %v244 = vld [vmem:[#allocation5 + $0xa8] sm:$0xff]
        %v245 = vld [vmem:[#allocation5 + $0xb0] sm:$0xff]
        %v246 = vld [vmem:[#allocation5 + $0xb8] sm:$0xff]
        %v247 = vld [vmem:[#allocation5 + $0xc0] sm:$0xff]
        %v248 = vld [vmem:[#allocation5 + $0xc8] sm:$0xff]
        %v249 = vld [vmem:[#allocation5 + $0xd0] sm:$0xff]
        %v250 = vld [vmem:[#allocation5 + $0xd8] sm:$0xff]
        %v251 = vld [vmem:[#allocation5 + $0xe0] sm:$0xff]
        %v252 = vld [vmem:[#allocation5 + $0xe8] sm:$0xff]
        %v253 = vld [vmem:[#allocation5 + $0xf0] sm:$0xff]
        %v254 = vld [vmem:[#allocation5 + $0xf8] sm:$0xff]
        %v255 = vld [vmem:[#allocation5 + $0x100] sm:$0xff]
        %v256 = vld [vmem:[#allocation5 + $0x108] sm:$0xff]
        %v257 = vld [vmem:[#allocation5 + $0x110] sm:$0xff]
        %v258 = vld [vmem:[#allocation5 + $0x118] sm:$0xff]
        %v259 = vld [vmem:[#allocation5 + $0x120] sm:$0xff]
        %v260 = vld [vmem:[#allocation5 + $0x128] sm:$0xff]
        %v261 = vld [vmem:[#allocation5 + $0x130] sm:$0xff]
        %v262 = vld [vmem:[#allocation5 + $0x138] sm:$0xff]
        %v263 = vld [vmem:[#allocation5 + $0x140] sm:$0xff]
        %v264 = vld [vmem:[#allocation5 + $0x148] sm:$0xff]
        %v265 = vld [vmem:[#allocation5 + $0x150] sm:$0xff]
        %v266 = vld [vmem:[#allocation5 + $0x158] sm:$0xff]
        %v267 = vld [vmem:[#allocation5 + $0x160] sm:$0xff]
        %v268 = vld [vmem:[#allocation5 + $0x168] sm:$0xff]
        %v269 = vld [vmem:[#allocation5 + $0x170] sm:$0xff]
        %v270 = vld [vmem:[#allocation5 + $0x178] sm:$0xff]
        %v271 = vld [vmem:[#allocation5 + $0x180] sm:$0xff]
        %v272 = vld [vmem:[#allocation5 + $0x188] sm:$0xff]
        %v273 = vld [vmem:[#allocation5 + $0x190] sm:$0xff]
        %v274 = vld [vmem:[#allocation5 + $0x198] sm:$0xff]
        %v275 = vld [vmem:[#allocation5 + $0x1a0] sm:$0xff]
        %v276 = vld [vmem:[#allocation5 + $0x1a8] sm:$0xff]
        %v277 = vld [vmem:[#allocation5 + $0x1b0] sm:$0xff]
        %v278 = vld [vmem:[#allocation5 + $0x1b8] sm:$0xff]
        %v279 = vld [vmem:[#allocation5 + $0x1c0] sm:$0xff]
        %v280 = vld [vmem:[#allocation5 + $0x1c8] sm:$0xff]
        %v281 = vld [vmem:[#allocation5 + $0x1d0] sm:$0xff]
        %v282 = vld [vmem:[#allocation5 + $0x1d8] sm:$0xff]
        %v283 = vld [vmem:[#allocation5 + $0x1e0] sm:$0xff]
        %v284 = vld [vmem:[#allocation5 + $0x1e8] sm:$0xff]
        %v285 = vld [vmem:[#allocation5 + $0x1f0] sm:$0xff]
        %v286 = vld [vmem:[#allocation5 + $0x1f8] sm:$0xff]
        %v287 = vld [vmem:[%s2] sm:$0x3]
        %v289 = vlaneseq
        %v290 = vshrl.u32 %v289, 7
        %v291 = vsub.s32 0, %v290
        %v292 = vrot.slane %v287, %v291
        %v293 = vlaneseq
        %v294 = vshrl.u32 %v293, 7
        %v295 = vsub.s32 1, %v294
        %v296 = vrot.slane %v287, %v295
        %v299 = vand.u32 %v254, 4294901760
        %300 = vmatprep.subr.mxu0 %v299
        %v301 = vand.u32 %v253, 4294901760
        %302 = vmatpush1.msra.mxu0 %v301
        %v303 = vand.u32 %v252, 4294901760
        %304 = vmatprep.subr.mxu0 %v303
        %v305 = vand.u32 %v251, 4294901760
        %306 = vmatpush1.msra.mxu0 %v305
        %v307 = vand.u32 %v250, 4294901760
        %308 = vmatprep.subr.mxu0 %v307
        %v309 = vand.u32 %v249, 4294901760
        %310 = vmatpush1.msra.mxu0 %v309
        %v311 = vand.u32 %v248, 4294901760
        %312 = vmatprep.subr.mxu0 %v311
        %v313 = vand.u32 %v247, 4294901760
        %314 = vmatpush1.msra.mxu0 %v313
        %v315 = vand.u32 %v246, 4294901760
        %316 = vmatprep.subr.mxu0 %v315
        %v317 = vand.u32 %v245, 4294901760
        %318 = vmatpush1.msra.mxu0 %v317
        %v319 = vand.u32 %v244, 4294901760
        %320 = vmatprep.subr.mxu0 %v319
        %v321 = vand.u32 %v243, 4294901760
        %322 = vmatpush1.msra.mxu0 %v321
        %v323 = vand.u32 %v242, 4294901760
        %324 = vmatprep.subr.mxu0 %v323
        %v325 = vand.u32 %v241, 4294901760
        %326 = vmatpush1.msra.mxu0 %v325
        %v327 = vand.u32 %v240, 4294901760
        %328 = vmatprep.subr.mxu0 %v327
        %v329 = vand.u32 %v239, 4294901760
        %330 = vmatpush1.msra.mxu0 %v329
        %v331 = vand.u32 %v238, 4294901760
        %332 = vmatprep.subr.mxu0 %v331
        %v333 = vand.u32 %v237, 4294901760
        %334 = vmatpush1.msra.mxu0 %v333
        %v335 = vand.u32 %v236, 4294901760
        %336 = vmatprep.subr.mxu0 %v335
        %v337 = vand.u32 %v235, 4294901760
        %338 = vmatpush1.msra.mxu0 %v337
        %v339 = vand.u32 %v234, 4294901760
        %340 = vmatprep.subr.mxu0 %v339
        %v341 = vand.u32 %v233, 4294901760
        %342 = vmatpush1.msra.mxu0 %v341
        %v343 = vand.u32 %v232, 4294901760
        %344 = vmatprep.subr.mxu0 %v343
        %v345 = vand.u32 %v231, 4294901760
        %346 = vmatpush1.msra.mxu0 %v345
        %v347 = vand.u32 %v230, 4294901760
        %348 = vmatprep.subr.mxu0 %v347
        %v349 = vand.u32 %v229, 4294901760
        %350 = vmatpush1.msra.mxu0 %v349
        %v351 = vand.u32 %v228, 4294901760
        %352 = vmatprep.subr.mxu0 %v351
        %v353 = vand.u32 %v227, 4294901760
        %354 = vmatpush1.msra.mxu0 %v353
        %v355 = vand.u32 %v226, 4294901760
        %356 = vmatprep.subr.mxu0 %v355
        %v357 = vand.u32 %v225, 4294901760
        %358 = vmatpush1.msra.mxu0 %v357
        %v359 = vand.u32 %v224, 4294901760
        %360 = vmatprep.subr.mxu0 %v359
        %v361 = vand.u32 %v223, 4294901760
        %362 = vmatpush1.msra.mxu0 %v361
        %v363 = vand.u32 %v286, 4294901760
        %364 = vmatprep.subr.mxu0 %v363
        %v365 = vand.u32 %v285, 4294901760
        %366 = vmatpush2.msra.mxu0 %v365
        %v367 = vand.u32 %v284, 4294901760
        %368 = vmatprep.subr.mxu0 %v367
        %v369 = vand.u32 %v283, 4294901760
        %370 = vmatpush2.msra.mxu0 %v369
        %v371 = vand.u32 %v282, 4294901760
        %372 = vmatprep.subr.mxu0 %v371
        %v373 = vand.u32 %v281, 4294901760
        %374 = vmatpush2.msra.mxu0 %v373
        %v375 = vand.u32 %v280, 4294901760
        %376 = vmatprep.subr.mxu0 %v375
        %v377 = vand.u32 %v279, 4294901760
        %378 = vmatpush2.msra.mxu0 %v377
        %v379 = vand.u32 %v278, 4294901760
        %380 = vmatprep.subr.mxu0 %v379
        %v381 = vand.u32 %v277, 4294901760
        %382 = vmatpush2.msra.mxu0 %v381
        %v383 = vand.u32 %v276, 4294901760
        %384 = vmatprep.subr.mxu0 %v383
        %v385 = vand.u32 %v275, 4294901760
        %386 = vmatpush2.msra.mxu0 %v385
        %v387 = vand.u32 %v274, 4294901760
        %388 = vmatprep.subr.mxu0 %v387
        %v389 = vand.u32 %v273, 4294901760
        %390 = vmatpush2.msra.mxu0 %v389
        %v391 = vand.u32 %v272, 4294901760
        %392 = vmatprep.subr.mxu0 %v391
        %v393 = vand.u32 %v271, 4294901760
        %394 = vmatpush2.msra.mxu0 %v393
        %v395 = vand.u32 %v270, 4294901760
        %396 = vmatprep.subr.mxu0 %v395
        %v397 = vand.u32 %v269, 4294901760
        %398 = vmatpush2.msra.mxu0 %v397
        %v399 = vand.u32 %v268, 4294901760
        %400 = vmatprep.subr.mxu0 %v399
        %v401 = vand.u32 %v267, 4294901760
        %402 = vmatpush2.msra.mxu0 %v401
        %v403 = vand.u32 %v266, 4294901760
        %404 = vmatprep.subr.mxu0 %v403
        %v405 = vand.u32 %v265, 4294901760
        %406 = vmatpush2.msra.mxu0 %v405
        %v407 = vand.u32 %v264, 4294901760
        %408 = vmatprep.subr.mxu0 %v407
        %v409 = vand.u32 %v263, 4294901760
        %410 = vmatpush2.msra.mxu0 %v409
        %v411 = vand.u32 %v262, 4294901760
        %412 = vmatprep.subr.mxu0 %v411
        %v413 = vand.u32 %v261, 4294901760
        %414 = vmatpush2.msra.mxu0 %v413
        %v415 = vand.u32 %v260, 4294901760
        %416 = vmatprep.subr.mxu0 %v415
        %v417 = vand.u32 %v259, 4294901760
        %418 = vmatpush2.msra.mxu0 %v417
        %v419 = vand.u32 %v258, 4294901760
        %420 = vmatprep.subr.mxu0 %v419
        %v421 = vand.u32 %v257, 4294901760
        %422 = vmatpush2.msra.mxu0 %v421
        %v423 = vand.u32 %v256, 4294901760
        %424 = vmatprep.subr.mxu0 %v423
        %v425 = vand.u32 %v255, 4294901760
        %426 = vmatpush2.msra.mxu0 %v425
        %v427 = vand.u32 %v208, 4294901760
        %v428 = vsub.f32 %v208, %v427
        %v429 = vand.u32 %v428, 4294901760
        %v430 = vsub.f32 %v428, %v429
        %v431 = vand.u32 %v430, 4294901760
        %432 = vmatprep.mubr.f32.mxu0 %v431
        %v433 = vand.u32 %v207, 4294901760
        %v434 = vsub.f32 %v207, %v433
        %v435 = vand.u32 %v434, 4294901760
        %v436 = vsub.f32 %v434, %v435
        %v437 = vand.u32 %v436, 4294901760
        %438 = vmatmul.mubr.f32.gmra.mxu0 %v437
        %v439 = vpop.f32.mrf.mxu0
        %v440 = vadd.f32 %v292, %v439
        %v441 = vpop.f32.mrf.mxu0
        %v442 = vadd.f32 %v296, %v441
        %v443 = vand.u32 %v210, 4294901760
        %v444 = vsub.f32 %v210, %v443
        %v445 = vand.u32 %v444, 4294901760
        %v446 = vsub.f32 %v444, %v445
        %v447 = vand.u32 %v446, 4294901760
        %448 = vmatprep.mubr.f32.mxu0 %v447
        %v449 = vand.u32 %v209, 4294901760
        %v450 = vsub.f32 %v209, %v449
        %v451 = vand.u32 %v450, 4294901760
        %v452 = vsub.f32 %v450, %v451
        %v453 = vand.u32 %v452, 4294901760
        %454 = vmatmul.mubr.f32.gmra.mxu0 %v453
        %v455 = vpop.f32.mrf.mxu0
        %v456 = vadd.f32 %v292, %v455
        %v457 = vpop.f32.mrf.mxu0
        %v458 = vadd.f32 %v296, %v457
        %v459 = vand.u32 %v212, 4294901760
        %v460 = vsub.f32 %v212, %v459
        %v461 = vand.u32 %v460, 4294901760
        %v462 = vsub.f32 %v460, %v461
        %v463 = vand.u32 %v462, 4294901760
        %464 = vmatprep.mubr.f32.mxu0 %v463
        %v465 = vand.u32 %v211, 4294901760
        %v466 = vsub.f32 %v211, %v465
        %v467 = vand.u32 %v466, 4294901760
        %v468 = vsub.f32 %v466, %v467
        %v469 = vand.u32 %v468, 4294901760
        %470 = vmatmul.mubr.f32.gmra.mxu0 %v469
        %v471 = vpop.f32.mrf.mxu0
        %v472 = vadd.f32 %v292, %v471
        %v473 = vpop.f32.mrf.mxu0
        %v474 = vadd.f32 %v296, %v473
        %v475 = vand.u32 %v214, 4294901760
        %v476 = vsub.f32 %v214, %v475
        %v477 = vand.u32 %v476, 4294901760
        %v478 = vsub.f32 %v476, %v477
        %v479 = vand.u32 %v478, 4294901760
        %480 = vmatprep.mubr.f32.mxu0 %v479
        %v481 = vand.u32 %v213, 4294901760
        %v482 = vsub.f32 %v213, %v481
        %v483 = vand.u32 %v482, 4294901760
        %v484 = vsub.f32 %v482, %v483
        %v485 = vand.u32 %v484, 4294901760
        %486 = vmatmul.mubr.f32.gmra.mxu0 %v485
        %v487 = vpop.f32.mrf.mxu0
        %v488 = vadd.f32 %v292, %v487
        %v489 = vpop.f32.mrf.mxu0
        %v490 = vadd.f32 %v296, %v489
        %v491 = vand.u32 %v216, 4294901760
        %v492 = vsub.f32 %v216, %v491
        %v493 = vand.u32 %v492, 4294901760
        %v494 = vsub.f32 %v492, %v493
        %v495 = vand.u32 %v494, 4294901760
        %496 = vmatprep.mubr.f32.mxu0 %v495
        %v497 = vand.u32 %v215, 4294901760
        %v498 = vsub.f32 %v215, %v497
        %v499 = vand.u32 %v498, 4294901760
        %v500 = vsub.f32 %v498, %v499
        %v501 = vand.u32 %v500, 4294901760
        %502 = vmatmul.mubr.f32.gmra.mxu0 %v501
        %v503 = vpop.f32.mrf.mxu0
        %v504 = vadd.f32 %v292, %v503
        %v505 = vpop.f32.mrf.mxu0
        %v506 = vadd.f32 %v296, %v505
        %v507 = vand.u32 %v218, 4294901760
        %v508 = vsub.f32 %v218, %v507
        %v509 = vand.u32 %v508, 4294901760
        %v510 = vsub.f32 %v508, %v509
        %v511 = vand.u32 %v510, 4294901760
        %512 = vmatprep.mubr.f32.mxu0 %v511
        %v513 = vand.u32 %v217, 4294901760
        %v514 = vsub.f32 %v217, %v513
        %v515 = vand.u32 %v514, 4294901760
        %v516 = vsub.f32 %v514, %v515
        %v517 = vand.u32 %v516, 4294901760
        %518 = vmatmul.mubr.f32.gmra.mxu0 %v517
        %v519 = vpop.f32.mrf.mxu0
        %v520 = vadd.f32 %v292, %v519
        %v521 = vpop.f32.mrf.mxu0
        %v522 = vadd.f32 %v296, %v521
        %v523 = vand.u32 %v220, 4294901760
        %v524 = vsub.f32 %v220, %v523
        %v525 = vand.u32 %v524, 4294901760
        %v526 = vsub.f32 %v524, %v525
        %v527 = vand.u32 %v526, 4294901760
        %528 = vmatprep.mubr.f32.mxu0 %v527
        %v529 = vand.u32 %v219, 4294901760
        %v530 = vsub.f32 %v219, %v529
        %v531 = vand.u32 %v530, 4294901760
        %v532 = vsub.f32 %v530, %v531
        %v533 = vand.u32 %v532, 4294901760
        %534 = vmatmul.mubr.f32.gmra.mxu0 %v533
        %v535 = vpop.f32.mrf.mxu0
        %v536 = vadd.f32 %v292, %v535
        %v537 = vpop.f32.mrf.mxu0
        %v538 = vadd.f32 %v296, %v537
        %v539 = vand.u32 %v222, 4294901760
        %v540 = vsub.f32 %v222, %v539
        %v541 = vand.u32 %v540, 4294901760
        %v542 = vsub.f32 %v540, %v541
        %v543 = vand.u32 %v542, 4294901760
        %544 = vmatprep.mubr.f32.mxu0 %v543
        %v545 = vand.u32 %v221, 4294901760
        %v546 = vsub.f32 %v221, %v545
        %v547 = vand.u32 %v546, 4294901760
        %v548 = vsub.f32 %v546, %v547
        %v549 = vand.u32 %v548, 4294901760
        %550 = vmatmul.mubr.f32.gmra.mxu0 %v549
        %v551 = vpop.f32.mrf.mxu0
        %v552 = vadd.f32 %v292, %v551
        %v553 = vpop.f32.mrf.mxu0
        %v554 = vadd.f32 %v296, %v553
        %555 = vdwg.mxu0
        %v556 = vand.u32 %v254, 4294901760
        %v557 = vsub.f32 %v254, %v556
        %v558 = vand.u32 %v557, 4294901760
        %v559 = vsub.f32 %v557, %v558
        %v560 = vand.u32 %v559, 4294901760
        %561 = vmatprep.subr.mxu0 %v560
        %v562 = vand.u32 %v253, 4294901760
        %v563 = vsub.f32 %v253, %v562
        %v564 = vand.u32 %v563, 4294901760
        %v565 = vsub.f32 %v563, %v564
        %v566 = vand.u32 %v565, 4294901760
        %567 = vmatpush1.msra.mxu0 %v566
        %v568 = vand.u32 %v252, 4294901760
        %v569 = vsub.f32 %v252, %v568
        %v570 = vand.u32 %v569, 4294901760
        %v571 = vsub.f32 %v569, %v570
        %v572 = vand.u32 %v571, 4294901760
        %573 = vmatprep.subr.mxu0 %v572
        %v574 = vand.u32 %v251, 4294901760
        %v575 = vsub.f32 %v251, %v574
        %v576 = vand.u32 %v575, 4294901760
        %v577 = vsub.f32 %v575, %v576
        %v578 = vand.u32 %v577, 4294901760
        %579 = vmatpush1.msra.mxu0 %v578
        %v580 = vand.u32 %v250, 4294901760
        %v581 = vsub.f32 %v250, %v580
        %v582 = vand.u32 %v581, 4294901760
        %v583 = vsub.f32 %v581, %v582
        %v584 = vand.u32 %v583, 4294901760
        %585 = vmatprep.subr.mxu0 %v584
        %v586 = vand.u32 %v249, 4294901760
        %v587 = vsub.f32 %v249, %v586
        %v588 = vand.u32 %v587, 4294901760
        %v589 = vsub.f32 %v587, %v588
        %v590 = vand.u32 %v589, 4294901760
        %591 = vmatpush1.msra.mxu0 %v590
        %v592 = vand.u32 %v248, 4294901760
        %v593 = vsub.f32 %v248, %v592
        %v594 = vand.u32 %v593, 4294901760
        %v595 = vsub.f32 %v593, %v594
        %v596 = vand.u32 %v595, 4294901760
        %597 = vmatprep.subr.mxu0 %v596
        %v598 = vand.u32 %v247, 4294901760
        %v599 = vsub.f32 %v247, %v598
        %v600 = vand.u32 %v599, 4294901760
        %v601 = vsub.f32 %v599, %v600
        %v602 = vand.u32 %v601, 4294901760
        %603 = vmatpush1.msra.mxu0 %v602
        %v604 = vand.u32 %v246, 4294901760
        %v605 = vsub.f32 %v246, %v604
        %v606 = vand.u32 %v605, 4294901760
        %v607 = vsub.f32 %v605, %v606
        %v608 = vand.u32 %v607, 4294901760
        %609 = vmatprep.subr.mxu0 %v608
        %v610 = vand.u32 %v245, 4294901760
        %v611 = vsub.f32 %v245, %v610
        %v612 = vand.u32 %v611, 4294901760
        %v613 = vsub.f32 %v611, %v612
        %v614 = vand.u32 %v613, 4294901760
        %615 = vmatpush1.msra.mxu0 %v614
        %v616 = vand.u32 %v244, 4294901760
        %v617 = vsub.f32 %v244, %v616
        %v618 = vand.u32 %v617, 4294901760
        %v619 = vsub.f32 %v617, %v618
        %v620 = vand.u32 %v619, 4294901760
        %621 = vmatprep.subr.mxu0 %v620
        %v622 = vand.u32 %v243, 4294901760
        %v623 = vsub.f32 %v243, %v622
        %v624 = vand.u32 %v623, 4294901760
        %v625 = vsub.f32 %v623, %v624
        %v626 = vand.u32 %v625, 4294901760
        %627 = vmatpush1.msra.mxu0 %v626
        %v628 = vand.u32 %v242, 4294901760
        %v629 = vsub.f32 %v242, %v628
        %v630 = vand.u32 %v629, 4294901760
        %v631 = vsub.f32 %v629, %v630
        %v632 = vand.u32 %v631, 4294901760
        %633 = vmatprep.subr.mxu0 %v632
        %v634 = vand.u32 %v241, 4294901760
        %v635 = vsub.f32 %v241, %v634
        %v636 = vand.u32 %v635, 4294901760
        %v637 = vsub.f32 %v635, %v636
        %v638 = vand.u32 %v637, 4294901760
        %639 = vmatpush1.msra.mxu0 %v638
        %v640 = vand.u32 %v240, 4294901760
        %v641 = vsub.f32 %v240, %v640
        %v642 = vand.u32 %v641, 4294901760
        %v643 = vsub.f32 %v641, %v642
        %v644 = vand.u32 %v643, 4294901760
        %645 = vmatprep.subr.mxu0 %v644
        %v646 = vand.u32 %v239, 4294901760
        %v647 = vsub.f32 %v239, %v646
        %v648 = vand.u32 %v647, 4294901760
        %v649 = vsub.f32 %v647, %v648
        %v650 = vand.u32 %v649, 4294901760
        %651 = vmatpush1.msra.mxu0 %v650
        %v652 = vand.u32 %v238, 4294901760
        %v653 = vsub.f32 %v238, %v652
        %v654 = vand.u32 %v653, 4294901760
        %v655 = vsub.f32 %v653, %v654
        %v656 = vand.u32 %v655, 4294901760
        %657 = vmatprep.subr.mxu0 %v656
        %v658 = vand.u32 %v237, 4294901760
        %v659 = vsub.f32 %v237, %v658
        %v660 = vand.u32 %v659, 4294901760
        %v661 = vsub.f32 %v659, %v660
        %v662 = vand.u32 %v661, 4294901760
        %663 = vmatpush1.msra.mxu0 %v662
        %v664 = vand.u32 %v236, 4294901760
        %v665 = vsub.f32 %v236, %v664
        %v666 = vand.u32 %v665, 4294901760
        %v667 = vsub.f32 %v665, %v666
        %v668 = vand.u32 %v667, 4294901760
        %669 = vmatprep.subr.mxu0 %v668
        %v670 = vand.u32 %v235, 4294901760
        %v671 = vsub.f32 %v235, %v670
        %v672 = vand.u32 %v671, 4294901760
        %v673 = vsub.f32 %v671, %v672
        %v674 = vand.u32 %v673, 4294901760
        %675 = vmatpush1.msra.mxu0 %v674
        %v676 = vand.u32 %v234, 4294901760
        %v677 = vsub.f32 %v234, %v676
        %v678 = vand.u32 %v677, 4294901760
        %v679 = vsub.f32 %v677, %v678
        %v680 = vand.u32 %v679, 4294901760
        %681 = vmatprep.subr.mxu0 %v680
        %v682 = vand.u32 %v233, 4294901760
        %v683 = vsub.f32 %v233, %v682
        %v684 = vand.u32 %v683, 4294901760
        %v685 = vsub.f32 %v683, %v684
        %v686 = vand.u32 %v685, 4294901760
        %687 = vmatpush1.msra.mxu0 %v686
        %v688 = vand.u32 %v232, 4294901760
        %v689 = vsub.f32 %v232, %v688
        %v690 = vand.u32 %v689, 4294901760
        %v691 = vsub.f32 %v689, %v690
        %v692 = vand.u32 %v691, 4294901760
        %693 = vmatprep.subr.mxu0 %v692
        %v694 = vand.u32 %v231, 4294901760
        %v695 = vsub.f32 %v231, %v694
        %v696 = vand.u32 %v695, 4294901760
        %v697 = vsub.f32 %v695, %v696
        %v698 = vand.u32 %v697, 4294901760
        %699 = vmatpush1.msra.mxu0 %v698
        %v700 = vand.u32 %v230, 4294901760
        %v701 = vsub.f32 %v230, %v700
        %v702 = vand.u32 %v701, 4294901760
        %v703 = vsub.f32 %v701, %v702
        %v704 = vand.u32 %v703, 4294901760
        %705 = vmatprep.subr.mxu0 %v704
        %v706 = vand.u32 %v229, 4294901760
        %v707 = vsub.f32 %v229, %v706
        %v708 = vand.u32 %v707, 4294901760
        %v709 = vsub.f32 %v707, %v708
        %v710 = vand.u32 %v709, 4294901760
        %711 = vmatpush1.msra.mxu0 %v710
        %v712 = vand.u32 %v228, 4294901760
        %v713 = vsub.f32 %v228, %v712
        %v714 = vand.u32 %v713, 4294901760
        %v715 = vsub.f32 %v713, %v714
        %v716 = vand.u32 %v715, 4294901760
        %717 = vmatprep.subr.mxu0 %v716
        %v718 = vand.u32 %v227, 4294901760
        %v719 = vsub.f32 %v227, %v718
        %v720 = vand.u32 %v719, 4294901760
        %v721 = vsub.f32 %v719, %v720
        %v722 = vand.u32 %v721, 4294901760
        %723 = vmatpush1.msra.mxu0 %v722
        %v724 = vand.u32 %v226, 4294901760
        %v725 = vsub.f32 %v226, %v724
        %v726 = vand.u32 %v725, 4294901760
        %v727 = vsub.f32 %v725, %v726
        %v728 = vand.u32 %v727, 4294901760
        %729 = vmatprep.subr.mxu0 %v728
        %v730 = vand.u32 %v225, 4294901760
        %v731 = vsub.f32 %v225, %v730
        %v732 = vand.u32 %v731, 4294901760
        %v733 = vsub.f32 %v731, %v732
        %v734 = vand.u32 %v733, 4294901760
        %735 = vmatpush1.msra.mxu0 %v734
        %v736 = vand.u32 %v224, 4294901760
        %v737 = vsub.f32 %v224, %v736
        %v738 = vand.u32 %v737, 4294901760
        %v739 = vsub.f32 %v737, %v738
        %v740 = vand.u32 %v739, 4294901760
        %741 = vmatprep.subr.mxu0 %v740
        %v742 = vand.u32 %v223, 4294901760
        %v743 = vsub.f32 %v223, %v742
        %v744 = vand.u32 %v743, 4294901760
        %v745 = vsub.f32 %v743, %v744
        %v746 = vand.u32 %v745, 4294901760
        %747 = vmatpush1.msra.mxu0 %v746
        %v748 = vand.u32 %v286, 4294901760
        %v749 = vsub.f32 %v286, %v748
        %v750 = vand.u32 %v749, 4294901760
        %v751 = vsub.f32 %v749, %v750
        %v752 = vand.u32 %v751, 4294901760
        %753 = vmatprep.subr.mxu0 %v752
        %v754 = vand.u32 %v285, 4294901760
        %v755 = vsub.f32 %v285, %v754
        %v756 = vand.u32 %v755, 4294901760
        %v757 = vsub.f32 %v755, %v756
        %v758 = vand.u32 %v757, 4294901760
        %759 = vmatpush2.msra.mxu0 %v758
        %v760 = vand.u32 %v284, 4294901760
        %v761 = vsub.f32 %v284, %v760
        %v762 = vand.u32 %v761, 4294901760
        %v763 = vsub.f32 %v761, %v762
        %v764 = vand.u32 %v763, 4294901760
        %765 = vmatprep.subr.mxu0 %v764
        %v766 = vand.u32 %v283, 4294901760
        %v767 = vsub.f32 %v283, %v766
        %v768 = vand.u32 %v767, 4294901760
        %v769 = vsub.f32 %v767, %v768
        %v770 = vand.u32 %v769, 4294901760
        %771 = vmatpush2.msra.mxu0 %v770
        %v772 = vand.u32 %v282, 4294901760
        %v773 = vsub.f32 %v282, %v772
        %v774 = vand.u32 %v773, 4294901760
        %v775 = vsub.f32 %v773, %v774
        %v776 = vand.u32 %v775, 4294901760
        %777 = vmatprep.subr.mxu0 %v776
        %v778 = vand.u32 %v281, 4294901760
        %v779 = vsub.f32 %v281, %v778
        %v780 = vand.u32 %v779, 4294901760
        %v781 = vsub.f32 %v779, %v780
        %v782 = vand.u32 %v781, 4294901760
        %783 = vmatpush2.msra.mxu0 %v782
        %v784 = vand.u32 %v280, 4294901760
        %v785 = vsub.f32 %v280, %v784
        %v786 = vand.u32 %v785, 4294901760
        %v787 = vsub.f32 %v785, %v786
        %v788 = vand.u32 %v787, 4294901760
        %789 = vmatprep.subr.mxu0 %v788
        %v790 = vand.u32 %v279, 4294901760
        %v791 = vsub.f32 %v279, %v790
        %v792 = vand.u32 %v791, 4294901760
        %v793 = vsub.f32 %v791, %v792
        %v794 = vand.u32 %v793, 4294901760
        %795 = vmatpush2.msra.mxu0 %v794
        %v796 = vand.u32 %v278, 4294901760
        %v797 = vsub.f32 %v278, %v796
        %v798 = vand.u32 %v797, 4294901760
        %v799 = vsub.f32 %v797, %v798
        %v800 = vand.u32 %v799, 4294901760
        %801 = vmatprep.subr.mxu0 %v800
        %v802 = vand.u32 %v277, 4294901760
        %v803 = vsub.f32 %v277, %v802
        %v804 = vand.u32 %v803, 4294901760
        %v805 = vsub.f32 %v803, %v804
        %v806 = vand.u32 %v805, 4294901760
        %807 = vmatpush2.msra.mxu0 %v806
        %v808 = vand.u32 %v276, 4294901760
        %v809 = vsub.f32 %v276, %v808
        %v810 = vand.u32 %v809, 4294901760
        %v811 = vsub.f32 %v809, %v810
        %v812 = vand.u32 %v811, 4294901760
        %813 = vmatprep.subr.mxu0 %v812
        %v814 = vand.u32 %v275, 4294901760
        %v815 = vsub.f32 %v275, %v814
        %v816 = vand.u32 %v815, 4294901760
        %v817 = vsub.f32 %v815, %v816
        %v818 = vand.u32 %v817, 4294901760
        %819 = vmatpush2.msra.mxu0 %v818
        %v820 = vand.u32 %v274, 4294901760
        %v821 = vsub.f32 %v274, %v820
        %v822 = vand.u32 %v821, 4294901760
        %v823 = vsub.f32 %v821, %v822
        %v824 = vand.u32 %v823, 4294901760
        %825 = vmatprep.subr.mxu0 %v824
        %v826 = vand.u32 %v273, 4294901760
        %v827 = vsub.f32 %v273, %v826
        %v828 = vand.u32 %v827, 4294901760
        %v829 = vsub.f32 %v827, %v828
        %v830 = vand.u32 %v829, 4294901760
        %831 = vmatpush2.msra.mxu0 %v830
        %v832 = vand.u32 %v272, 4294901760
        %v833 = vsub.f32 %v272, %v832
        %v834 = vand.u32 %v833, 4294901760
        %v835 = vsub.f32 %v833, %v834
        %v836 = vand.u32 %v835, 4294901760
        %837 = vmatprep.subr.mxu0 %v836
        %v838 = vand.u32 %v271, 4294901760
        %v839 = vsub.f32 %v271, %v838
        %v840 = vand.u32 %v839, 4294901760
        %v841 = vsub.f32 %v839, %v840
        %v842 = vand.u32 %v841, 4294901760
        %843 = vmatpush2.msra.mxu0 %v842
        %v844 = vand.u32 %v270, 4294901760
        %v845 = vsub.f32 %v270, %v844
        %v846 = vand.u32 %v845, 4294901760
        %v847 = vsub.f32 %v845, %v846
        %v848 = vand.u32 %v847, 4294901760
        %849 = vmatprep.subr.mxu0 %v848
        %v850 = vand.u32 %v269, 4294901760
        %v851 = vsub.f32 %v269, %v850
        %v852 = vand.u32 %v851, 4294901760
        %v853 = vsub.f32 %v851, %v852
        %v854 = vand.u32 %v853, 4294901760
        %855 = vmatpush2.msra.mxu0 %v854
        %v856 = vand.u32 %v268, 4294901760
        %v857 = vsub.f32 %v268, %v856
        %v858 = vand.u32 %v857, 4294901760
        %v859 = vsub.f32 %v857, %v858
        %v860 = vand.u32 %v859, 4294901760
        %861 = vmatprep.subr.mxu0 %v860
        %v862 = vand.u32 %v267, 4294901760
        %v863 = vsub.f32 %v267, %v862
        %v864 = vand.u32 %v863, 4294901760
        %v865 = vsub.f32 %v863, %v864
        %v866 = vand.u32 %v865, 4294901760
        %867 = vmatpush2.msra.mxu0 %v866
        %v868 = vand.u32 %v266, 4294901760
        %v869 = vsub.f32 %v266, %v868
        %v870 = vand.u32 %v869, 4294901760
        %v871 = vsub.f32 %v869, %v870
        %v872 = vand.u32 %v871, 4294901760
        %873 = vmatprep.subr.mxu0 %v872
        %v874 = vand.u32 %v265, 4294901760
        %v875 = vsub.f32 %v265, %v874
        %v876 = vand.u32 %v875, 4294901760
        %v877 = vsub.f32 %v875, %v876
        %v878 = vand.u32 %v877, 4294901760
        %879 = vmatpush2.msra.mxu0 %v878
        %v880 = vand.u32 %v264, 4294901760
        %v881 = vsub.f32 %v264, %v880
        %v882 = vand.u32 %v881, 4294901760
        %v883 = vsub.f32 %v881, %v882
        %v884 = vand.u32 %v883, 4294901760
        %885 = vmatprep.subr.mxu0 %v884
        %v886 = vand.u32 %v263, 4294901760
        %v887 = vsub.f32 %v263, %v886
        %v888 = vand.u32 %v887, 4294901760
        %v889 = vsub.f32 %v887, %v888
        %v890 = vand.u32 %v889, 4294901760
        %891 = vmatpush2.msra.mxu0 %v890
        %v892 = vand.u32 %v262, 4294901760
        %v893 = vsub.f32 %v262, %v892
        %v894 = vand.u32 %v893, 4294901760
        %v895 = vsub.f32 %v893, %v894
        %v896 = vand.u32 %v895, 4294901760
        %897 = vmatprep.subr.mxu0 %v896
        %v898 = vand.u32 %v261, 4294901760
        %v899 = vsub.f32 %v261, %v898
        %v900 = vand.u32 %v899, 4294901760
        %v901 = vsub.f32 %v899, %v900
        %v902 = vand.u32 %v901, 4294901760
        %903 = vmatpush2.msra.mxu0 %v902
        %v904 = vand.u32 %v260, 4294901760
        %v905 = vsub.f32 %v260, %v904
        %v906 = vand.u32 %v905, 4294901760
        %v907 = vsub.f32 %v905, %v906
        %v908 = vand.u32 %v907, 4294901760
        %909 = vmatprep.subr.mxu0 %v908
        %v910 = vand.u32 %v259, 4294901760
        %v911 = vsub.f32 %v259, %v910
        %v912 = vand.u32 %v911, 4294901760
        %v913 = vsub.f32 %v911, %v912
        %v914 = vand.u32 %v913, 4294901760
        %915 = vmatpush2.msra.mxu0 %v914
        %v916 = vand.u32 %v258, 4294901760
        %v917 = vsub.f32 %v258, %v916
        %v918 = vand.u32 %v917, 4294901760
        %v919 = vsub.f32 %v917, %v918
        %v920 = vand.u32 %v919, 4294901760
        %921 = vmatprep.subr.mxu0 %v920
        %v922 = vand.u32 %v257, 4294901760
        %v923 = vsub.f32 %v257, %v922
        %v924 = vand.u32 %v923, 4294901760
        %v925 = vsub.f32 %v923, %v924
        %v926 = vand.u32 %v925, 4294901760
        %927 = vmatpush2.msra.mxu0 %v926
        %v928 = vand.u32 %v256, 4294901760
        %v929 = vsub.f32 %v256, %v928
        %v930 = vand.u32 %v929, 4294901760
        %v931 = vsub.f32 %v929, %v930
        %v932 = vand.u32 %v931, 4294901760
        %933 = vmatprep.subr.mxu0 %v932
        %v934 = vand.u32 %v255, 4294901760
        %v935 = vsub.f32 %v255, %v934
        %v936 = vand.u32 %v935, 4294901760
        %v937 = vsub.f32 %v935, %v936
        %v938 = vand.u32 %v937, 4294901760
        %939 = vmatpush2.msra.mxu0 %v938
        %v940 = vand.u32 %v208, 4294901760
        %941 = vmatprep.mubr.f32.mxu0 %v940
        %v942 = vand.u32 %v207, 4294901760
        %943 = vmatmul.mubr.f32.gmra.mxu0 %v942
        %v944 = vpop.f32.mrf.mxu0
        %v945 = vadd.f32 %v440, %v944
        %v946 = vpop.f32.mrf.mxu0
        %v947 = vadd.f32 %v442, %v946
        %v948 = vand.u32 %v210, 4294901760
        %949 = vmatprep.mubr.f32.mxu0 %v948
        %v950 = vand.u32 %v209, 4294901760
        %951 = vmatmul.mubr.f32.gmra.mxu0 %v950
        %v952 = vpop.f32.mrf.mxu0
        %v953 = vadd.f32 %v456, %v952
        %v954 = vpop.f32.mrf.mxu0
        %v955 = vadd.f32 %v458, %v954
        %v956 = vand.u32 %v212, 4294901760
        %957 = vmatprep.mubr.f32.mxu0 %v956
        %v958 = vand.u32 %v211, 4294901760
        %959 = vmatmul.mubr.f32.gmra.mxu0 %v958
        %v960 = vpop.f32.mrf.mxu0
        %v961 = vadd.f32 %v472, %v960
        %v962 = vpop.f32.mrf.mxu0
        %v963 = vadd.f32 %v474, %v962
        %v964 = vand.u32 %v214, 4294901760
        %965 = vmatprep.mubr.f32.mxu0 %v964
        %v966 = vand.u32 %v213, 4294901760
        %967 = vmatmul.mubr.f32.gmra.mxu0 %v966
        %v968 = vpop.f32.mrf.mxu0
        %v969 = vadd.f32 %v488, %v968
        %v970 = vpop.f32.mrf.mxu0
        %v971 = vadd.f32 %v490, %v970
        %v972 = vand.u32 %v216, 4294901760
        %973 = vmatprep.mubr.f32.mxu0 %v972
        %v974 = vand.u32 %v215, 4294901760
        %975 = vmatmul.mubr.f32.gmra.mxu0 %v974
        %v976 = vpop.f32.mrf.mxu0
        %v977 = vadd.f32 %v504, %v976
        %v978 = vpop.f32.mrf.mxu0
        %v979 = vadd.f32 %v506, %v978
        %v980 = vand.u32 %v218, 4294901760
        %981 = vmatprep.mubr.f32.mxu0 %v980
        %v982 = vand.u32 %v217, 4294901760
        %983 = vmatmul.mubr.f32.gmra.mxu0 %v982
        %v984 = vpop.f32.mrf.mxu0
        %v985 = vadd.f32 %v520, %v984
        %v986 = vpop.f32.mrf.mxu0
        %v987 = vadd.f32 %v522, %v986
        %v988 = vand.u32 %v220, 4294901760
        %989 = vmatprep.mubr.f32.mxu0 %v988
        %v990 = vand.u32 %v219, 4294901760
        %991 = vmatmul.mubr.f32.gmra.mxu0 %v990
        %v992 = vpop.f32.mrf.mxu0
        %v993 = vadd.f32 %v536, %v992
        %v994 = vpop.f32.mrf.mxu0
        %v995 = vadd.f32 %v538, %v994
        %v996 = vand.u32 %v222, 4294901760
        %997 = vmatprep.mubr.f32.mxu0 %v996
        %v998 = vand.u32 %v221, 4294901760
        %999 = vmatmul.mubr.f32.gmra.mxu0 %v998
        %v1000 = vpop.f32.mrf.mxu0
        %v1001 = vadd.f32 %v552, %v1000
        %v1002 = vpop.f32.mrf.mxu0
        %v1003 = vadd.f32 %v554, %v1002
        %1004 = vdwg.mxu0
        %v1005 = vand.u32 %v254, 4294901760
        %v1006 = vsub.f32 %v254, %v1005
        %1007 = vmatprep.subr.mxu0 %v1006
        %v1008 = vand.u32 %v253, 4294901760
        %v1009 = vsub.f32 %v253, %v1008
        %1010 = vmatpush1.msra.mxu0 %v1009
        %v1011 = vand.u32 %v252, 4294901760
        %v1012 = vsub.f32 %v252, %v1011
        %1013 = vmatprep.subr.mxu0 %v1012
        %v1014 = vand.u32 %v251, 4294901760
        %v1015 = vsub.f32 %v251, %v1014
        %1016 = vmatpush1.msra.mxu0 %v1015
        %v1017 = vand.u32 %v250, 4294901760
        %v1018 = vsub.f32 %v250, %v1017
        %1019 = vmatprep.subr.mxu0 %v1018
        %v1020 = vand.u32 %v249, 4294901760
        %v1021 = vsub.f32 %v249, %v1020
        %1022 = vmatpush1.msra.mxu0 %v1021
        %v1023 = vand.u32 %v248, 4294901760
        %v1024 = vsub.f32 %v248, %v1023
        %1025 = vmatprep.subr.mxu0 %v1024
        %v1026 = vand.u32 %v247, 4294901760
        %v1027 = vsub.f32 %v247, %v1026
        %1028 = vmatpush1.msra.mxu0 %v1027
        %v1029 = vand.u32 %v246, 4294901760
        %v1030 = vsub.f32 %v246, %v1029
        %1031 = vmatprep.subr.mxu0 %v1030
        %v1032 = vand.u32 %v245, 4294901760
        %v1033 = vsub.f32 %v245, %v1032
        %1034 = vmatpush1.msra.mxu0 %v1033
        %v1035 = vand.u32 %v244, 4294901760
        %v1036 = vsub.f32 %v244, %v1035
        %1037 = vmatprep.subr.mxu0 %v1036
        %v1038 = vand.u32 %v243, 4294901760
        %v1039 = vsub.f32 %v243, %v1038
        %1040 = vmatpush1.msra.mxu0 %v1039
        %v1041 = vand.u32 %v242, 4294901760
        %v1042 = vsub.f32 %v242, %v1041
        %1043 = vmatprep.subr.mxu0 %v1042
        %v1044 = vand.u32 %v241, 4294901760
        %v1045 = vsub.f32 %v241, %v1044
        %1046 = vmatpush1.msra.mxu0 %v1045
        %v1047 = vand.u32 %v240, 4294901760
        %v1048 = vsub.f32 %v240, %v1047
        %1049 = vmatprep.subr.mxu0 %v1048
        %v1050 = vand.u32 %v239, 4294901760
        %v1051 = vsub.f32 %v239, %v1050
        %1052 = vmatpush1.msra.mxu0 %v1051
        %v1053 = vand.u32 %v238, 4294901760
        %v1054 = vsub.f32 %v238, %v1053
        %1055 = vmatprep.subr.mxu0 %v1054
        %v1056 = vand.u32 %v237, 4294901760
        %v1057 = vsub.f32 %v237, %v1056
        %1058 = vmatpush1.msra.mxu0 %v1057
        %v1059 = vand.u32 %v236, 4294901760
        %v1060 = vsub.f32 %v236, %v1059
        %1061 = vmatprep.subr.mxu0 %v1060
        %v1062 = vand.u32 %v235, 4294901760
        %v1063 = vsub.f32 %v235, %v1062
        %1064 = vmatpush1.msra.mxu0 %v1063
        %v1065 = vand.u32 %v234, 4294901760
        %v1066 = vsub.f32 %v234, %v1065
        %1067 = vmatprep.subr.mxu0 %v1066
        %v1068 = vand.u32 %v233, 4294901760
        %v1069 = vsub.f32 %v233, %v1068
        %1070 = vmatpush1.msra.mxu0 %v1069
        %v1071 = vand.u32 %v232, 4294901760
        %v1072 = vsub.f32 %v232, %v1071
        %1073 = vmatprep.subr.mxu0 %v1072
        %v1074 = vand.u32 %v231, 4294901760
        %v1075 = vsub.f32 %v231, %v1074
        %1076 = vmatpush1.msra.mxu0 %v1075
        %v1077 = vand.u32 %v230, 4294901760
        %v1078 = vsub.f32 %v230, %v1077
        %1079 = vmatprep.subr.mxu0 %v1078
        %v1080 = vand.u32 %v229, 4294901760
        %v1081 = vsub.f32 %v229, %v1080
        %1082 = vmatpush1.msra.mxu0 %v1081
        %v1083 = vand.u32 %v228, 4294901760
        %v1084 = vsub.f32 %v228, %v1083
        %1085 = vmatprep.subr.mxu0 %v1084
        %v1086 = vand.u32 %v227, 4294901760
        %v1087 = vsub.f32 %v227, %v1086
        %1088 = vmatpush1.msra.mxu0 %v1087
        %v1089 = vand.u32 %v226, 4294901760
        %v1090 = vsub.f32 %v226, %v1089
        %1091 = vmatprep.subr.mxu0 %v1090
        %v1092 = vand.u32 %v225, 4294901760
        %v1093 = vsub.f32 %v225, %v1092
        %1094 = vmatpush1.msra.mxu0 %v1093
        %v1095 = vand.u32 %v224, 4294901760
        %v1096 = vsub.f32 %v224, %v1095
        %1097 = vmatprep.subr.mxu0 %v1096
        %v1098 = vand.u32 %v223, 4294901760
        %v1099 = vsub.f32 %v223, %v1098
        %1100 = vmatpush1.msra.mxu0 %v1099
        %v1101 = vand.u32 %v286, 4294901760
        %v1102 = vsub.f32 %v286, %v1101
        %1103 = vmatprep.subr.mxu0 %v1102
        %v1104 = vand.u32 %v285, 4294901760
        %v1105 = vsub.f32 %v285, %v1104
        %1106 = vmatpush2.msra.mxu0 %v1105
        %v1107 = vand.u32 %v284, 4294901760
        %v1108 = vsub.f32 %v284, %v1107
        %1109 = vmatprep.subr.mxu0 %v1108
        %v1110 = vand.u32 %v283, 4294901760
        %v1111 = vsub.f32 %v283, %v1110
        %1112 = vmatpush2.msra.mxu0 %v1111
        %v1113 = vand.u32 %v282, 4294901760
        %v1114 = vsub.f32 %v282, %v1113
        %1115 = vmatprep.subr.mxu0 %v1114
        %v1116 = vand.u32 %v281, 4294901760
        %v1117 = vsub.f32 %v281, %v1116
        %1118 = vmatpush2.msra.mxu0 %v1117
        %v1119 = vand.u32 %v280, 4294901760
        %v1120 = vsub.f32 %v280, %v1119
        %1121 = vmatprep.subr.mxu0 %v1120
        %v1122 = vand.u32 %v279, 4294901760
        %v1123 = vsub.f32 %v279, %v1122
        %1124 = vmatpush2.msra.mxu0 %v1123
        %v1125 = vand.u32 %v278, 4294901760
        %v1126 = vsub.f32 %v278, %v1125
        %1127 = vmatprep.subr.mxu0 %v1126
        %v1128 = vand.u32 %v277, 4294901760
        %v1129 = vsub.f32 %v277, %v1128
        %1130 = vmatpush2.msra.mxu0 %v1129
        %v1131 = vand.u32 %v276, 4294901760
        %v1132 = vsub.f32 %v276, %v1131
        %1133 = vmatprep.subr.mxu0 %v1132
        %v1134 = vand.u32 %v275, 4294901760
        %v1135 = vsub.f32 %v275, %v1134
        %1136 = vmatpush2.msra.mxu0 %v1135
        %v1137 = vand.u32 %v274, 4294901760
        %v1138 = vsub.f32 %v274, %v1137
        %1139 = vmatprep.subr.mxu0 %v1138
        %v1140 = vand.u32 %v273, 4294901760
        %v1141 = vsub.f32 %v273, %v1140
        %1142 = vmatpush2.msra.mxu0 %v1141
        %v1143 = vand.u32 %v272, 4294901760
        %v1144 = vsub.f32 %v272, %v1143
        %1145 = vmatprep.subr.mxu0 %v1144
        %v1146 = vand.u32 %v271, 4294901760
        %v1147 = vsub.f32 %v271, %v1146
        %1148 = vmatpush2.msra.mxu0 %v1147
        %v1149 = vand.u32 %v270, 4294901760
        %v1150 = vsub.f32 %v270, %v1149
        %1151 = vmatprep.subr.mxu0 %v1150
        %v1152 = vand.u32 %v269, 4294901760
        %v1153 = vsub.f32 %v269, %v1152
        %1154 = vmatpush2.msra.mxu0 %v1153
        %v1155 = vand.u32 %v268, 4294901760
        %v1156 = vsub.f32 %v268, %v1155
        %1157 = vmatprep.subr.mxu0 %v1156
        %v1158 = vand.u32 %v267, 4294901760
        %v1159 = vsub.f32 %v267, %v1158
        %1160 = vmatpush2.msra.mxu0 %v1159
        %v1161 = vand.u32 %v266, 4294901760
        %v1162 = vsub.f32 %v266, %v1161
        %1163 = vmatprep.subr.mxu0 %v1162
        %v1164 = vand.u32 %v265, 4294901760
        %v1165 = vsub.f32 %v265, %v1164
        %1166 = vmatpush2.msra.mxu0 %v1165
        %v1167 = vand.u32 %v264, 4294901760
        %v1168 = vsub.f32 %v264, %v1167
        %1169 = vmatprep.subr.mxu0 %v1168
        %v1170 = vand.u32 %v263, 4294901760
        %v1171 = vsub.f32 %v263, %v1170
        %1172 = vmatpush2.msra.mxu0 %v1171
        %v1173 = vand.u32 %v262, 4294901760
        %v1174 = vsub.f32 %v262, %v1173
        %1175 = vmatprep.subr.mxu0 %v1174
        %v1176 = vand.u32 %v261, 4294901760
        %v1177 = vsub.f32 %v261, %v1176
        %1178 = vmatpush2.msra.mxu0 %v1177
        %v1179 = vand.u32 %v260, 4294901760
        %v1180 = vsub.f32 %v260, %v1179
        %1181 = vmatprep.subr.mxu0 %v1180
        %v1182 = vand.u32 %v259, 4294901760
        %v1183 = vsub.f32 %v259, %v1182
        %1184 = vmatpush2.msra.mxu0 %v1183
        %v1185 = vand.u32 %v258, 4294901760
        %v1186 = vsub.f32 %v258, %v1185
        %1187 = vmatprep.subr.mxu0 %v1186
        %v1188 = vand.u32 %v257, 4294901760
        %v1189 = vsub.f32 %v257, %v1188
        %1190 = vmatpush2.msra.mxu0 %v1189
        %v1191 = vand.u32 %v256, 4294901760
        %v1192 = vsub.f32 %v256, %v1191
        %1193 = vmatprep.subr.mxu0 %v1192
        %v1194 = vand.u32 %v255, 4294901760
        %v1195 = vsub.f32 %v255, %v1194
        %1196 = vmatpush2.msra.mxu0 %v1195
        %v1197 = vand.u32 %v208, 4294901760
        %v1198 = vsub.f32 %v208, %v1197
        %1199 = vmatprep.mubr.f32.mxu0 %v1198
        %v1200 = vand.u32 %v207, 4294901760
        %v1201 = vsub.f32 %v207, %v1200
        %1202 = vmatmul.mubr.f32.gmra.mxu0 %v1201
        %v1203 = vpop.f32.mrf.mxu0
        %v1204 = vadd.f32 %v945, %v1203
        %v1205 = vpop.f32.mrf.mxu0
        %v1206 = vadd.f32 %v947, %v1205
        %v1207 = vand.u32 %v210, 4294901760
        %v1208 = vsub.f32 %v210, %v1207
        %1209 = vmatprep.mubr.f32.mxu0 %v1208
        %v1210 = vand.u32 %v209, 4294901760
        %v1211 = vsub.f32 %v209, %v1210
        %1212 = vmatmul.mubr.f32.gmra.mxu0 %v1211
        %v1213 = vpop.f32.mrf.mxu0
        %v1214 = vadd.f32 %v953, %v1213
        %v1215 = vpop.f32.mrf.mxu0
        %v1216 = vadd.f32 %v955, %v1215
        %v1217 = vand.u32 %v212, 4294901760
        %v1218 = vsub.f32 %v212, %v1217
        %1219 = vmatprep.mubr.f32.mxu0 %v1218
        %v1220 = vand.u32 %v211, 4294901760
        %v1221 = vsub.f32 %v211, %v1220
        %1222 = vmatmul.mubr.f32.gmra.mxu0 %v1221
        %v1223 = vpop.f32.mrf.mxu0
        %v1224 = vadd.f32 %v961, %v1223
        %v1225 = vpop.f32.mrf.mxu0
        %v1226 = vadd.f32 %v963, %v1225
        %v1227 = vand.u32 %v214, 4294901760
        %v1228 = vsub.f32 %v214, %v1227
        %1229 = vmatprep.mubr.f32.mxu0 %v1228
        %v1230 = vand.u32 %v213, 4294901760
        %v1231 = vsub.f32 %v213, %v1230
        %1232 = vmatmul.mubr.f32.gmra.mxu0 %v1231
        %v1233 = vpop.f32.mrf.mxu0
        %v1234 = vadd.f32 %v969, %v1233
        %v1235 = vpop.f32.mrf.mxu0
        %v1236 = vadd.f32 %v971, %v1235
        %v1237 = vand.u32 %v216, 4294901760
        %v1238 = vsub.f32 %v216, %v1237
        %1239 = vmatprep.mubr.f32.mxu0 %v1238
        %v1240 = vand.u32 %v215, 4294901760
        %v1241 = vsub.f32 %v215, %v1240
        %1242 = vmatmul.mubr.f32.gmra.mxu0 %v1241
        %v1243 = vpop.f32.mrf.mxu0
        %v1244 = vadd.f32 %v977, %v1243
        %v1245 = vpop.f32.mrf.mxu0
        %v1246 = vadd.f32 %v979, %v1245
        %v1247 = vand.u32 %v218, 4294901760
        %v1248 = vsub.f32 %v218, %v1247
        %1249 = vmatprep.mubr.f32.mxu0 %v1248
        %v1250 = vand.u32 %v217, 4294901760
        %v1251 = vsub.f32 %v217, %v1250
        %1252 = vmatmul.mubr.f32.gmra.mxu0 %v1251
        %v1253 = vpop.f32.mrf.mxu0
        %v1254 = vadd.f32 %v985, %v1253
        %v1255 = vpop.f32.mrf.mxu0
        %v1256 = vadd.f32 %v987, %v1255
        %v1257 = vand.u32 %v220, 4294901760
        %v1258 = vsub.f32 %v220, %v1257
        %1259 = vmatprep.mubr.f32.mxu0 %v1258
        %v1260 = vand.u32 %v219, 4294901760
        %v1261 = vsub.f32 %v219, %v1260
        %1262 = vmatmul.mubr.f32.gmra.mxu0 %v1261
        %v1263 = vpop.f32.mrf.mxu0
        %v1264 = vadd.f32 %v993, %v1263
        %v1265 = vpop.f32.mrf.mxu0
        %v1266 = vadd.f32 %v995, %v1265
        %v1267 = vand.u32 %v222, 4294901760
        %v1268 = vsub.f32 %v222, %v1267
        %1269 = vmatprep.mubr.f32.mxu0 %v1268
        %v1270 = vand.u32 %v221, 4294901760
        %v1271 = vsub.f32 %v221, %v1270
        %1272 = vmatmul.mubr.f32.gmra.mxu0 %v1271
        %v1273 = vpop.f32.mrf.mxu0
        %v1274 = vadd.f32 %v1001, %v1273
        %v1275 = vpop.f32.mrf.mxu0
        %v1276 = vadd.f32 %v1003, %v1275
        %1277 = vdwg.mxu0
        %v1278 = vand.u32 %v254, 4294901760
        %1279 = vmatprep.subr.mxu0 %v1278
        %v1280 = vand.u32 %v253, 4294901760
        %1281 = vmatpush1.msra.mxu0 %v1280
        %v1282 = vand.u32 %v252, 4294901760
        %1283 = vmatprep.subr.mxu0 %v1282
        %v1284 = vand.u32 %v251, 4294901760
        %1285 = vmatpush1.msra.mxu0 %v1284
        %v1286 = vand.u32 %v250, 4294901760
        %1287 = vmatprep.subr.mxu0 %v1286
        %v1288 = vand.u32 %v249, 4294901760
        %1289 = vmatpush1.msra.mxu0 %v1288
        %v1290 = vand.u32 %v248, 4294901760
        %1291 = vmatprep.subr.mxu0 %v1290
        %v1292 = vand.u32 %v247, 4294901760
        %1293 = vmatpush1.msra.mxu0 %v1292
        %v1294 = vand.u32 %v246, 4294901760
        %1295 = vmatprep.subr.mxu0 %v1294
        %v1296 = vand.u32 %v245, 4294901760
        %1297 = vmatpush1.msra.mxu0 %v1296
        %v1298 = vand.u32 %v244, 4294901760
        %1299 = vmatprep.subr.mxu0 %v1298
        %v1300 = vand.u32 %v243, 4294901760
        %1301 = vmatpush1.msra.mxu0 %v1300
        %v1302 = vand.u32 %v242, 4294901760
        %1303 = vmatprep.subr.mxu0 %v1302
        %v1304 = vand.u32 %v241, 4294901760
        %1305 = vmatpush1.msra.mxu0 %v1304
        %v1306 = vand.u32 %v240, 4294901760
        %1307 = vmatprep.subr.mxu0 %v1306
        %v1308 = vand.u32 %v239, 4294901760
        %1309 = vmatpush1.msra.mxu0 %v1308
        %v1310 = vand.u32 %v238, 4294901760
        %1311 = vmatprep.subr.mxu0 %v1310
        %v1312 = vand.u32 %v237, 4294901760
        %1313 = vmatpush1.msra.mxu0 %v1312
        %v1314 = vand.u32 %v236, 4294901760
        %1315 = vmatprep.subr.mxu0 %v1314
        %v1316 = vand.u32 %v235, 4294901760
        %1317 = vmatpush1.msra.mxu0 %v1316
        %v1318 = vand.u32 %v234, 4294901760
        %1319 = vmatprep.subr.mxu0 %v1318
        %v1320 = vand.u32 %v233, 4294901760
        %1321 = vmatpush1.msra.mxu0 %v1320
        %v1322 = vand.u32 %v232, 4294901760
        %1323 = vmatprep.subr.mxu0 %v1322
        %v1324 = vand.u32 %v231, 4294901760
        %1325 = vmatpush1.msra.mxu0 %v1324
        %v1326 = vand.u32 %v230, 4294901760
        %1327 = vmatprep.subr.mxu0 %v1326
        %v1328 = vand.u32 %v229, 4294901760
        %1329 = vmatpush1.msra.mxu0 %v1328
        %v1330 = vand.u32 %v228, 4294901760
        %1331 = vmatprep.subr.mxu0 %v1330
        %v1332 = vand.u32 %v227, 4294901760
        %1333 = vmatpush1.msra.mxu0 %v1332
        %v1334 = vand.u32 %v226, 4294901760
        %1335 = vmatprep.subr.mxu0 %v1334
        %v1336 = vand.u32 %v225, 4294901760
        %1337 = vmatpush1.msra.mxu0 %v1336
        %v1338 = vand.u32 %v224, 4294901760
        %1339 = vmatprep.subr.mxu0 %v1338
        %v1340 = vand.u32 %v223, 4294901760
        %1341 = vmatpush1.msra.mxu0 %v1340
        %v1342 = vand.u32 %v286, 4294901760
        %1343 = vmatprep.subr.mxu0 %v1342
        %v1344 = vand.u32 %v285, 4294901760
        %1345 = vmatpush2.msra.mxu0 %v1344
        %v1346 = vand.u32 %v284, 4294901760
        %1347 = vmatprep.subr.mxu0 %v1346
        %v1348 = vand.u32 %v283, 4294901760
        %1349 = vmatpush2.msra.mxu0 %v1348
        %v1350 = vand.u32 %v282, 4294901760
        %1351 = vmatprep.subr.mxu0 %v1350
        %v1352 = vand.u32 %v281, 4294901760
        %1353 = vmatpush2.msra.mxu0 %v1352
        %v1354 = vand.u32 %v280, 4294901760
        %1355 = vmatprep.subr.mxu0 %v1354
        %v1356 = vand.u32 %v279, 4294901760
        %1357 = vmatpush2.msra.mxu0 %v1356
        %v1358 = vand.u32 %v278, 4294901760
        %1359 = vmatprep.subr.mxu0 %v1358
        %v1360 = vand.u32 %v277, 4294901760
        %1361 = vmatpush2.msra.mxu0 %v1360
        %v1362 = vand.u32 %v276, 4294901760
        %1363 = vmatprep.subr.mxu0 %v1362
        %v1364 = vand.u32 %v275, 4294901760
        %1365 = vmatpush2.msra.mxu0 %v1364
        %v1366 = vand.u32 %v274, 4294901760
        %1367 = vmatprep.subr.mxu0 %v1366
        %v1368 = vand.u32 %v273, 4294901760
        %1369 = vmatpush2.msra.mxu0 %v1368
        %v1370 = vand.u32 %v272, 4294901760
        %1371 = vmatprep.subr.mxu0 %v1370
        %v1372 = vand.u32 %v271, 4294901760
        %1373 = vmatpush2.msra.mxu0 %v1372
        %v1374 = vand.u32 %v270, 4294901760
        %1375 = vmatprep.subr.mxu0 %v1374
        %v1376 = vand.u32 %v269, 4294901760
        %1377 = vmatpush2.msra.mxu0 %v1376
        %v1378 = vand.u32 %v268, 4294901760
        %1379 = vmatprep.subr.mxu0 %v1378
        %v1380 = vand.u32 %v267, 4294901760
        %1381 = vmatpush2.msra.mxu0 %v1380
        %v1382 = vand.u32 %v266, 4294901760
        %1383 = vmatprep.subr.mxu0 %v1382
        %v1384 = vand.u32 %v265, 4294901760
        %1385 = vmatpush2.msra.mxu0 %v1384
        %v1386 = vand.u32 %v264, 4294901760
        %1387 = vmatprep.subr.mxu0 %v1386
        %v1388 = vand.u32 %v263, 4294901760
        %1389 = vmatpush2.msra.mxu0 %v1388
        %v1390 = vand.u32 %v262, 4294901760
        %1391 = vmatprep.subr.mxu0 %v1390
        %v1392 = vand.u32 %v261, 4294901760
        %1393 = vmatpush2.msra.mxu0 %v1392
        %v1394 = vand.u32 %v260, 4294901760
        %1395 = vmatprep.subr.mxu0 %v1394
        %v1396 = vand.u32 %v259, 4294901760
        %1397 = vmatpush2.msra.mxu0 %v1396
        %v1398 = vand.u32 %v258, 4294901760
        %1399 = vmatprep.subr.mxu0 %v1398
        %v1400 = vand.u32 %v257, 4294901760
        %1401 = vmatpush2.msra.mxu0 %v1400
        %v1402 = vand.u32 %v256, 4294901760
        %1403 = vmatprep.subr.mxu0 %v1402
        %v1404 = vand.u32 %v255, 4294901760
        %1405 = vmatpush2.msra.mxu0 %v1404
        %v1406 = vand.u32 %v208, 4294901760
        %v1407 = vsub.f32 %v208, %v1406
        %v1408 = vand.u32 %v1407, 4294901760
        %1409 = vmatprep.mubr.f32.mxu0 %v1408
        %v1410 = vand.u32 %v207, 4294901760
        %v1411 = vsub.f32 %v207, %v1410
        %v1412 = vand.u32 %v1411, 4294901760
        %1413 = vmatmul.mubr.f32.gmra.mxu0 %v1412
        %v1414 = vpop.f32.mrf.mxu0
        %v1415 = vadd.f32 %v1204, %v1414
        %v1416 = vpop.f32.mrf.mxu0
        %v1417 = vadd.f32 %v1206, %v1416
        %v1418 = vand.u32 %v210, 4294901760
        %v1419 = vsub.f32 %v210, %v1418
        %v1420 = vand.u32 %v1419, 4294901760
        %1421 = vmatprep.mubr.f32.mxu0 %v1420
        %v1422 = vand.u32 %v209, 4294901760
        %v1423 = vsub.f32 %v209, %v1422
        %v1424 = vand.u32 %v1423, 4294901760
        %1425 = vmatmul.mubr.f32.gmra.mxu0 %v1424
        %v1426 = vpop.f32.mrf.mxu0
        %v1427 = vadd.f32 %v1214, %v1426
        %v1428 = vpop.f32.mrf.mxu0
        %v1429 = vadd.f32 %v1216, %v1428
        %v1430 = vand.u32 %v212, 4294901760
        %v1431 = vsub.f32 %v212, %v1430
        %v1432 = vand.u32 %v1431, 4294901760
        %1433 = vmatprep.mubr.f32.mxu0 %v1432
        %v1434 = vand.u32 %v211, 4294901760
        %v1435 = vsub.f32 %v211, %v1434
        %v1436 = vand.u32 %v1435, 4294901760
        %1437 = vmatmul.mubr.f32.gmra.mxu0 %v1436
        %v1438 = vpop.f32.mrf.mxu0
        %v1439 = vadd.f32 %v1224, %v1438
        %v1440 = vpop.f32.mrf.mxu0
        %v1441 = vadd.f32 %v1226, %v1440
        %v1442 = vand.u32 %v214, 4294901760
        %v1443 = vsub.f32 %v214, %v1442
        %v1444 = vand.u32 %v1443, 4294901760
        %1445 = vmatprep.mubr.f32.mxu0 %v1444
        %v1446 = vand.u32 %v213, 4294901760
        %v1447 = vsub.f32 %v213, %v1446
        %v1448 = vand.u32 %v1447, 4294901760
        %1449 = vmatmul.mubr.f32.gmra.mxu0 %v1448
        %v1450 = vpop.f32.mrf.mxu0
        %v1451 = vadd.f32 %v1234, %v1450
        %v1452 = vpop.f32.mrf.mxu0
        %v1453 = vadd.f32 %v1236, %v1452
        %v1454 = vand.u32 %v216, 4294901760
        %v1455 = vsub.f32 %v216, %v1454
        %v1456 = vand.u32 %v1455, 4294901760
        %1457 = vmatprep.mubr.f32.mxu0 %v1456
        %v1458 = vand.u32 %v215, 4294901760
        %v1459 = vsub.f32 %v215, %v1458
        %v1460 = vand.u32 %v1459, 4294901760
        %1461 = vmatmul.mubr.f32.gmra.mxu0 %v1460
        %v1462 = vpop.f32.mrf.mxu0
        %v1463 = vadd.f32 %v1244, %v1462
        %v1464 = vpop.f32.mrf.mxu0
        %v1465 = vadd.f32 %v1246, %v1464
        %v1466 = vand.u32 %v218, 4294901760
        %v1467 = vsub.f32 %v218, %v1466
        %v1468 = vand.u32 %v1467, 4294901760
        %1469 = vmatprep.mubr.f32.mxu0 %v1468
        %v1470 = vand.u32 %v217, 4294901760
        %v1471 = vsub.f32 %v217, %v1470
        %v1472 = vand.u32 %v1471, 4294901760
        %1473 = vmatmul.mubr.f32.gmra.mxu0 %v1472
        %v1474 = vpop.f32.mrf.mxu0
        %v1475 = vadd.f32 %v1254, %v1474
        %v1476 = vpop.f32.mrf.mxu0
        %v1477 = vadd.f32 %v1256, %v1476
        %v1478 = vand.u32 %v220, 4294901760
        %v1479 = vsub.f32 %v220, %v1478
        %v1480 = vand.u32 %v1479, 4294901760
        %1481 = vmatprep.mubr.f32.mxu0 %v1480
        %v1482 = vand.u32 %v219, 4294901760
        %v1483 = vsub.f32 %v219, %v1482
        %v1484 = vand.u32 %v1483, 4294901760
        %1485 = vmatmul.mubr.f32.gmra.mxu0 %v1484
        %v1486 = vpop.f32.mrf.mxu0
        %v1487 = vadd.f32 %v1264, %v1486
        %v1488 = vpop.f32.mrf.mxu0
        %v1489 = vadd.f32 %v1266, %v1488
        %v1490 = vand.u32 %v222, 4294901760
        %v1491 = vsub.f32 %v222, %v1490
        %v1492 = vand.u32 %v1491, 4294901760
        %1493 = vmatprep.mubr.f32.mxu0 %v1492
        %v1494 = vand.u32 %v221, 4294901760
        %v1495 = vsub.f32 %v221, %v1494
        %v1496 = vand.u32 %v1495, 4294901760
        %1497 = vmatmul.mubr.f32.gmra.mxu0 %v1496
        %v1498 = vpop.f32.mrf.mxu0
        %v1499 = vadd.f32 %v1274, %v1498
        %v1500 = vpop.f32.mrf.mxu0
        %v1501 = vadd.f32 %v1276, %v1500
        %1502 = vdwg.mxu0
        %v1503 = vand.u32 %v254, 4294901760
        %v1504 = vsub.f32 %v254, %v1503
        %v1505 = vand.u32 %v1504, 4294901760
        %1506 = vmatprep.subr.mxu0 %v1505
        %v1507 = vand.u32 %v253, 4294901760
        %v1508 = vsub.f32 %v253, %v1507
        %v1509 = vand.u32 %v1508, 4294901760
        %1510 = vmatpush1.msra.mxu0 %v1509
        %v1511 = vand.u32 %v252, 4294901760
        %v1512 = vsub.f32 %v252, %v1511
        %v1513 = vand.u32 %v1512, 4294901760
        %1514 = vmatprep.subr.mxu0 %v1513
        %v1515 = vand.u32 %v251, 4294901760
        %v1516 = vsub.f32 %v251, %v1515
        %v1517 = vand.u32 %v1516, 4294901760
        %1518 = vmatpush1.msra.mxu0 %v1517
        %v1519 = vand.u32 %v250, 4294901760
        %v1520 = vsub.f32 %v250, %v1519
        %v1521 = vand.u32 %v1520, 4294901760
        %1522 = vmatprep.subr.mxu0 %v1521
        %v1523 = vand.u32 %v249, 4294901760
        %v1524 = vsub.f32 %v249, %v1523
        %v1525 = vand.u32 %v1524, 4294901760
        %1526 = vmatpush1.msra.mxu0 %v1525
        %v1527 = vand.u32 %v248, 4294901760
        %v1528 = vsub.f32 %v248, %v1527
        %v1529 = vand.u32 %v1528, 4294901760
        %1530 = vmatprep.subr.mxu0 %v1529
        %v1531 = vand.u32 %v247, 4294901760
        %v1532 = vsub.f32 %v247, %v1531
        %v1533 = vand.u32 %v1532, 4294901760
        %1534 = vmatpush1.msra.mxu0 %v1533
        %v1535 = vand.u32 %v246, 4294901760
        %v1536 = vsub.f32 %v246, %v1535
        %v1537 = vand.u32 %v1536, 4294901760
        %1538 = vmatprep.subr.mxu0 %v1537
        %v1539 = vand.u32 %v245, 4294901760
        %v1540 = vsub.f32 %v245, %v1539
        %v1541 = vand.u32 %v1540, 4294901760
        %1542 = vmatpush1.msra.mxu0 %v1541
        %v1543 = vand.u32 %v244, 4294901760
        %v1544 = vsub.f32 %v244, %v1543
        %v1545 = vand.u32 %v1544, 4294901760
        %1546 = vmatprep.subr.mxu0 %v1545
        %v1547 = vand.u32 %v243, 4294901760
        %v1548 = vsub.f32 %v243, %v1547
        %v1549 = vand.u32 %v1548, 4294901760
        %1550 = vmatpush1.msra.mxu0 %v1549
        %v1551 = vand.u32 %v242, 4294901760
        %v1552 = vsub.f32 %v242, %v1551
        %v1553 = vand.u32 %v1552, 4294901760
        %1554 = vmatprep.subr.mxu0 %v1553
        %v1555 = vand.u32 %v241, 4294901760
        %v1556 = vsub.f32 %v241, %v1555
        %v1557 = vand.u32 %v1556, 4294901760
        %1558 = vmatpush1.msra.mxu0 %v1557
        %v1559 = vand.u32 %v240, 4294901760
        %v1560 = vsub.f32 %v240, %v1559
        %v1561 = vand.u32 %v1560, 4294901760
        %1562 = vmatprep.subr.mxu0 %v1561
        %v1563 = vand.u32 %v239, 4294901760
        %v1564 = vsub.f32 %v239, %v1563
        %v1565 = vand.u32 %v1564, 4294901760
        %1566 = vmatpush1.msra.mxu0 %v1565
        %v1567 = vand.u32 %v238, 4294901760
        %v1568 = vsub.f32 %v238, %v1567
        %v1569 = vand.u32 %v1568, 4294901760
        %1570 = vmatprep.subr.mxu0 %v1569
        %v1571 = vand.u32 %v237, 4294901760
        %v1572 = vsub.f32 %v237, %v1571
        %v1573 = vand.u32 %v1572, 4294901760
        %1574 = vmatpush1.msra.mxu0 %v1573
        %v1575 = vand.u32 %v236, 4294901760
        %v1576 = vsub.f32 %v236, %v1575
        %v1577 = vand.u32 %v1576, 4294901760
        %1578 = vmatprep.subr.mxu0 %v1577
        %v1579 = vand.u32 %v235, 4294901760
        %v1580 = vsub.f32 %v235, %v1579
        %v1581 = vand.u32 %v1580, 4294901760
        %1582 = vmatpush1.msra.mxu0 %v1581
        %v1583 = vand.u32 %v234, 4294901760
        %v1584 = vsub.f32 %v234, %v1583
        %v1585 = vand.u32 %v1584, 4294901760
        %1586 = vmatprep.subr.mxu0 %v1585
        %v1587 = vand.u32 %v233, 4294901760
        %v1588 = vsub.f32 %v233, %v1587
        %v1589 = vand.u32 %v1588, 4294901760
        %1590 = vmatpush1.msra.mxu0 %v1589
        %v1591 = vand.u32 %v232, 4294901760
        %v1592 = vsub.f32 %v232, %v1591
        %v1593 = vand.u32 %v1592, 4294901760
        %1594 = vmatprep.subr.mxu0 %v1593
        %v1595 = vand.u32 %v231, 4294901760
        %v1596 = vsub.f32 %v231, %v1595
        %v1597 = vand.u32 %v1596, 4294901760
        %1598 = vmatpush1.msra.mxu0 %v1597
        %v1599 = vand.u32 %v230, 4294901760
        %v1600 = vsub.f32 %v230, %v1599
        %v1601 = vand.u32 %v1600, 4294901760
        %1602 = vmatprep.subr.mxu0 %v1601
        %v1603 = vand.u32 %v229, 4294901760
        %v1604 = vsub.f32 %v229, %v1603
        %v1605 = vand.u32 %v1604, 4294901760
        %1606 = vmatpush1.msra.mxu0 %v1605
        %v1607 = vand.u32 %v228, 4294901760
        %v1608 = vsub.f32 %v228, %v1607
        %v1609 = vand.u32 %v1608, 4294901760
        %1610 = vmatprep.subr.mxu0 %v1609
        %v1611 = vand.u32 %v227, 4294901760
        %v1612 = vsub.f32 %v227, %v1611
        %v1613 = vand.u32 %v1612, 4294901760
        %1614 = vmatpush1.msra.mxu0 %v1613
        %v1615 = vand.u32 %v226, 4294901760
        %v1616 = vsub.f32 %v226, %v1615
        %v1617 = vand.u32 %v1616, 4294901760
        %1618 = vmatprep.subr.mxu0 %v1617
        %v1619 = vand.u32 %v225, 4294901760
        %v1620 = vsub.f32 %v225, %v1619
        %v1621 = vand.u32 %v1620, 4294901760
        %1622 = vmatpush1.msra.mxu0 %v1621
        %v1623 = vand.u32 %v224, 4294901760
        %v1624 = vsub.f32 %v224, %v1623
        %v1625 = vand.u32 %v1624, 4294901760
        %1626 = vmatprep.subr.mxu0 %v1625
        %v1627 = vand.u32 %v223, 4294901760
        %v1628 = vsub.f32 %v223, %v1627
        %v1629 = vand.u32 %v1628, 4294901760
        %1630 = vmatpush1.msra.mxu0 %v1629
        %v1631 = vand.u32 %v286, 4294901760
        %v1632 = vsub.f32 %v286, %v1631
        %v1633 = vand.u32 %v1632, 4294901760
        %1634 = vmatprep.subr.mxu0 %v1633
        %v1635 = vand.u32 %v285, 4294901760
        %v1636 = vsub.f32 %v285, %v1635
        %v1637 = vand.u32 %v1636, 4294901760
        %1638 = vmatpush2.msra.mxu0 %v1637
        %v1639 = vand.u32 %v284, 4294901760
        %v1640 = vsub.f32 %v284, %v1639
        %v1641 = vand.u32 %v1640, 4294901760
        %1642 = vmatprep.subr.mxu0 %v1641
        %v1643 = vand.u32 %v283, 4294901760
        %v1644 = vsub.f32 %v283, %v1643
        %v1645 = vand.u32 %v1644, 4294901760
        %1646 = vmatpush2.msra.mxu0 %v1645
        %v1647 = vand.u32 %v282, 4294901760
        %v1648 = vsub.f32 %v282, %v1647
        %v1649 = vand.u32 %v1648, 4294901760
        %1650 = vmatprep.subr.mxu0 %v1649
        %v1651 = vand.u32 %v281, 4294901760
        %v1652 = vsub.f32 %v281, %v1651
        %v1653 = vand.u32 %v1652, 4294901760
        %1654 = vmatpush2.msra.mxu0 %v1653
        %v1655 = vand.u32 %v280, 4294901760
        %v1656 = vsub.f32 %v280, %v1655
        %v1657 = vand.u32 %v1656, 4294901760
        %1658 = vmatprep.subr.mxu0 %v1657
        %v1659 = vand.u32 %v279, 4294901760
        %v1660 = vsub.f32 %v279, %v1659
        %v1661 = vand.u32 %v1660, 4294901760
        %1662 = vmatpush2.msra.mxu0 %v1661
        %v1663 = vand.u32 %v278, 4294901760
        %v1664 = vsub.f32 %v278, %v1663
        %v1665 = vand.u32 %v1664, 4294901760
        %1666 = vmatprep.subr.mxu0 %v1665
        %v1667 = vand.u32 %v277, 4294901760
        %v1668 = vsub.f32 %v277, %v1667
        %v1669 = vand.u32 %v1668, 4294901760
        %1670 = vmatpush2.msra.mxu0 %v1669
        %v1671 = vand.u32 %v276, 4294901760
        %v1672 = vsub.f32 %v276, %v1671
        %v1673 = vand.u32 %v1672, 4294901760
        %1674 = vmatprep.subr.mxu0 %v1673
        %v1675 = vand.u32 %v275, 4294901760
        %v1676 = vsub.f32 %v275, %v1675
        %v1677 = vand.u32 %v1676, 4294901760
        %1678 = vmatpush2.msra.mxu0 %v1677
        %v1679 = vand.u32 %v274, 4294901760
        %v1680 = vsub.f32 %v274, %v1679
        %v1681 = vand.u32 %v1680, 4294901760
        %1682 = vmatprep.subr.mxu0 %v1681
        %v1683 = vand.u32 %v273, 4294901760
        %v1684 = vsub.f32 %v273, %v1683
        %v1685 = vand.u32 %v1684, 4294901760
        %1686 = vmatpush2.msra.mxu0 %v1685
        %v1687 = vand.u32 %v272, 4294901760
        %v1688 = vsub.f32 %v272, %v1687
        %v1689 = vand.u32 %v1688, 4294901760
        %1690 = vmatprep.subr.mxu0 %v1689
        %v1691 = vand.u32 %v271, 4294901760
        %v1692 = vsub.f32 %v271, %v1691
        %v1693 = vand.u32 %v1692, 4294901760
        %1694 = vmatpush2.msra.mxu0 %v1693
        %v1695 = vand.u32 %v270, 4294901760
        %v1696 = vsub.f32 %v270, %v1695
        %v1697 = vand.u32 %v1696, 4294901760
        %1698 = vmatprep.subr.mxu0 %v1697
        %v1699 = vand.u32 %v269, 4294901760
        %v1700 = vsub.f32 %v269, %v1699
        %v1701 = vand.u32 %v1700, 4294901760
        %1702 = vmatpush2.msra.mxu0 %v1701
        %v1703 = vand.u32 %v268, 4294901760
        %v1704 = vsub.f32 %v268, %v1703
        %v1705 = vand.u32 %v1704, 4294901760
        %1706 = vmatprep.subr.mxu0 %v1705
        %v1707 = vand.u32 %v267, 4294901760
        %v1708 = vsub.f32 %v267, %v1707
        %v1709 = vand.u32 %v1708, 4294901760
        %1710 = vmatpush2.msra.mxu0 %v1709
        %v1711 = vand.u32 %v266, 4294901760
        %v1712 = vsub.f32 %v266, %v1711
        %v1713 = vand.u32 %v1712, 4294901760
        %1714 = vmatprep.subr.mxu0 %v1713
        %v1715 = vand.u32 %v265, 4294901760
        %v1716 = vsub.f32 %v265, %v1715
        %v1717 = vand.u32 %v1716, 4294901760
        %1718 = vmatpush2.msra.mxu0 %v1717
        %v1719 = vand.u32 %v264, 4294901760
        %v1720 = vsub.f32 %v264, %v1719
        %v1721 = vand.u32 %v1720, 4294901760
        %1722 = vmatprep.subr.mxu0 %v1721
        %v1723 = vand.u32 %v263, 4294901760
        %v1724 = vsub.f32 %v263, %v1723
        %v1725 = vand.u32 %v1724, 4294901760
        %1726 = vmatpush2.msra.mxu0 %v1725
        %v1727 = vand.u32 %v262, 4294901760
        %v1728 = vsub.f32 %v262, %v1727
        %v1729 = vand.u32 %v1728, 4294901760
        %1730 = vmatprep.subr.mxu0 %v1729
        %v1731 = vand.u32 %v261, 4294901760
        %v1732 = vsub.f32 %v261, %v1731
        %v1733 = vand.u32 %v1732, 4294901760
        %1734 = vmatpush2.msra.mxu0 %v1733
        %v1735 = vand.u32 %v260, 4294901760
        %v1736 = vsub.f32 %v260, %v1735
        %v1737 = vand.u32 %v1736, 4294901760
        %1738 = vmatprep.subr.mxu0 %v1737
        %v1739 = vand.u32 %v259, 4294901760
        %v1740 = vsub.f32 %v259, %v1739
        %v1741 = vand.u32 %v1740, 4294901760
        %1742 = vmatpush2.msra.mxu0 %v1741
        %v1743 = vand.u32 %v258, 4294901760
        %v1744 = vsub.f32 %v258, %v1743
        %v1745 = vand.u32 %v1744, 4294901760
        %1746 = vmatprep.subr.mxu0 %v1745
        %v1747 = vand.u32 %v257, 4294901760
        %v1748 = vsub.f32 %v257, %v1747
        %v1749 = vand.u32 %v1748, 4294901760
        %1750 = vmatpush2.msra.mxu0 %v1749
        %v1751 = vand.u32 %v256, 4294901760
        %v1752 = vsub.f32 %v256, %v1751
        %v1753 = vand.u32 %v1752, 4294901760
        %1754 = vmatprep.subr.mxu0 %v1753
        %v1755 = vand.u32 %v255, 4294901760
        %v1756 = vsub.f32 %v255, %v1755
        %v1757 = vand.u32 %v1756, 4294901760
        %1758 = vmatpush2.msra.mxu0 %v1757
        %v1759 = vand.u32 %v208, 4294901760
        %1760 = vmatprep.mubr.f32.mxu0 %v1759
        %v1761 = vand.u32 %v207, 4294901760
        %1762 = vmatmul.mubr.f32.gmra.mxu0 %v1761
        %v1763 = vpop.f32.mrf.mxu0
        %v1764 = vadd.f32 %v1415, %v1763
        %v1765 = vpop.f32.mrf.mxu0
        %v1766 = vadd.f32 %v1417, %v1765
        %v1767 = vand.u32 %v210, 4294901760
        %1768 = vmatprep.mubr.f32.mxu0 %v1767
        %v1769 = vand.u32 %v209, 4294901760
        %1770 = vmatmul.mubr.f32.gmra.mxu0 %v1769
        %v1771 = vpop.f32.mrf.mxu0
        %v1772 = vadd.f32 %v1427, %v1771
        %v1773 = vpop.f32.mrf.mxu0
        %v1774 = vadd.f32 %v1429, %v1773
        %v1775 = vand.u32 %v212, 4294901760
        %1776 = vmatprep.mubr.f32.mxu0 %v1775
        %v1777 = vand.u32 %v211, 4294901760
        %1778 = vmatmul.mubr.f32.gmra.mxu0 %v1777
        %v1779 = vpop.f32.mrf.mxu0
        %v1780 = vadd.f32 %v1439, %v1779
        %v1781 = vpop.f32.mrf.mxu0
        %v1782 = vadd.f32 %v1441, %v1781
        %v1783 = vand.u32 %v214, 4294901760
        %1784 = vmatprep.mubr.f32.mxu0 %v1783
        %v1785 = vand.u32 %v213, 4294901760
        %1786 = vmatmul.mubr.f32.gmra.mxu0 %v1785
        %v1787 = vpop.f32.mrf.mxu0
        %v1788 = vadd.f32 %v1451, %v1787
        %v1789 = vpop.f32.mrf.mxu0
        %v1790 = vadd.f32 %v1453, %v1789
        %v1791 = vand.u32 %v216, 4294901760
        %1792 = vmatprep.mubr.f32.mxu0 %v1791
        %v1793 = vand.u32 %v215, 4294901760
        %1794 = vmatmul.mubr.f32.gmra.mxu0 %v1793
        %v1795 = vpop.f32.mrf.mxu0
        %v1796 = vadd.f32 %v1463, %v1795
        %v1797 = vpop.f32.mrf.mxu0
        %v1798 = vadd.f32 %v1465, %v1797
        %v1799 = vand.u32 %v218, 4294901760
        %1800 = vmatprep.mubr.f32.mxu0 %v1799
        %v1801 = vand.u32 %v217, 4294901760
        %1802 = vmatmul.mubr.f32.gmra.mxu0 %v1801
        %v1803 = vpop.f32.mrf.mxu0
        %v1804 = vadd.f32 %v1475, %v1803
        %v1805 = vpop.f32.mrf.mxu0
        %v1806 = vadd.f32 %v1477, %v1805
        %v1807 = vand.u32 %v220, 4294901760
        %1808 = vmatprep.mubr.f32.mxu0 %v1807
        %v1809 = vand.u32 %v219, 4294901760
        %1810 = vmatmul.mubr.f32.gmra.mxu0 %v1809
        %v1811 = vpop.f32.mrf.mxu0
        %v1812 = vadd.f32 %v1487, %v1811
        %v1813 = vpop.f32.mrf.mxu0
        %v1814 = vadd.f32 %v1489, %v1813
        %v1815 = vand.u32 %v222, 4294901760
        %1816 = vmatprep.mubr.f32.mxu0 %v1815
        %v1817 = vand.u32 %v221, 4294901760
        %1818 = vmatmul.mubr.f32.gmra.mxu0 %v1817
        %v1819 = vpop.f32.mrf.mxu0
        %v1820 = vadd.f32 %v1499, %v1819
        %v1821 = vpop.f32.mrf.mxu0
        %v1822 = vadd.f32 %v1501, %v1821
        %1823 = vdwg.mxu0
        %v1824 = vand.u32 %v254, 4294901760
        %1825 = vmatprep.subr.mxu0 %v1824
        %v1826 = vand.u32 %v253, 4294901760
        %1827 = vmatpush1.msra.mxu0 %v1826
        %v1828 = vand.u32 %v252, 4294901760
        %1829 = vmatprep.subr.mxu0 %v1828
        %v1830 = vand.u32 %v251, 4294901760
        %1831 = vmatpush1.msra.mxu0 %v1830
        %v1832 = vand.u32 %v250, 4294901760
        %1833 = vmatprep.subr.mxu0 %v1832
        %v1834 = vand.u32 %v249, 4294901760
        %1835 = vmatpush1.msra.mxu0 %v1834
        %v1836 = vand.u32 %v248, 4294901760
        %1837 = vmatprep.subr.mxu0 %v1836
        %v1838 = vand.u32 %v247, 4294901760
        %1839 = vmatpush1.msra.mxu0 %v1838
        %v1840 = vand.u32 %v246, 4294901760
        %1841 = vmatprep.subr.mxu0 %v1840
        %v1842 = vand.u32 %v245, 4294901760
        %1843 = vmatpush1.msra.mxu0 %v1842
        %v1844 = vand.u32 %v244, 4294901760
        %1845 = vmatprep.subr.mxu0 %v1844
        %v1846 = vand.u32 %v243, 4294901760
        %1847 = vmatpush1.msra.mxu0 %v1846
        %v1848 = vand.u32 %v242, 4294901760
        %1849 = vmatprep.subr.mxu0 %v1848
        %v1850 = vand.u32 %v241, 4294901760
        %1851 = vmatpush1.msra.mxu0 %v1850
        %v1852 = vand.u32 %v240, 4294901760
        %1853 = vmatprep.subr.mxu0 %v1852
        %v1854 = vand.u32 %v239, 4294901760
        %1855 = vmatpush1.msra.mxu0 %v1854
        %v1856 = vand.u32 %v238, 4294901760
        %1857 = vmatprep.subr.mxu0 %v1856
        %v1858 = vand.u32 %v237, 4294901760
        %1859 = vmatpush1.msra.mxu0 %v1858
        %v1860 = vand.u32 %v236, 4294901760
        %1861 = vmatprep.subr.mxu0 %v1860
        %v1862 = vand.u32 %v235, 4294901760
        %1863 = vmatpush1.msra.mxu0 %v1862
        %v1864 = vand.u32 %v234, 4294901760
        %1865 = vmatprep.subr.mxu0 %v1864
        %v1866 = vand.u32 %v233, 4294901760
        %1867 = vmatpush1.msra.mxu0 %v1866
        %v1868 = vand.u32 %v232, 4294901760
        %1869 = vmatprep.subr.mxu0 %v1868
        %v1870 = vand.u32 %v231, 4294901760
        %1871 = vmatpush1.msra.mxu0 %v1870
        %v1872 = vand.u32 %v230, 4294901760
        %1873 = vmatprep.subr.mxu0 %v1872
        %v1874 = vand.u32 %v229, 4294901760
        %1875 = vmatpush1.msra.mxu0 %v1874
        %v1876 = vand.u32 %v228, 4294901760
        %1877 = vmatprep.subr.mxu0 %v1876
        %v1878 = vand.u32 %v227, 4294901760
        %1879 = vmatpush1.msra.mxu0 %v1878
        %v1880 = vand.u32 %v226, 4294901760
        %1881 = vmatprep.subr.mxu0 %v1880
        %v1882 = vand.u32 %v225, 4294901760
        %1883 = vmatpush1.msra.mxu0 %v1882
        %v1884 = vand.u32 %v224, 4294901760
        %1885 = vmatprep.subr.mxu0 %v1884
        %v1886 = vand.u32 %v223, 4294901760
        %1887 = vmatpush1.msra.mxu0 %v1886
        %v1888 = vand.u32 %v286, 4294901760
        %1889 = vmatprep.subr.mxu0 %v1888
        %v1890 = vand.u32 %v285, 4294901760
        %1891 = vmatpush2.msra.mxu0 %v1890
        %v1892 = vand.u32 %v284, 4294901760
        %1893 = vmatprep.subr.mxu0 %v1892
        %v1894 = vand.u32 %v283, 4294901760
        %1895 = vmatpush2.msra.mxu0 %v1894
        %v1896 = vand.u32 %v282, 4294901760
        %1897 = vmatprep.subr.mxu0 %v1896
        %v1898 = vand.u32 %v281, 4294901760
        %1899 = vmatpush2.msra.mxu0 %v1898
        %v1900 = vand.u32 %v280, 4294901760
        %1901 = vmatprep.subr.mxu0 %v1900
        %v1902 = vand.u32 %v279, 4294901760
        %1903 = vmatpush2.msra.mxu0 %v1902
        %v1904 = vand.u32 %v278, 4294901760
        %1905 = vmatprep.subr.mxu0 %v1904
        %v1906 = vand.u32 %v277, 4294901760
        %1907 = vmatpush2.msra.mxu0 %v1906
        %v1908 = vand.u32 %v276, 4294901760
        %1909 = vmatprep.subr.mxu0 %v1908
        %v1910 = vand.u32 %v275, 4294901760
        %1911 = vmatpush2.msra.mxu0 %v1910
        %v1912 = vand.u32 %v274, 4294901760
        %1913 = vmatprep.subr.mxu0 %v1912
        %v1914 = vand.u32 %v273, 4294901760
        %1915 = vmatpush2.msra.mxu0 %v1914
        %v1916 = vand.u32 %v272, 4294901760
        %1917 = vmatprep.subr.mxu0 %v1916
        %v1918 = vand.u32 %v271, 4294901760
        %1919 = vmatpush2.msra.mxu0 %v1918
        %v1920 = vand.u32 %v270, 4294901760
        %1921 = vmatprep.subr.mxu0 %v1920
        %v1922 = vand.u32 %v269, 4294901760
        %1923 = vmatpush2.msra.mxu0 %v1922
        %v1924 = vand.u32 %v268, 4294901760
        %1925 = vmatprep.subr.mxu0 %v1924
        %v1926 = vand.u32 %v267, 4294901760
        %1927 = vmatpush2.msra.mxu0 %v1926
        %v1928 = vand.u32 %v266, 4294901760
        %1929 = vmatprep.subr.mxu0 %v1928
        %v1930 = vand.u32 %v265, 4294901760
        %1931 = vmatpush2.msra.mxu0 %v1930
        %v1932 = vand.u32 %v264, 4294901760
        %1933 = vmatprep.subr.mxu0 %v1932
        %v1934 = vand.u32 %v263, 4294901760
        %1935 = vmatpush2.msra.mxu0 %v1934
        %v1936 = vand.u32 %v262, 4294901760
        %1937 = vmatprep.subr.mxu0 %v1936
        %v1938 = vand.u32 %v261, 4294901760
        %1939 = vmatpush2.msra.mxu0 %v1938
        %v1940 = vand.u32 %v260, 4294901760
        %1941 = vmatprep.subr.mxu0 %v1940
        %v1942 = vand.u32 %v259, 4294901760
        %1943 = vmatpush2.msra.mxu0 %v1942
        %v1944 = vand.u32 %v258, 4294901760
        %1945 = vmatprep.subr.mxu0 %v1944
        %v1946 = vand.u32 %v257, 4294901760
        %1947 = vmatpush2.msra.mxu0 %v1946
        %v1948 = vand.u32 %v256, 4294901760
        %1949 = vmatprep.subr.mxu0 %v1948
        %v1950 = vand.u32 %v255, 4294901760
        %1951 = vmatpush2.msra.mxu0 %v1950
        %v1952 = vand.u32 %v208, 4294901760
        %1953 = vmatprep.mubr.f32.mxu0 %v1952
        %v1954 = vand.u32 %v207, 4294901760
        %1955 = vmatmul.mubr.f32.gmra.mxu0 %v1954
        %v1956 = vpop.f32.mrf.mxu0
        %v1957 = vadd.f32 %v1764, %v1956
        %v1958 = vpop.f32.mrf.mxu0
        %v1959 = vadd.f32 %v1766, %v1958
        %v1960 = vand.u32 %v210, 4294901760
        %1961 = vmatprep.mubr.f32.mxu0 %v1960
        %v1962 = vand.u32 %v209, 4294901760
        %1963 = vmatmul.mubr.f32.gmra.mxu0 %v1962
        %v1964 = vpop.f32.mrf.mxu0
        %v1965 = vadd.f32 %v1772, %v1964
        %v1966 = vpop.f32.mrf.mxu0
        %v1967 = vadd.f32 %v1774, %v1966
        %v1968 = vand.u32 %v212, 4294901760
        %1969 = vmatprep.mubr.f32.mxu0 %v1968
        %v1970 = vand.u32 %v211, 4294901760
        %1971 = vmatmul.mubr.f32.gmra.mxu0 %v1970
        %v1972 = vpop.f32.mrf.mxu0
        %v1973 = vadd.f32 %v1780, %v1972
        %v1974 = vpop.f32.mrf.mxu0
        %v1975 = vadd.f32 %v1782, %v1974
        %v1976 = vand.u32 %v214, 4294901760
        %1977 = vmatprep.mubr.f32.mxu0 %v1976
        %v1978 = vand.u32 %v213, 4294901760
        %1979 = vmatmul.mubr.f32.gmra.mxu0 %v1978
        %v1980 = vpop.f32.mrf.mxu0
        %v1981 = vadd.f32 %v1788, %v1980
        %v1982 = vpop.f32.mrf.mxu0
        %v1983 = vadd.f32 %v1790, %v1982
        %v1984 = vand.u32 %v216, 4294901760
        %1985 = vmatprep.mubr.f32.mxu0 %v1984
        %v1986 = vand.u32 %v215, 4294901760
        %1987 = vmatmul.mubr.f32.gmra.mxu0 %v1986
        %v1988 = vpop.f32.mrf.mxu0
        %v1989 = vadd.f32 %v1796, %v1988
        %v1990 = vpop.f32.mrf.mxu0
        %v1991 = vadd.f32 %v1798, %v1990
        %v1992 = vand.u32 %v218, 4294901760
        %1993 = vmatprep.mubr.f32.mxu0 %v1992
        %v1994 = vand.u32 %v217, 4294901760
        %1995 = vmatmul.mubr.f32.gmra.mxu0 %v1994
        %v1996 = vpop.f32.mrf.mxu0
        %v1997 = vadd.f32 %v1804, %v1996
        %v1998 = vpop.f32.mrf.mxu0
        %v1999 = vadd.f32 %v1806, %v1998
        %v2000 = vand.u32 %v220, 4294901760
        %2001 = vmatprep.mubr.f32.mxu0 %v2000
        %v2002 = vand.u32 %v219, 4294901760
        %2003 = vmatmul.mubr.f32.gmra.mxu0 %v2002
        %v2004 = vpop.f32.mrf.mxu0
        %v2005 = vadd.f32 %v1812, %v2004
        %v2006 = vpop.f32.mrf.mxu0
        %v2007 = vadd.f32 %v1814, %v2006
        %v2008 = vand.u32 %v222, 4294901760
        %2009 = vmatprep.mubr.f32.mxu0 %v2008
        %v2010 = vand.u32 %v221, 4294901760
        %2011 = vmatmul.mubr.f32.gmra.mxu0 %v2010
        %v2012 = vpop.f32.mrf.mxu0
        %v2013 = vadd.f32 %v1820, %v2012
        %v2014 = vpop.f32.mrf.mxu0
        %v2015 = vadd.f32 %v1822, %v2014
        %2016 = vdwg.mxu0
        %v2017 = vadd.f32 %v1957, %v207
        %v2018 = vadd.f32 %v1959, %v208
        %v2019 = vadd.f32 %v1965, %v209
        %v2020 = vadd.f32 %v1967, %v210
        %v2021 = vadd.f32 %v1973, %v211
        %v2022 = vadd.f32 %v1975, %v212
        %v2023 = vadd.f32 %v1981, %v213
        %v2024 = vadd.f32 %v1983, %v214
        %v2025 = vadd.f32 %v1989, %v215
        %v2026 = vadd.f32 %v1991, %v216
        %v2027 = vadd.f32 %v1997, %v217
        %v2028 = vadd.f32 %v1999, %v218
        %v2029 = vadd.f32 %v2005, %v219
        %v2030 = vadd.f32 %v2007, %v220
        %v2031 = vadd.f32 %v2013, %v221
        %v2032 = vadd.f32 %v2015, %v222
        %2033 = vst [vmem:[%s204] sm:$0xff] %v2017
        %2034 = vst [vmem:[%s204 + $0x8] sm:$0xff] %v2018
        %2035 = vst [vmem:[%s204 + $0x10] sm:$0xff] %v2019
        %2036 = vst [vmem:[%s204 + $0x18] sm:$0xff] %v2020
        %2037 = vst [vmem:[%s204 + $0x20] sm:$0xff] %v2021
        %2038 = vst [vmem:[%s204 + $0x28] sm:$0xff] %v2022
        %2039 = vst [vmem:[%s204 + $0x30] sm:$0xff] %v2023
        %2040 = vst [vmem:[%s204 + $0x38] sm:$0xff] %v2024
        %2041 = vst [vmem:[%s204 + $0x40] sm:$0xff] %v2025
        %2042 = vst [vmem:[%s204 + $0x48] sm:$0xff] %v2026
        %2043 = vst [vmem:[%s204 + $0x50] sm:$0xff] %v2027
        %2044 = vst [vmem:[%s204 + $0x58] sm:$0xff] %v2028
        %2045 = vst [vmem:[%s204 + $0x60] sm:$0xff] %v2029
        %2046 = vst [vmem:[%s204 + $0x68] sm:$0xff] %v2030
        %2047 = vst [vmem:[%s204 + $0x70] sm:$0xff] %v2031
        %2048 = vst [vmem:[%s204 + $0x78] sm:$0xff] %v2032
        %s2049 = sand.u32 %s97, 1
        %s2050 = scalar_lea.sflag [#allocation4], %s2049
        %s2051 = sand.u32 %s97, 1
        %s2052 = smul.addr %s2051, 128
        %s2053 = scalar_lea.vmem [#allocation7], %s2052
        // Predicated region
        $region41: #{tpu_custom_call.1} parent=31 // pred_check
          %p2054 = pneg %p107
        $region42: #{tpu_custom_call.1} parent=31 // pred_check_branch
          %2056 = sbr.rel (%p2054) target = $region44
        $region43: #{tpu_custom_call.1} parent=31 // pred_region
          %s2057 = smul.u32 8, %s21
          %s2059 = ssub.s32 2048, 2048
          %2060 = vsyncadd %s2050, %s2059
          %s2061 = smul.addr %s2057, 2
          %s2062 = smul.addr %s2061, 128
          %s2063 = scalar_lea.hbm %s3, %s2062
          %s2064 = sshll.u32 %s2053, 4
          %s2065 = int_to_ptr.vmem [resolvable:$true] %s2064
          %2070 = dma.vmem_to_hbm [thread:$0]  %s2065, 2048, %s2063, %s2050, 256, 256, 16
        $region44: #{tpu_custom_call.1} parent=31 // pred_fallthru
          _
      $region32: #{tpu_custom_call.1} parent=5 // pred_fallthru
        _
      %p2071 = scmp.le.s32.totalorder 2, %s16
      // Predicated region
      $region45: #{tpu_custom_call.1} parent=5 // pred_check
        %p2072 = pneg %p2071
      $region46: #{tpu_custom_call.1} parent=5 // pred_check_branch
        %2074 = sbr.rel (%p2072) target = $region48
      $region47: #{tpu_custom_call.1} parent=5 // pred_region
        %s2075 = ssub.s32 %s16, 2
        // Predicated region
        $region49: #{tpu_custom_call.1} parent=47 // pred_check
          %p2076 = pneg %p113
        $region50: #{tpu_custom_call.1} parent=47 // pred_check_branch
          %2078 = sbr.rel (%p2076) target = $region52
        $region51: #{tpu_custom_call.1} parent=47 // pred_region
          %s2079 = sand.u32 %s98, 1
          %s2080 = scalar_lea.sflag [#allocation4], %s2079
          %s2081 = sand.u32 %s98, 1
          %s2082 = smul.addr %s2081, 128
          %s2083 = scalar_lea.vmem [#allocation7], %s2082
          %2084 = dma.done %s2080, 2048
        $region52: #{tpu_custom_call.1} parent=47 // pred_fallthru
          _
      $region48: #{tpu_custom_call.1} parent=5 // pred_fallthru
        _
    $region6: #{tpu_custom_call.1} parent=1 // loop_footer
      %s20 = sadd.s32 1, %s16
    $region7: #{tpu_custom_call.1} parent=1 // loop_footer_branch
      %15 = sbr.rel target = $region3
    $region8: #{tpu_custom_call.1} parent=1 // loop_exit
      _
    %2085 = vsyncpa [#allocation3], 1
    %s2086 = scalar_lea.sflag [#allocation3], 1
    %2087 = vsyncpa %s2086, 1
    %2088 = vsyncpa [#allocation6], 1
    %2089 = vsyncpa [#allocation4], 1
    %s2090 = scalar_lea.sflag [#allocation4], 1
    %2091 = vsyncpa %s2090, 1

// kernel: tpu_custom_call.1
$region0: #{tpu_custom_call.1}
  #allocation0 [shape = 'u32[]', space=smem, size = 0x4, offset = 0x4, fixed_abs, tag = 'smem constant byte address 0x4 - core index']
  #allocation1 [shape = 'u32[144,128]{1,0:T(1,128)}', space=vmem, size = 0x12000, scoped, tag = 'internal scratch']
  %s0 = inlined_call_operand.hbm [shape: f32[128,256], index: 0, kind: input, shape index: {}]
  %s1 = inlined_call_operand.hbm [shape: f32[256,256], index: 1, kind: input, shape index: {}]
  %s2 = inlined_call_operand.vmem [shape: f32[1,256], index: 2, kind: input, shape index: {}]
  %s3 = inlined_call_operand.hbm [shape: f32[128,256], index: 3, kind: output, shape index: {}]
  %s4 = sld [smem:[#allocation0]]
  $region53: #{tpu_custom_call.1} parent=0
    _
  %s6 = ssub.s32 1, %s4
  %s7 = scalar_select 0, %s6, %s4
  $region1: #{tpu_custom_call.1} parent=0
    #allocation2 [shape = 'u8[131072]{0}', space=vmem, size = 0x20000, scoped, tag = 'input window, operand 0']
    #allocation3 [shape = 's32[2]{0}', space=sflag, size = 0x8, scoped, tag = 'scoped memory for tpu_custom_call.1']
    #allocation4 [shape = 's32[2]{0}', space=sflag, size = 0x8, scoped, tag = 'scoped memory for tpu_custom_call.1']
    #allocation5 [shape = 'u8[262144]{0}', space=vmem, size = 0x40000, scoped, tag = 'input window, operand 1, single buffered']
    #allocation6 [shape = 's32[1]{0}', space=sflag, size = 0x4, scoped, tag = 'scoped memory for tpu_custom_call.1']
    #allocation7 [shape = 'u8[131072]{0}', space=vmem, size = 0x20000, scoped, tag = 'output window, operand 0']
    %8 = vsyncpa [#allocation3], 0
    %s9 = scalar_lea.sflag [#allocation3], 1
    %10 = vsyncpa %s9, 0
    %11 = vsyncpa [#allocation6], 0
    %12 = vsyncpa [#allocation4], 0
    %s13 = scalar_lea.sflag [#allocation4], 1
    %14 = vsyncpa %s13, 0
    loop: start=0, step=1, limit=4
    $region2: #{tpu_custom_call.1} parent=1 // loop_pre_header
      _
    $region3: #{tpu_custom_call.1} parent=1 // loop_header
      %s16 = sphi 0, %s20
      %p17 = scmp.ge.s32.totalorder %s16, 4
      %s26 = sphi 0, %s28
      %s29 = sphi 0, %s26
      %s30 = sphi 0, %s29
      %s46 = sphi 0, %s30
      %s50 = sphi 0, %s50
      %s52 = sphi 0, %s50
      %s53 = sphi 0, %s52
      %s67 = sphi 0, %s53
      %s71 = sphi 0, %s71
      %s73 = sphi 0, %s71
      %s74 = sphi 0, %s73
      %s88 = sphi 0, %s74
      %s94 = sphi 0, %s96
      %s97 = sphi 0, %s94
      %s98 = sphi 0, %s97
      %s114 = sphi 0, %s98
    $region4: #{tpu_custom_call.1} parent=1 // loop_header_branch
      %19 = sbr.rel (%p17) target = $region8
    $region5: #{tpu_custom_call.1} parent=1 // loop_body
      %s21 = ssub.s32 %s16, 1
      %s22 = ssub.s32 %s16, 2
      %s23 = sadd.s32 %s16, 1
      %s24 = ssub.s32 %s16, %s23
      %p25 = scmp.eq.s32.totalorder %s24, 0
      %s27 = sadd.s32 %s26, 1
      %s28 = scalar_select %p25, %s26, %s27
      %p31 = pneg %p25
      %p32 = scmp.eq.s32.totalorder %s16, 1
      %p33 = por %p31, %p32
      %p34 = scmp.ne.s32.totalorder %s26, %s29
      %p35 = scmp.eq.s32.totalorder %s16, 0
      %p36 = por %p34, %p35
      %p37 = scmp.ne.s32.totalorder %s26, %s29
      %p38 = scmp.eq.s32.totalorder %s21, 1
      %p39 = por %p37, %p38
      %p40 = scmp.ne.s32.totalorder %s29, %s30
      %p41 = scmp.eq.s32.totalorder %s21, 0
      %p42 = por %p40, %p41
      %p43 = scmp.ne.s32.totalorder %s29, %s30
      %p44 = scmp.eq.s32.totalorder %s22, 1
      %p45 = por %p43, %p44
      %p47 = scmp.ne.s32.totalorder %s30, %s46
      %p48 = scmp.eq.s32.totalorder %s22, 0
      %p49 = por %p47, %p48
      %s51 = sadd.s32 %s50, 1
      %p54 = scmp.eq.s32.totalorder %s16, 1
      %p55 = scmp.ne.s32.totalorder %s50, %s52
      %p56 = scmp.eq.s32.totalorder %s16, 0
      %p57 = por %p55, %p56
      %p58 = scmp.ne.s32.totalorder %s50, %s52
      %p59 = scmp.eq.s32.totalorder %s21, 1
      %p60 = por %p58, %p59
      %p61 = scmp.ne.s32.totalorder %s52, %s53
      %p62 = scmp.eq.s32.totalorder %s21, 0
      %p63 = por %p61, %p62
      %p64 = scmp.ne.s32.totalorder %s52, %s53
      %p65 = scmp.eq.s32.totalorder %s22, 1
      %p66 = por %p64, %p65
      %p68 = scmp.ne.s32.totalorder %s53, %s67
      %p69 = scmp.eq.s32.totalorder %s22, 0
      %p70 = por %p68, %p69
      %s72 = sadd.s32 %s71, 1
      %p75 = scmp.eq.s32.totalorder %s16, 1
      %p76 = scmp.ne.s32.totalorder %s71, %s73
      %p77 = scmp.eq.s32.totalorder %s16, 0
      %p78 = por %p76, %p77
      %p79 = scmp.ne.s32.totalorder %s71, %s73
      %p80 = scmp.eq.s32.totalorder %s21, 1
      %p81 = por %p79, %p80
      %p82 = scmp.ne.s32.totalorder %s73, %s74
      %p83 = scmp.eq.s32.totalorder %s21, 0
      %p84 = por %p82, %p83
      %p85 = scmp.ne.s32.totalorder %s73, %s74
      %p86 = scmp.eq.s32.totalorder %s22, 1
      %p87 = por %p85, %p86
      %p89 = scmp.ne.s32.totalorder %s74, %s88
      %p90 = scmp.eq.s32.totalorder %s22, 0
      %p91 = por %p89, %p90
      %s92 = ssub.s32 %s16, %s23
      %p93 = scmp.eq.s32.totalorder %s92, 0
      %s95 = sadd.s32 %s94, 1
      %s96 = scalar_select %p93, %s94, %s95
      %p99 = pneg %p93
      %p100 = scmp.eq.s32.totalorder %s16, 1
      %p101 = por %p99, %p100
      %p102 = scmp.ne.s32.totalorder %s94, %s97
      %p103 = scmp.eq.s32.totalorder %s16, 0
      %p104 = por %p102, %p103
      %p105 = scmp.ne.s32.totalorder %s94, %s97
      %p106 = scmp.eq.s32.totalorder %s21, 1
      %p107 = por %p105, %p106
      %p108 = scmp.ne.s32.totalorder %s97, %s98
      %p109 = scmp.eq.s32.totalorder %s21, 0
      %p110 = por %p108, %p109
      %p111 = scmp.ne.s32.totalorder %s97, %s98
      %p112 = scmp.eq.s32.totalorder %s22, 1
      %p113 = por %p111, %p112
      %p115 = scmp.ne.s32.totalorder %s98, %s114
      %p116 = scmp.eq.s32.totalorder %s22, 0
      %p117 = por %p115, %p116
      %p118 = scmp.le.s32.totalorder 1, %s16
      %p119 = scmp.lt.s32.totalorder %s16, 3
      %p120 = pnand %p118, %p119
      %p121 = pneg %p120
      // Predicated region
      $region9: #{tpu_custom_call.1} parent=5 // pred_check
        _
      $region10: #{tpu_custom_call.1} parent=5 // pred_check_branch
        %123 = sbr.rel (%p120) target = $region12
      $region11: #{tpu_custom_call.1} parent=5 // pred_region
        %s124 = ssub.s32 %s16, 1
        // Predicated region
        $region13: #{tpu_custom_call.1} parent=11 // pred_check
          %p125 = pneg %p63
        $region14: #{tpu_custom_call.1} parent=11 // pred_check_branch
          %127 = sbr.rel (%p125) target = $region16
        $region15: #{tpu_custom_call.1} parent=11 // pred_region
          %s129 = ssub.s32 8192, 8192
          %130 = vsyncadd [#allocation6], %s129
          %s131 = sshll.u32 [#allocation5], 4
          %s132 = int_to_ptr.vmem [resolvable:$true] %s131
          %137 = dma.hbm_to_vmem [thread:$0]  %s1, 8192, %s132, [#allocation6], 256, 256, 16
        $region16: #{tpu_custom_call.1} parent=11 // pred_fallthru
          _
        // Predicated region
        $region17: #{tpu_custom_call.1} parent=11 // pred_check
          %p138 = pneg %p84
        $region18: #{tpu_custom_call.1} parent=11 // pred_check_branch
          %140 = sbr.rel (%p138) target = $region20
        $region19: #{tpu_custom_call.1} parent=11 // pred_region
          _
        $region20: #{tpu_custom_call.1} parent=11 // pred_fallthru
          _
      $region12: #{tpu_custom_call.1} parent=5 // pred_fallthru
        _
      %p141 = scmp.lt.s32.totalorder %s16, 2
      // Predicated region
      $region21: #{tpu_custom_call.1} parent=5 // pred_check
        %p142 = pneg %p141
      $region22: #{tpu_custom_call.1} parent=5 // pred_check_branch
        %144 = sbr.rel (%p142) target = $region24
      $region23: #{tpu_custom_call.1} parent=5 // pred_region
        // Predicated region
        $region25: #{tpu_custom_call.1} parent=23 // pred_check
          %p145 = pneg %p36
        $region26: #{tpu_custom_call.1} parent=23 // pred_check_branch
          %147 = sbr.rel (%p145) target = $region28
        $region27: #{tpu_custom_call.1} parent=23 // pred_region
          %s148 = sand.u32 %s26, 1
          %s149 = scalar_lea.sflag [#allocation3], %s148
          %s150 = sand.u32 %s26, 1
          %s151 = smul.addr %s150, 128
          %s152 = scalar_lea.vmem [#allocation2], %s151
          %s153 = smul.u32 8, %s16
          %s155 = ssub.s32 2048, 2048
          %156 = vsyncadd %s149, %s155
          %s157 = smul.addr %s153, 2
          %s158 = smul.addr %s157, 128
          %s159 = scalar_lea.hbm %s0, %s158
          %s160 = sshll.u32 %s152, 4
          %s161 = int_to_ptr.vmem [resolvable:$true] %s160
          %166 = dma.hbm_to_vmem [thread:$0]  %s159, 2048, %s161, %s149, 256, 256, 16
        $region28: #{tpu_custom_call.1} parent=23 // pred_fallthru
          _
      $region24: #{tpu_custom_call.1} parent=5 // pred_fallthru
        _
      %p167 = scmp.le.s32.totalorder 1, %s16
      %p168 = scmp.lt.s32.totalorder %s16, 3
      %p169 = pnand %p167, %p168
      %p170 = pneg %p169
      // Predicated region
      $region29: #{tpu_custom_call.1} parent=5 // pred_check
        _
      $region30: #{tpu_custom_call.1} parent=5 // pred_check_branch
        %172 = sbr.rel (%p169) target = $region32
      $region31: #{tpu_custom_call.1} parent=5 // pred_region
        %s173 = ssub.s32 %s16, 1
        %s174 = sand.u32 %s29, 1
        %s175 = scalar_lea.sflag [#allocation3], %s174
        %s176 = sand.u32 %s29, 1
        %s177 = smul.addr %s176, 128
        %s178 = scalar_lea.vmem [#allocation2], %s177
        // Predicated region
        $region33: #{tpu_custom_call.1} parent=31 // pred_check
          %p179 = pneg %p42
        $region34: #{tpu_custom_call.1} parent=31 // pred_check_branch
          %181 = sbr.rel (%p179) target = $region36
        $region35: #{tpu_custom_call.1} parent=31 // pred_region
          %182 = dma.done %s175, 2048
        $region36: #{tpu_custom_call.1} parent=31 // pred_fallthru
          _
        // Predicated region
        $region37: #{tpu_custom_call.1} parent=31 // pred_check
          %p183 = pneg %p63
        $region38: #{tpu_custom_call.1} parent=31 // pred_check_branch
          %185 = sbr.rel (%p183) target = $region40
        $region39: #{tpu_custom_call.1} parent=31 // pred_region
          %186 = dma.done [#allocation6], 8192
        $region40: #{tpu_custom_call.1} parent=31 // pred_fallthru
          _
        %s187 = sand.u32 %s29, 1
        %s188 = scalar_lea.sflag [#allocation3], %s187
        %s189 = sand.u32 %s29, 1
        %s190 = smul.addr %s189, 128
        %s191 = scalar_lea.vmem [#allocation2], %s190
        %p192 = pneg %p42
        %p193 = pneg %p39
        %p194 = pneg %p63
        %p195 = pneg %p60
        %p196 = pneg %p84
        %p197 = pneg %p81
        %p198 = pneg %p110
        %p199 = pneg %p107
        %s200 = sand.u32 %s97, 1
        %s201 = scalar_lea.sflag [#allocation4], %s200
        %s202 = sand.u32 %s97, 1
        %s203 = smul.addr %s202, 128
        %s204 = scalar_lea.vmem [#allocation7], %s203
        %s205 = smul.u32 8, %s21
        %s206 = smul.u32 8, %s21
        %v207 = vld [vmem:[%s178] sm:$0xff]
        %v208 = vld [vmem:[%s178 + $0x8] sm:$0xff]
        %v209 = vld [vmem:[%s178 + $0x10] sm:$0xff]
        %v210 = vld [vmem:[%s178 + $0x18] sm:$0xff]
        %v211 = vld [vmem:[%s178 + $0x20] sm:$0xff]
        %v212 = vld [vmem:[%s178 + $0x28] sm:$0xff]
        %v213 = vld [vmem:[%s178 + $0x30] sm:$0xff]
        %v214 = vld [vmem:[%s178 + $0x38] sm:$0xff]
        %v215 = vld [vmem:[%s178 + $0x40] sm:$0xff]
        %v216 = vld [vmem:[%s178 + $0x48] sm:$0xff]
        %v217 = vld [vmem:[%s178 + $0x50] sm:$0xff]
        %v218 = vld [vmem:[%s178 + $0x58] sm:$0xff]
        %v219 = vld [vmem:[%s178 + $0x60] sm:$0xff]
        %v220 = vld [vmem:[%s178 + $0x68] sm:$0xff]
        %v221 = vld [vmem:[%s178 + $0x70] sm:$0xff]
        %v222 = vld [vmem:[%s178 + $0x78] sm:$0xff]
        %v223 = vld [vmem:[#allocation5] sm:$0xff]
        %v224 = vld [vmem:[#allocation5 + $0x8] sm:$0xff]
        %v225 = vld [vmem:[#allocation5 + $0x10] sm:$0xff]
        %v226 = vld [vmem:[#allocation5 + $0x18] sm:$0xff]
        %v227 = vld [vmem:[#allocation5 + $0x20] sm:$0xff]
        %v228 = vld [vmem:[#allocation5 + $0x28] sm:$0xff]
        %v229 = vld [vmem:[#allocation5 + $0x30] sm:$0xff]
        %v230 = vld [vmem:[#allocation5 + $0x38] sm:$0xff]
        %v231 = vld [vmem:[#allocation5 + $0x40] sm:$0xff]
        %v232 = vld [vmem:[#allocation5 + $0x48] sm:$0xff]
        %v233 = vld [vmem:[#allocation5 + $0x50] sm:$0xff]
        %v234 = vld [vmem:[#allocation5 + $0x58] sm:$0xff]
        %v235 = vld [vmem:[#allocation5 + $0x60] sm:$0xff]
        %v236 = vld [vmem:[#allocation5 + $0x68] sm:$0xff]
        %v237 = vld [vmem:[#allocation5 + $0x70] sm:$0xff]
        %v238 = vld [vmem:[#allocation5 + $0x78] sm:$0xff]
        %v239 = vld [vmem:[#allocation5 + $0x80] sm:$0xff]
        %v240 = vld [vmem:[#allocation5 + $0x88] sm:$0xff]
        %v241 = vld [vmem:[#allocation5 + $0x90] sm:$0xff]
        %v242 = vld [vmem:[#allocation5 + $0x98] sm:$0xff]
        %v243 = vld [vmem:[#allocation5 + $0xa0] sm:$0xff]
        %v244 = vld [vmem:[#allocation5 + $0xa8] sm:$0xff]
        %v245 = vld [vmem:[#allocation5 + $0xb0] sm:$0xff]
        %v246 = vld [vmem:[#allocation5 + $0xb8] sm:$0xff]
        %v247 = vld [vmem:[#allocation5 + $0xc0] sm:$0xff]
        %v248 = vld [vmem:[#allocation5 + $0xc8] sm:$0xff]
        %v249 = vld [vmem:[#allocation5 + $0xd0] sm:$0xff]
        %v250 = vld [vmem:[#allocation5 + $0xd8] sm:$0xff]
        %v251 = vld [vmem:[#allocation5 + $0xe0] sm:$0xff]
        %v252 = vld [vmem:[#allocation5 + $0xe8] sm:$0xff]
        %v253 = vld [vmem:[#allocation5 + $0xf0] sm:$0xff]
        %v254 = vld [vmem:[#allocation5 + $0xf8] sm:$0xff]
        %v255 = vld [vmem:[#allocation5 + $0x100] sm:$0xff]
        %v256 = vld [vmem:[#allocation5 + $0x108] sm:$0xff]
        %v257 = vld [vmem:[#allocation5 + $0x110] sm:$0xff]
        %v258 = vld [vmem:[#allocation5 + $0x118] sm:$0xff]
        %v259 = vld [vmem:[#allocation5 + $0x120] sm:$0xff]
        %v260 = vld [vmem:[#allocation5 + $0x128] sm:$0xff]
        %v261 = vld [vmem:[#allocation5 + $0x130] sm:$0xff]
        %v262 = vld [vmem:[#allocation5 + $0x138] sm:$0xff]
        %v263 = vld [vmem:[#allocation5 + $0x140] sm:$0xff]
        %v264 = vld [vmem:[#allocation5 + $0x148] sm:$0xff]
        %v265 = vld [vmem:[#allocation5 + $0x150] sm:$0xff]
        %v266 = vld [vmem:[#allocation5 + $0x158] sm:$0xff]
        %v267 = vld [vmem:[#allocation5 + $0x160] sm:$0xff]
        %v268 = vld [vmem:[#allocation5 + $0x168] sm:$0xff]
        %v269 = vld [vmem:[#allocation5 + $0x170] sm:$0xff]
        %v270 = vld [vmem:[#allocation5 + $0x178] sm:$0xff]
        %v271 = vld [vmem:[#allocation5 + $0x180] sm:$0xff]
        %v272 = vld [vmem:[#allocation5 + $0x188] sm:$0xff]
        %v273 = vld [vmem:[#allocation5 + $0x190] sm:$0xff]
        %v274 = vld [vmem:[#allocation5 + $0x198] sm:$0xff]
        %v275 = vld [vmem:[#allocation5 + $0x1a0] sm:$0xff]
        %v276 = vld [vmem:[#allocation5 + $0x1a8] sm:$0xff]
        %v277 = vld [vmem:[#allocation5 + $0x1b0] sm:$0xff]
        %v278 = vld [vmem:[#allocation5 + $0x1b8] sm:$0xff]
        %v279 = vld [vmem:[#allocation5 + $0x1c0] sm:$0xff]
        %v280 = vld [vmem:[#allocation5 + $0x1c8] sm:$0xff]
        %v281 = vld [vmem:[#allocation5 + $0x1d0] sm:$0xff]
        %v282 = vld [vmem:[#allocation5 + $0x1d8] sm:$0xff]
        %v283 = vld [vmem:[#allocation5 + $0x1e0] sm:$0xff]
        %v284 = vld [vmem:[#allocation5 + $0x1e8] sm:$0xff]
        %v285 = vld [vmem:[#allocation5 + $0x1f0] sm:$0xff]
        %v286 = vld [vmem:[#allocation5 + $0x1f8] sm:$0xff]
        %v287 = vld [vmem:[%s2] sm:$0x3]
        %v289 = vlaneseq
        %v290 = vshrl.u32 %v289, 7
        %v291 = vsub.s32 0, %v290
        %v292 = vrot.slane %v287, %v291
        %v293 = vlaneseq
        %v294 = vshrl.u32 %v293, 7
        %v295 = vsub.s32 1, %v294
        %v296 = vrot.slane %v287, %v295
        %v299 = vand.u32 %v254, 4294901760
        %300 = vmatprep.subr.mxu0 %v299
        %v301 = vand.u32 %v253, 4294901760
        %302 = vmatpush1.msra.mxu0 %v301
        %v303 = vand.u32 %v252, 4294901760
        %304 = vmatprep.subr.mxu0 %v303
        %v305 = vand.u32 %v251, 4294901760
        %306 = vmatpush1.msra.mxu0 %v305
        %v307 = vand.u32 %v250, 4294901760
        %308 = vmatprep.subr.mxu0 %v307
        %v309 = vand.u32 %v249, 4294901760
        %310 = vmatpush1.msra.mxu0 %v309
        %v311 = vand.u32 %v248, 4294901760
        %312 = vmatprep.subr.mxu0 %v311
        %v313 = vand.u32 %v247, 4294901760
        %314 = vmatpush1.msra.mxu0 %v313
        %v315 = vand.u32 %v246, 4294901760
        %316 = vmatprep.subr.mxu0 %v315
        %v317 = vand.u32 %v245, 4294901760
        %318 = vmatpush1.msra.mxu0 %v317
        %v319 = vand.u32 %v244, 4294901760
        %320 = vmatprep.subr.mxu0 %v319
        %v321 = vand.u32 %v243, 4294901760
        %322 = vmatpush1.msra.mxu0 %v321
        %v323 = vand.u32 %v242, 4294901760
        %324 = vmatprep.subr.mxu0 %v323
        %v325 = vand.u32 %v241, 4294901760
        %326 = vmatpush1.msra.mxu0 %v325
        %v327 = vand.u32 %v240, 4294901760
        %328 = vmatprep.subr.mxu0 %v327
        %v329 = vand.u32 %v239, 4294901760
        %330 = vmatpush1.msra.mxu0 %v329
        %v331 = vand.u32 %v238, 4294901760
        %332 = vmatprep.subr.mxu0 %v331
        %v333 = vand.u32 %v237, 4294901760
        %334 = vmatpush1.msra.mxu0 %v333
        %v335 = vand.u32 %v236, 4294901760
        %336 = vmatprep.subr.mxu0 %v335
        %v337 = vand.u32 %v235, 4294901760
        %338 = vmatpush1.msra.mxu0 %v337
        %v339 = vand.u32 %v234, 4294901760
        %340 = vmatprep.subr.mxu0 %v339
        %v341 = vand.u32 %v233, 4294901760
        %342 = vmatpush1.msra.mxu0 %v341
        %v343 = vand.u32 %v232, 4294901760
        %344 = vmatprep.subr.mxu0 %v343
        %v345 = vand.u32 %v231, 4294901760
        %346 = vmatpush1.msra.mxu0 %v345
        %v347 = vand.u32 %v230, 4294901760
        %348 = vmatprep.subr.mxu0 %v347
        %v349 = vand.u32 %v229, 4294901760
        %350 = vmatpush1.msra.mxu0 %v349
        %v351 = vand.u32 %v228, 4294901760
        %352 = vmatprep.subr.mxu0 %v351
        %v353 = vand.u32 %v227, 4294901760
        %354 = vmatpush1.msra.mxu0 %v353
        %v355 = vand.u32 %v226, 4294901760
        %356 = vmatprep.subr.mxu0 %v355
        %v357 = vand.u32 %v225, 4294901760
        %358 = vmatpush1.msra.mxu0 %v357
        %v359 = vand.u32 %v224, 4294901760
        %360 = vmatprep.subr.mxu0 %v359
        %v361 = vand.u32 %v223, 4294901760
        %362 = vmatpush1.msra.mxu0 %v361
        %v363 = vand.u32 %v286, 4294901760
        %364 = vmatprep.subr.mxu0 %v363
        %v365 = vand.u32 %v285, 4294901760
        %366 = vmatpush2.msra.mxu0 %v365
        %v367 = vand.u32 %v284, 4294901760
        %368 = vmatprep.subr.mxu0 %v367
        %v369 = vand.u32 %v283, 4294901760
        %370 = vmatpush2.msra.mxu0 %v369
        %v371 = vand.u32 %v282, 4294901760
        %372 = vmatprep.subr.mxu0 %v371
        %v373 = vand.u32 %v281, 4294901760
        %374 = vmatpush2.msra.mxu0 %v373
        %v375 = vand.u32 %v280, 4294901760
        %376 = vmatprep.subr.mxu0 %v375
        %v377 = vand.u32 %v279, 4294901760
        %378 = vmatpush2.msra.mxu0 %v377
        %v379 = vand.u32 %v278, 4294901760
        %380 = vmatprep.subr.mxu0 %v379
        %v381 = vand.u32 %v277, 4294901760
        %382 = vmatpush2.msra.mxu0 %v381
        %v383 = vand.u32 %v276, 4294901760
        %384 = vmatprep.subr.mxu0 %v383
        %v385 = vand.u32 %v275, 4294901760
        %386 = vmatpush2.msra.mxu0 %v385
        %v387 = vand.u32 %v274, 4294901760
        %388 = vmatprep.subr.mxu0 %v387
        %v389 = vand.u32 %v273, 4294901760
        %390 = vmatpush2.msra.mxu0 %v389
        %v391 = vand.u32 %v272, 4294901760
        %392 = vmatprep.subr.mxu0 %v391
        %v393 = vand.u32 %v271, 4294901760
        %394 = vmatpush2.msra.mxu0 %v393
        %v395 = vand.u32 %v270, 4294901760
        %396 = vmatprep.subr.mxu0 %v395
        %v397 = vand.u32 %v269, 4294901760
        %398 = vmatpush2.msra.mxu0 %v397
        %v399 = vand.u32 %v268, 4294901760
        %400 = vmatprep.subr.mxu0 %v399
        %v401 = vand.u32 %v267, 4294901760
        %402 = vmatpush2.msra.mxu0 %v401
        %v403 = vand.u32 %v266, 4294901760
        %404 = vmatprep.subr.mxu0 %v403
        %v405 = vand.u32 %v265, 4294901760
        %406 = vmatpush2.msra.mxu0 %v405
        %v407 = vand.u32 %v264, 4294901760
        %408 = vmatprep.subr.mxu0 %v407
        %v409 = vand.u32 %v263, 4294901760
        %410 = vmatpush2.msra.mxu0 %v409
        %v411 = vand.u32 %v262, 4294901760
        %412 = vmatprep.subr.mxu0 %v411
        %v413 = vand.u32 %v261, 4294901760
        %414 = vmatpush2.msra.mxu0 %v413
        %v415 = vand.u32 %v260, 4294901760
        %416 = vmatprep.subr.mxu0 %v415
        %v417 = vand.u32 %v259, 4294901760
        %418 = vmatpush2.msra.mxu0 %v417
        %v419 = vand.u32 %v258, 4294901760
        %420 = vmatprep.subr.mxu0 %v419
        %v421 = vand.u32 %v257, 4294901760
        %422 = vmatpush2.msra.mxu0 %v421
        %v423 = vand.u32 %v256, 4294901760
        %424 = vmatprep.subr.mxu0 %v423
        %v425 = vand.u32 %v255, 4294901760
        %426 = vmatpush2.msra.mxu0 %v425
        %v427 = vand.u32 %v208, 4294901760
        %v428 = vsub.f32 %v208, %v427
        %v429 = vand.u32 %v428, 4294901760
        %v430 = vsub.f32 %v428, %v429
        %v431 = vand.u32 %v430, 4294901760
        %432 = vmatprep.mubr.f32.mxu0 %v431
        %v433 = vand.u32 %v207, 4294901760
        %v434 = vsub.f32 %v207, %v433
        %v435 = vand.u32 %v434, 4294901760
        %v436 = vsub.f32 %v434, %v435
        %v437 = vand.u32 %v436, 4294901760
        %438 = vmatmul.mubr.f32.gmra.mxu0 %v437
        %v439 = vpop.f32.mrf.mxu0
        %v440 = vadd.f32 %v292, %v439
        %v441 = vpop.f32.mrf.mxu0
        %v442 = vadd.f32 %v296, %v441
        %v443 = vand.u32 %v210, 4294901760
        %v444 = vsub.f32 %v210, %v443
        %v445 = vand.u32 %v444, 4294901760
        %v446 = vsub.f32 %v444, %v445
        %v447 = vand.u32 %v446, 4294901760
        %448 = vmatprep.mubr.f32.mxu0 %v447
        %v449 = vand.u32 %v209, 4294901760
        %v450 = vsub.f32 %v209, %v449
        %v451 = vand.u32 %v450, 4294901760
        %v452 = vsub.f32 %v450, %v451
        %v453 = vand.u32 %v452, 4294901760
        %454 = vmatmul.mubr.f32.gmra.mxu0 %v453
        %v455 = vpop.f32.mrf.mxu0
        %v456 = vadd.f32 %v292, %v455
        %v457 = vpop.f32.mrf.mxu0
        %v458 = vadd.f32 %v296, %v457
        %v459 = vand.u32 %v212, 4294901760
        %v460 = vsub.f32 %v212, %v459
        %v461 = vand.u32 %v460, 4294901760
        %v462 = vsub.f32 %v460, %v461
        %v463 = vand.u32 %v462, 4294901760
        %464 = vmatprep.mubr.f32.mxu0 %v463
        %v465 = vand.u32 %v211, 4294901760
        %v466 = vsub.f32 %v211, %v465
        %v467 = vand.u32 %v466, 4294901760
        %v468 = vsub.f32 %v466, %v467
        %v469 = vand.u32 %v468, 4294901760
        %470 = vmatmul.mubr.f32.gmra.mxu0 %v469
        %v471 = vpop.f32.mrf.mxu0
        %v472 = vadd.f32 %v292, %v471
        %v473 = vpop.f32.mrf.mxu0
        %v474 = vadd.f32 %v296, %v473
        %v475 = vand.u32 %v214, 4294901760
        %v476 = vsub.f32 %v214, %v475
        %v477 = vand.u32 %v476, 4294901760
        %v478 = vsub.f32 %v476, %v477
        %v479 = vand.u32 %v478, 4294901760
        %480 = vmatprep.mubr.f32.mxu0 %v479
        %v481 = vand.u32 %v213, 4294901760
        %v482 = vsub.f32 %v213, %v481
        %v483 = vand.u32 %v482, 4294901760
        %v484 = vsub.f32 %v482, %v483
        %v485 = vand.u32 %v484, 4294901760
        %486 = vmatmul.mubr.f32.gmra.mxu0 %v485
        %v487 = vpop.f32.mrf.mxu0
        %v488 = vadd.f32 %v292, %v487
        %v489 = vpop.f32.mrf.mxu0
        %v490 = vadd.f32 %v296, %v489
        %v491 = vand.u32 %v216, 4294901760
        %v492 = vsub.f32 %v216, %v491
        %v493 = vand.u32 %v492, 4294901760
        %v494 = vsub.f32 %v492, %v493
        %v495 = vand.u32 %v494, 4294901760
        %496 = vmatprep.mubr.f32.mxu0 %v495
        %v497 = vand.u32 %v215, 4294901760
        %v498 = vsub.f32 %v215, %v497
        %v499 = vand.u32 %v498, 4294901760
        %v500 = vsub.f32 %v498, %v499
        %v501 = vand.u32 %v500, 4294901760
        %502 = vmatmul.mubr.f32.gmra.mxu0 %v501
        %v503 = vpop.f32.mrf.mxu0
        %v504 = vadd.f32 %v292, %v503
        %v505 = vpop.f32.mrf.mxu0
        %v506 = vadd.f32 %v296, %v505
        %v507 = vand.u32 %v218, 4294901760
        %v508 = vsub.f32 %v218, %v507
        %v509 = vand.u32 %v508, 4294901760
        %v510 = vsub.f32 %v508, %v509
        %v511 = vand.u32 %v510, 4294901760
        %512 = vmatprep.mubr.f32.mxu0 %v511
        %v513 = vand.u32 %v217, 4294901760
        %v514 = vsub.f32 %v217, %v513
        %v515 = vand.u32 %v514, 4294901760
        %v516 = vsub.f32 %v514, %v515
        %v517 = vand.u32 %v516, 4294901760
        %518 = vmatmul.mubr.f32.gmra.mxu0 %v517
        %v519 = vpop.f32.mrf.mxu0
        %v520 = vadd.f32 %v292, %v519
        %v521 = vpop.f32.mrf.mxu0
        %v522 = vadd.f32 %v296, %v521
        %v523 = vand.u32 %v220, 4294901760
        %v524 = vsub.f32 %v220, %v523
        %v525 = vand.u32 %v524, 4294901760
        %v526 = vsub.f32 %v524, %v525
        %v527 = vand.u32 %v526, 4294901760
        %528 = vmatprep.mubr.f32.mxu0 %v527
        %v529 = vand.u32 %v219, 4294901760
        %v530 = vsub.f32 %v219, %v529
        %v531 = vand.u32 %v530, 4294901760
        %v532 = vsub.f32 %v530, %v531
        %v533 = vand.u32 %v532, 4294901760
        %534 = vmatmul.mubr.f32.gmra.mxu0 %v533
        %v535 = vpop.f32.mrf.mxu0
        %v536 = vadd.f32 %v292, %v535
        %v537 = vpop.f32.mrf.mxu0
        %v538 = vadd.f32 %v296, %v537
        %v539 = vand.u32 %v222, 4294901760
        %v540 = vsub.f32 %v222, %v539
        %v541 = vand.u32 %v540, 4294901760
        %v542 = vsub.f32 %v540, %v541
        %v543 = vand.u32 %v542, 4294901760
        %544 = vmatprep.mubr.f32.mxu0 %v543
        %v545 = vand.u32 %v221, 4294901760
        %v546 = vsub.f32 %v221, %v545
        %v547 = vand.u32 %v546, 4294901760
        %v548 = vsub.f32 %v546, %v547
        %v549 = vand.u32 %v548, 4294901760
        %550 = vmatmul.mubr.f32.gmra.mxu0 %v549
        %v551 = vpop.f32.mrf.mxu0
        %v552 = vadd.f32 %v292, %v551
        %v553 = vpop.f32.mrf.mxu0
        %v554 = vadd.f32 %v296, %v553
        %555 = vdwg.mxu0
        %v556 = vand.u32 %v254, 4294901760
        %v557 = vsub.f32 %v254, %v556
        %v558 = vand.u32 %v557, 4294901760
        %v559 = vsub.f32 %v557, %v558
        %v560 = vand.u32 %v559, 4294901760
        %561 = vmatprep.subr.mxu0 %v560
        %v562 = vand.u32 %v253, 4294901760
        %v563 = vsub.f32 %v253, %v562
        %v564 = vand.u32 %v563, 4294901760
        %v565 = vsub.f32 %v563, %v564
        %v566 = vand.u32 %v565, 4294901760
        %567 = vmatpush1.msra.mxu0 %v566
        %v568 = vand.u32 %v252, 4294901760
        %v569 = vsub.f32 %v252, %v568
        %v570 = vand.u32 %v569, 4294901760
        %v571 = vsub.f32 %v569, %v570
        %v572 = vand.u32 %v571, 4294901760
        %573 = vmatprep.subr.mxu0 %v572
        %v574 = vand.u32 %v251, 4294901760
        %v575 = vsub.f32 %v251, %v574
        %v576 = vand.u32 %v575, 4294901760
        %v577 = vsub.f32 %v575, %v576
        %v578 = vand.u32 %v577, 4294901760
        %579 = vmatpush1.msra.mxu0 %v578
        %v580 = vand.u32 %v250, 4294901760
        %v581 = vsub.f32 %v250, %v580
        %v582 = vand.u32 %v581, 4294901760
        %v583 = vsub.f32 %v581, %v582
        %v584 = vand.u32 %v583, 4294901760
        %585 = vmatprep.subr.mxu0 %v584
        %v586 = vand.u32 %v249, 4294901760
        %v587 = vsub.f32 %v249, %v586
        %v588 = vand.u32 %v587, 4294901760
        %v589 = vsub.f32 %v587, %v588
        %v590 = vand.u32 %v589, 4294901760
        %591 = vmatpush1.msra.mxu0 %v590
        %v592 = vand.u32 %v248, 4294901760
        %v593 = vsub.f32 %v248, %v592
        %v594 = vand.u32 %v593, 4294901760
        %v595 = vsub.f32 %v593, %v594
        %v596 = vand.u32 %v595, 4294901760
        %597 = vmatprep.subr.mxu0 %v596
        %v598 = vand.u32 %v247, 4294901760
        %v599 = vsub.f32 %v247, %v598
        %v600 = vand.u32 %v599, 4294901760
        %v601 = vsub.f32 %v599, %v600
        %v602 = vand.u32 %v601, 4294901760
        %603 = vmatpush1.msra.mxu0 %v602
        %v604 = vand.u32 %v246, 4294901760
        %v605 = vsub.f32 %v246, %v604
        %v606 = vand.u32 %v605, 4294901760
        %v607 = vsub.f32 %v605, %v606
        %v608 = vand.u32 %v607, 4294901760
        %609 = vmatprep.subr.mxu0 %v608
        %v610 = vand.u32 %v245, 4294901760
        %v611 = vsub.f32 %v245, %v610
        %v612 = vand.u32 %v611, 4294901760
        %v613 = vsub.f32 %v611, %v612
        %v614 = vand.u32 %v613, 4294901760
        %615 = vmatpush1.msra.mxu0 %v614
        %v616 = vand.u32 %v244, 4294901760
        %v617 = vsub.f32 %v244, %v616
        %v618 = vand.u32 %v617, 4294901760
        %v619 = vsub.f32 %v617, %v618
        %v620 = vand.u32 %v619, 4294901760
        %621 = vmatprep.subr.mxu0 %v620
        %v622 = vand.u32 %v243, 4294901760
        %v623 = vsub.f32 %v243, %v622
        %v624 = vand.u32 %v623, 4294901760
        %v625 = vsub.f32 %v623, %v624
        %v626 = vand.u32 %v625, 4294901760
        %627 = vmatpush1.msra.mxu0 %v626
        %v628 = vand.u32 %v242, 4294901760
        %v629 = vsub.f32 %v242, %v628
        %v630 = vand.u32 %v629, 4294901760
        %v631 = vsub.f32 %v629, %v630
        %v632 = vand.u32 %v631, 4294901760
        %633 = vmatprep.subr.mxu0 %v632
        %v634 = vand.u32 %v241, 4294901760
        %v635 = vsub.f32 %v241, %v634
        %v636 = vand.u32 %v635, 4294901760
        %v637 = vsub.f32 %v635, %v636
        %v638 = vand.u32 %v637, 4294901760
        %639 = vmatpush1.msra.mxu0 %v638
        %v640 = vand.u32 %v240, 4294901760
        %v641 = vsub.f32 %v240, %v640
        %v642 = vand.u32 %v641, 4294901760
        %v643 = vsub.f32 %v641, %v642
        %v644 = vand.u32 %v643, 4294901760
        %645 = vmatprep.subr.mxu0 %v644
        %v646 = vand.u32 %v239, 4294901760
        %v647 = vsub.f32 %v239, %v646
        %v648 = vand.u32 %v647, 4294901760
        %v649 = vsub.f32 %v647, %v648
        %v650 = vand.u32 %v649, 4294901760
        %651 = vmatpush1.msra.mxu0 %v650
        %v652 = vand.u32 %v238, 4294901760
        %v653 = vsub.f32 %v238, %v652
        %v654 = vand.u32 %v653, 4294901760
        %v655 = vsub.f32 %v653, %v654
        %v656 = vand.u32 %v655, 4294901760
        %657 = vmatprep.subr.mxu0 %v656
        %v658 = vand.u32 %v237, 4294901760
        %v659 = vsub.f32 %v237, %v658
        %v660 = vand.u32 %v659, 4294901760
        %v661 = vsub.f32 %v659, %v660
        %v662 = vand.u32 %v661, 4294901760
        %663 = vmatpush1.msra.mxu0 %v662
        %v664 = vand.u32 %v236, 4294901760
        %v665 = vsub.f32 %v236, %v664
        %v666 = vand.u32 %v665, 4294901760
        %v667 = vsub.f32 %v665, %v666
        %v668 = vand.u32 %v667, 4294901760
        %669 = vmatprep.subr.mxu0 %v668
        %v670 = vand.u32 %v235, 4294901760
        %v671 = vsub.f32 %v235, %v670
        %v672 = vand.u32 %v671, 4294901760
        %v673 = vsub.f32 %v671, %v672
        %v674 = vand.u32 %v673, 4294901760
        %675 = vmatpush1.msra.mxu0 %v674
        %v676 = vand.u32 %v234, 4294901760
        %v677 = vsub.f32 %v234, %v676
        %v678 = vand.u32 %v677, 4294901760
        %v679 = vsub.f32 %v677, %v678
        %v680 = vand.u32 %v679, 4294901760
        %681 = vmatprep.subr.mxu0 %v680
        %v682 = vand.u32 %v233, 4294901760
        %v683 = vsub.f32 %v233, %v682
        %v684 = vand.u32 %v683, 4294901760
        %v685 = vsub.f32 %v683, %v684
        %v686 = vand.u32 %v685, 4294901760
        %687 = vmatpush1.msra.mxu0 %v686
        %v688 = vand.u32 %v232, 4294901760
        %v689 = vsub.f32 %v232, %v688
        %v690 = vand.u32 %v689, 4294901760
        %v691 = vsub.f32 %v689, %v690
        %v692 = vand.u32 %v691, 4294901760
        %693 = vmatprep.subr.mxu0 %v692
        %v694 = vand.u32 %v231, 4294901760
        %v695 = vsub.f32 %v231, %v694
        %v696 = vand.u32 %v695, 4294901760
        %v697 = vsub.f32 %v695, %v696
        %v698 = vand.u32 %v697, 4294901760
        %699 = vmatpush1.msra.mxu0 %v698
        %v700 = vand.u32 %v230, 4294901760
        %v701 = vsub.f32 %v230, %v700
        %v702 = vand.u32 %v701, 4294901760
        %v703 = vsub.f32 %v701, %v702
        %v704 = vand.u32 %v703, 4294901760
        %705 = vmatprep.subr.mxu0 %v704
        %v706 = vand.u32 %v229, 4294901760
        %v707 = vsub.f32 %v229, %v706
        %v708 = vand.u32 %v707, 4294901760
        %v709 = vsub.f32 %v707, %v708
        %v710 = vand.u32 %v709, 4294901760
        %711 = vmatpush1.msra.mxu0 %v710
        %v712 = vand.u32 %v228, 4294901760
        %v713 = vsub.f32 %v228, %v712
        %v714 = vand.u32 %v713, 4294901760
        %v715 = vsub.f32 %v713, %v714
        %v716 = vand.u32 %v715, 4294901760
        %717 = vmatprep.subr.mxu0 %v716
        %v718 = vand.u32 %v227, 4294901760
        %v719 = vsub.f32 %v227, %v718
        %v720 = vand.u32 %v719, 4294901760
        %v721 = vsub.f32 %v719, %v720
        %v722 = vand.u32 %v721, 4294901760
        %723 = vmatpush1.msra.mxu0 %v722
        %v724 = vand.u32 %v226, 4294901760
        %v725 = vsub.f32 %v226, %v724
        %v726 = vand.u32 %v725, 4294901760
        %v727 = vsub.f32 %v725, %v726
        %v728 = vand.u32 %v727, 4294901760
        %729 = vmatprep.subr.mxu0 %v728
        %v730 = vand.u32 %v225, 4294901760
        %v731 = vsub.f32 %v225, %v730
        %v732 = vand.u32 %v731, 4294901760
        %v733 = vsub.f32 %v731, %v732
        %v734 = vand.u32 %v733, 4294901760
        %735 = vmatpush1.msra.mxu0 %v734
        %v736 = vand.u32 %v224, 4294901760
        %v737 = vsub.f32 %v224, %v736
        %v738 = vand.u32 %v737, 4294901760
        %v739 = vsub.f32 %v737, %v738
        %v740 = vand.u32 %v739, 4294901760
        %741 = vmatprep.subr.mxu0 %v740
        %v742 = vand.u32 %v223, 4294901760
        %v743 = vsub.f32 %v223, %v742
        %v744 = vand.u32 %v743, 4294901760
        %v745 = vsub.f32 %v743, %v744
        %v746 = vand.u32 %v745, 4294901760
        %747 = vmatpush1.msra.mxu0 %v746
        %v748 = vand.u32 %v286, 4294901760
        %v749 = vsub.f32 %v286, %v748
        %v750 = vand.u32 %v749, 4294901760
        %v751 = vsub.f32 %v749, %v750
        %v752 = vand.u32 %v751, 4294901760
        %753 = vmatprep.subr.mxu0 %v752
        %v754 = vand.u32 %v285, 4294901760
        %v755 = vsub.f32 %v285, %v754
        %v756 = vand.u32 %v755, 4294901760
        %v757 = vsub.f32 %v755, %v756
        %v758 = vand.u32 %v757, 4294901760
        %759 = vmatpush2.msra.mxu0 %v758
        %v760 = vand.u32 %v284, 4294901760
        %v761 = vsub.f32 %v284, %v760
        %v762 = vand.u32 %v761, 4294901760
        %v763 = vsub.f32 %v761, %v762
        %v764 = vand.u32 %v763, 4294901760
        %765 = vmatprep.subr.mxu0 %v764
        %v766 = vand.u32 %v283, 4294901760
        %v767 = vsub.f32 %v283, %v766
        %v768 = vand.u32 %v767, 4294901760
        %v769 = vsub.f32 %v767, %v768
        %v770 = vand.u32 %v769, 4294901760
        %771 = vmatpush2.msra.mxu0 %v770
        %v772 = vand.u32 %v282, 4294901760
        %v773 = vsub.f32 %v282, %v772
        %v774 = vand.u32 %v773, 4294901760
        %v775 = vsub.f32 %v773, %v774
        %v776 = vand.u32 %v775, 4294901760
        %777 = vmatprep.subr.mxu0 %v776
        %v778 = vand.u32 %v281, 4294901760
        %v779 = vsub.f32 %v281, %v778
        %v780 = vand.u32 %v779, 4294901760
        %v781 = vsub.f32 %v779, %v780
        %v782 = vand.u32 %v781, 4294901760
        %783 = vmatpush2.msra.mxu0 %v782
        %v784 = vand.u32 %v280, 4294901760
        %v785 = vsub.f32 %v280, %v784
        %v786 = vand.u32 %v785, 4294901760
        %v787 = vsub.f32 %v785, %v786
        %v788 = vand.u32 %v787, 4294901760
        %789 = vmatprep.subr.mxu0 %v788
        %v790 = vand.u32 %v279, 4294901760
        %v791 = vsub.f32 %v279, %v790
        %v792 = vand.u32 %v791, 4294901760
        %v793 = vsub.f32 %v791, %v792
        %v794 = vand.u32 %v793, 4294901760
        %795 = vmatpush2.msra.mxu0 %v794
        %v796 = vand.u32 %v278, 4294901760
        %v797 = vsub.f32 %v278, %v796
        %v798 = vand.u32 %v797, 4294901760
        %v799 = vsub.f32 %v797, %v798
        %v800 = vand.u32 %v799, 4294901760
        %801 = vmatprep.subr.mxu0 %v800
        %v802 = vand.u32 %v277, 4294901760
        %v803 = vsub.f32 %v277, %v802
        %v804 = vand.u32 %v803, 4294901760
        %v805 = vsub.f32 %v803, %v804
        %v806 = vand.u32 %v805, 4294901760
        %807 = vmatpush2.msra.mxu0 %v806
        %v808 = vand.u32 %v276, 4294901760
        %v809 = vsub.f32 %v276, %v808
        %v810 = vand.u32 %v809, 4294901760
        %v811 = vsub.f32 %v809, %v810
        %v812 = vand.u32 %v811, 4294901760
        %813 = vmatprep.subr.mxu0 %v812
        %v814 = vand.u32 %v275, 4294901760
        %v815 = vsub.f32 %v275, %v814
        %v816 = vand.u32 %v815, 4294901760
        %v817 = vsub.f32 %v815, %v816
        %v818 = vand.u32 %v817, 4294901760
        %819 = vmatpush2.msra.mxu0 %v818
        %v820 = vand.u32 %v274, 4294901760
        %v821 = vsub.f32 %v274, %v820
        %v822 = vand.u32 %v821, 4294901760
        %v823 = vsub.f32 %v821, %v822
        %v824 = vand.u32 %v823, 4294901760
        %825 = vmatprep.subr.mxu0 %v824
        %v826 = vand.u32 %v273, 4294901760
        %v827 = vsub.f32 %v273, %v826
        %v828 = vand.u32 %v827, 4294901760
        %v829 = vsub.f32 %v827, %v828
        %v830 = vand.u32 %v829, 4294901760
        %831 = vmatpush2.msra.mxu0 %v830
        %v832 = vand.u32 %v272, 4294901760
        %v833 = vsub.f32 %v272, %v832
        %v834 = vand.u32 %v833, 4294901760
        %v835 = vsub.f32 %v833, %v834
        %v836 = vand.u32 %v835, 4294901760
        %837 = vmatprep.subr.mxu0 %v836
        %v838 = vand.u32 %v271, 4294901760
        %v839 = vsub.f32 %v271, %v838
        %v840 = vand.u32 %v839, 4294901760
        %v841 = vsub.f32 %v839, %v840
        %v842 = vand.u32 %v841, 4294901760
        %843 = vmatpush2.msra.mxu0 %v842
        %v844 = vand.u32 %v270, 4294901760
        %v845 = vsub.f32 %v270, %v844
        %v846 = vand.u32 %v845, 4294901760
        %v847 = vsub.f32 %v845, %v846
        %v848 = vand.u32 %v847, 4294901760
        %849 = vmatprep.subr.mxu0 %v848
        %v850 = vand.u32 %v269, 4294901760
        %v851 = vsub.f32 %v269, %v850
        %v852 = vand.u32 %v851, 4294901760
        %v853 = vsub.f32 %v851, %v852
        %v854 = vand.u32 %v853, 4294901760
        %855 = vmatpush2.msra.mxu0 %v854
        %v856 = vand.u32 %v268, 4294901760
        %v857 = vsub.f32 %v268, %v856
        %v858 = vand.u32 %v857, 4294901760
        %v859 = vsub.f32 %v857, %v858
        %v860 = vand.u32 %v859, 4294901760
        %861 = vmatprep.subr.mxu0 %v860
        %v862 = vand.u32 %v267, 4294901760
        %v863 = vsub.f32 %v267, %v862
        %v864 = vand.u32 %v863, 4294901760
        %v865 = vsub.f32 %v863, %v864
        %v866 = vand.u32 %v865, 4294901760
        %867 = vmatpush2.msra.mxu0 %v866
        %v868 = vand.u32 %v266, 4294901760
        %v869 = vsub.f32 %v266, %v868
        %v870 = vand.u32 %v869, 4294901760
        %v871 = vsub.f32 %v869, %v870
        %v872 = vand.u32 %v871, 4294901760
        %873 = vmatprep.subr.mxu0 %v872
        %v874 = vand.u32 %v265, 4294901760
        %v875 = vsub.f32 %v265, %v874
        %v876 = vand.u32 %v875, 4294901760
        %v877 = vsub.f32 %v875, %v876
        %v878 = vand.u32 %v877, 4294901760
        %879 = vmatpush2.msra.mxu0 %v878
        %v880 = vand.u32 %v264, 4294901760
        %v881 = vsub.f32 %v264, %v880
        %v882 = vand.u32 %v881, 4294901760
        %v883 = vsub.f32 %v881, %v882
        %v884 = vand.u32 %v883, 4294901760
        %885 = vmatprep.subr.mxu0 %v884
        %v886 = vand.u32 %v263, 4294901760
        %v887 = vsub.f32 %v263, %v886
        %v888 = vand.u32 %v887, 4294901760
        %v889 = vsub.f32 %v887, %v888
        %v890 = vand.u32 %v889, 4294901760
        %891 = vmatpush2.msra.mxu0 %v890
        %v892 = vand.u32 %v262, 4294901760
        %v893 = vsub.f32 %v262, %v892
        %v894 = vand.u32 %v893, 4294901760
        %v895 = vsub.f32 %v893, %v894
        %v896 = vand.u32 %v895, 4294901760
        %897 = vmatprep.subr.mxu0 %v896
        %v898 = vand.u32 %v261, 4294901760
        %v899 = vsub.f32 %v261, %v898
        %v900 = vand.u32 %v899, 4294901760
        %v901 = vsub.f32 %v899, %v900
        %v902 = vand.u32 %v901, 4294901760
        %903 = vmatpush2.msra.mxu0 %v902
        %v904 = vand.u32 %v260, 4294901760
        %v905 = vsub.f32 %v260, %v904
        %v906 = vand.u32 %v905, 4294901760
        %v907 = vsub.f32 %v905, %v906
        %v908 = vand.u32 %v907, 4294901760
        %909 = vmatprep.subr.mxu0 %v908
        %v910 = vand.u32 %v259, 4294901760
        %v911 = vsub.f32 %v259, %v910
        %v912 = vand.u32 %v911, 4294901760
        %v913 = vsub.f32 %v911, %v912
        %v914 = vand.u32 %v913, 4294901760
        %915 = vmatpush2.msra.mxu0 %v914
        %v916 = vand.u32 %v258, 4294901760
        %v917 = vsub.f32 %v258, %v916
        %v918 = vand.u32 %v917, 4294901760
        %v919 = vsub.f32 %v917, %v918
        %v920 = vand.u32 %v919, 4294901760
        %921 = vmatprep.subr.mxu0 %v920
        %v922 = vand.u32 %v257, 4294901760
        %v923 = vsub.f32 %v257, %v922
        %v924 = vand.u32 %v923, 4294901760
        %v925 = vsub.f32 %v923, %v924
        %v926 = vand.u32 %v925, 4294901760
        %927 = vmatpush2.msra.mxu0 %v926
        %v928 = vand.u32 %v256, 4294901760
        %v929 = vsub.f32 %v256, %v928
        %v930 = vand.u32 %v929, 4294901760
        %v931 = vsub.f32 %v929, %v930
        %v932 = vand.u32 %v931, 4294901760
        %933 = vmatprep.subr.mxu0 %v932
        %v934 = vand.u32 %v255, 4294901760
        %v935 = vsub.f32 %v255, %v934
        %v936 = vand.u32 %v935, 4294901760
        %v937 = vsub.f32 %v935, %v936
        %v938 = vand.u32 %v937, 4294901760
        %939 = vmatpush2.msra.mxu0 %v938
        %v940 = vand.u32 %v208, 4294901760
        %941 = vmatprep.mubr.f32.mxu0 %v940
        %v942 = vand.u32 %v207, 4294901760
        %943 = vmatmul.mubr.f32.gmra.mxu0 %v942
        %v944 = vpop.f32.mrf.mxu0
        %v945 = vadd.f32 %v440, %v944
        %v946 = vpop.f32.mrf.mxu0
        %v947 = vadd.f32 %v442, %v946
        %v948 = vand.u32 %v210, 4294901760
        %949 = vmatprep.mubr.f32.mxu0 %v948
        %v950 = vand.u32 %v209, 4294901760
        %951 = vmatmul.mubr.f32.gmra.mxu0 %v950
        %v952 = vpop.f32.mrf.mxu0
        %v953 = vadd.f32 %v456, %v952
        %v954 = vpop.f32.mrf.mxu0
        %v955 = vadd.f32 %v458, %v954
        %v956 = vand.u32 %v212, 4294901760
        %957 = vmatprep.mubr.f32.mxu0 %v956
        %v958 = vand.u32 %v211, 4294901760
        %959 = vmatmul.mubr.f32.gmra.mxu0 %v958
        %v960 = vpop.f32.mrf.mxu0
        %v961 = vadd.f32 %v472, %v960
        %v962 = vpop.f32.mrf.mxu0
        %v963 = vadd.f32 %v474, %v962
        %v964 = vand.u32 %v214, 4294901760
        %965 = vmatprep.mubr.f32.mxu0 %v964
        %v966 = vand.u32 %v213, 4294901760
        %967 = vmatmul.mubr.f32.gmra.mxu0 %v966
        %v968 = vpop.f32.mrf.mxu0
        %v969 = vadd.f32 %v488, %v968
        %v970 = vpop.f32.mrf.mxu0
        %v971 = vadd.f32 %v490, %v970
        %v972 = vand.u32 %v216, 4294901760
        %973 = vmatprep.mubr.f32.mxu0 %v972
        %v974 = vand.u32 %v215, 4294901760
        %975 = vmatmul.mubr.f32.gmra.mxu0 %v974
        %v976 = vpop.f32.mrf.mxu0
        %v977 = vadd.f32 %v504, %v976
        %v978 = vpop.f32.mrf.mxu0
        %v979 = vadd.f32 %v506, %v978
        %v980 = vand.u32 %v218, 4294901760
        %981 = vmatprep.mubr.f32.mxu0 %v980
        %v982 = vand.u32 %v217, 4294901760
        %983 = vmatmul.mubr.f32.gmra.mxu0 %v982
        %v984 = vpop.f32.mrf.mxu0
        %v985 = vadd.f32 %v520, %v984
        %v986 = vpop.f32.mrf.mxu0
        %v987 = vadd.f32 %v522, %v986
        %v988 = vand.u32 %v220, 4294901760
        %989 = vmatprep.mubr.f32.mxu0 %v988
        %v990 = vand.u32 %v219, 4294901760
        %991 = vmatmul.mubr.f32.gmra.mxu0 %v990
        %v992 = vpop.f32.mrf.mxu0
        %v993 = vadd.f32 %v536, %v992
        %v994 = vpop.f32.mrf.mxu0
        %v995 = vadd.f32 %v538, %v994
        %v996 = vand.u32 %v222, 4294901760
        %997 = vmatprep.mubr.f32.mxu0 %v996
        %v998 = vand.u32 %v221, 4294901760
        %999 = vmatmul.mubr.f32.gmra.mxu0 %v998
        %v1000 = vpop.f32.mrf.mxu0
        %v1001 = vadd.f32 %v552, %v1000
        %v1002 = vpop.f32.mrf.mxu0
        %v1003 = vadd.f32 %v554, %v1002
        %1004 = vdwg.mxu0
        %v1005 = vand.u32 %v254, 4294901760
        %v1006 = vsub.f32 %v254, %v1005
        %1007 = vmatprep.subr.mxu0 %v1006
        %v1008 = vand.u32 %v253, 4294901760
        %v1009 = vsub.f32 %v253, %v1008
        %1010 = vmatpush1.msra.mxu0 %v1009
        %v1011 = vand.u32 %v252, 4294901760
        %v1012 = vsub.f32 %v252, %v1011
        %1013 = vmatprep.subr.mxu0 %v1012
        %v1014 = vand.u32 %v251, 4294901760
        %v1015 = vsub.f32 %v251, %v1014
        %1016 = vmatpush1.msra.mxu0 %v1015
        %v1017 = vand.u32 %v250, 4294901760
        %v1018 = vsub.f32 %v250, %v1017
        %1019 = vmatprep.subr.mxu0 %v1018
        %v1020 = vand.u32 %v249, 4294901760
        %v1021 = vsub.f32 %v249, %v1020
        %1022 = vmatpush1.msra.mxu0 %v1021
        %v1023 = vand.u32 %v248, 4294901760
        %v1024 = vsub.f32 %v248, %v1023
        %1025 = vmatprep.subr.mxu0 %v1024
        %v1026 = vand.u32 %v247, 4294901760
        %v1027 = vsub.f32 %v247, %v1026
        %1028 = vmatpush1.msra.mxu0 %v1027
        %v1029 = vand.u32 %v246, 4294901760
        %v1030 = vsub.f32 %v246, %v1029
        %1031 = vmatprep.subr.mxu0 %v1030
        %v1032 = vand.u32 %v245, 4294901760
        %v1033 = vsub.f32 %v245, %v1032
        %1034 = vmatpush1.msra.mxu0 %v1033
        %v1035 = vand.u32 %v244, 4294901760
        %v1036 = vsub.f32 %v244, %v1035
        %1037 = vmatprep.subr.mxu0 %v1036
        %v1038 = vand.u32 %v243, 4294901760
        %v1039 = vsub.f32 %v243, %v1038
        %1040 = vmatpush1.msra.mxu0 %v1039
        %v1041 = vand.u32 %v242, 4294901760
        %v1042 = vsub.f32 %v242, %v1041
        %1043 = vmatprep.subr.mxu0 %v1042
        %v1044 = vand.u32 %v241, 4294901760
        %v1045 = vsub.f32 %v241, %v1044
        %1046 = vmatpush1.msra.mxu0 %v1045
        %v1047 = vand.u32 %v240, 4294901760
        %v1048 = vsub.f32 %v240, %v1047
        %1049 = vmatprep.subr.mxu0 %v1048
        %v1050 = vand.u32 %v239, 4294901760
        %v1051 = vsub.f32 %v239, %v1050
        %1052 = vmatpush1.msra.mxu0 %v1051
        %v1053 = vand.u32 %v238, 4294901760
        %v1054 = vsub.f32 %v238, %v1053
        %1055 = vmatprep.subr.mxu0 %v1054
        %v1056 = vand.u32 %v237, 4294901760
        %v1057 = vsub.f32 %v237, %v1056
        %1058 = vmatpush1.msra.mxu0 %v1057
        %v1059 = vand.u32 %v236, 4294901760
        %v1060 = vsub.f32 %v236, %v1059
        %1061 = vmatprep.subr.mxu0 %v1060
        %v1062 = vand.u32 %v235, 4294901760
        %v1063 = vsub.f32 %v235, %v1062
        %1064 = vmatpush1.msra.mxu0 %v1063
        %v1065 = vand.u32 %v234, 4294901760
        %v1066 = vsub.f32 %v234, %v1065
        %1067 = vmatprep.subr.mxu0 %v1066
        %v1068 = vand.u32 %v233, 4294901760
        %v1069 = vsub.f32 %v233, %v1068
        %1070 = vmatpush1.msra.mxu0 %v1069
        %v1071 = vand.u32 %v232, 4294901760
        %v1072 = vsub.f32 %v232, %v1071
        %1073 = vmatprep.subr.mxu0 %v1072
        %v1074 = vand.u32 %v231, 4294901760
        %v1075 = vsub.f32 %v231, %v1074
        %1076 = vmatpush1.msra.mxu0 %v1075
        %v1077 = vand.u32 %v230, 4294901760
        %v1078 = vsub.f32 %v230, %v1077
        %1079 = vmatprep.subr.mxu0 %v1078
        %v1080 = vand.u32 %v229, 4294901760
        %v1081 = vsub.f32 %v229, %v1080
        %1082 = vmatpush1.msra.mxu0 %v1081
        %v1083 = vand.u32 %v228, 4294901760
        %v1084 = vsub.f32 %v228, %v1083
        %1085 = vmatprep.subr.mxu0 %v1084
        %v1086 = vand.u32 %v227, 4294901760
        %v1087 = vsub.f32 %v227, %v1086
        %1088 = vmatpush1.msra.mxu0 %v1087
        %v1089 = vand.u32 %v226, 4294901760
        %v1090 = vsub.f32 %v226, %v1089
        %1091 = vmatprep.subr.mxu0 %v1090
        %v1092 = vand.u32 %v225, 4294901760
        %v1093 = vsub.f32 %v225, %v1092
        %1094 = vmatpush1.msra.mxu0 %v1093
        %v1095 = vand.u32 %v224, 4294901760
        %v1096 = vsub.f32 %v224, %v1095
        %1097 = vmatprep.subr.mxu0 %v1096
        %v1098 = vand.u32 %v223, 4294901760
        %v1099 = vsub.f32 %v223, %v1098
        %1100 = vmatpush1.msra.mxu0 %v1099
        %v1101 = vand.u32 %v286, 4294901760
        %v1102 = vsub.f32 %v286, %v1101
        %1103 = vmatprep.subr.mxu0 %v1102
        %v1104 = vand.u32 %v285, 4294901760
        %v1105 = vsub.f32 %v285, %v1104
        %1106 = vmatpush2.msra.mxu0 %v1105
        %v1107 = vand.u32 %v284, 4294901760
        %v1108 = vsub.f32 %v284, %v1107
        %1109 = vmatprep.subr.mxu0 %v1108
        %v1110 = vand.u32 %v283, 4294901760
        %v1111 = vsub.f32 %v283, %v1110
        %1112 = vmatpush2.msra.mxu0 %v1111
        %v1113 = vand.u32 %v282, 4294901760
        %v1114 = vsub.f32 %v282, %v1113
        %1115 = vmatprep.subr.mxu0 %v1114
        %v1116 = vand.u32 %v281, 4294901760
        %v1117 = vsub.f32 %v281, %v1116
        %1118 = vmatpush2.msra.mxu0 %v1117
        %v1119 = vand.u32 %v280, 4294901760
        %v1120 = vsub.f32 %v280, %v1119
        %1121 = vmatprep.subr.mxu0 %v1120
        %v1122 = vand.u32 %v279, 4294901760
        %v1123 = vsub.f32 %v279, %v1122
        %1124 = vmatpush2.msra.mxu0 %v1123
        %v1125 = vand.u32 %v278, 4294901760
        %v1126 = vsub.f32 %v278, %v1125
        %1127 = vmatprep.subr.mxu0 %v1126
        %v1128 = vand.u32 %v277, 4294901760
        %v1129 = vsub.f32 %v277, %v1128
        %1130 = vmatpush2.msra.mxu0 %v1129
        %v1131 = vand.u32 %v276, 4294901760
        %v1132 = vsub.f32 %v276, %v1131
        %1133 = vmatprep.subr.mxu0 %v1132
        %v1134 = vand.u32 %v275, 4294901760
        %v1135 = vsub.f32 %v275, %v1134
        %1136 = vmatpush2.msra.mxu0 %v1135
        %v1137 = vand.u32 %v274, 4294901760
        %v1138 = vsub.f32 %v274, %v1137
        %1139 = vmatprep.subr.mxu0 %v1138
        %v1140 = vand.u32 %v273, 4294901760
        %v1141 = vsub.f32 %v273, %v1140
        %1142 = vmatpush2.msra.mxu0 %v1141
        %v1143 = vand.u32 %v272, 4294901760
        %v1144 = vsub.f32 %v272, %v1143
        %1145 = vmatprep.subr.mxu0 %v1144
        %v1146 = vand.u32 %v271, 4294901760
        %v1147 = vsub.f32 %v271, %v1146
        %1148 = vmatpush2.msra.mxu0 %v1147
        %v1149 = vand.u32 %v270, 4294901760
        %v1150 = vsub.f32 %v270, %v1149
        %1151 = vmatprep.subr.mxu0 %v1150
        %v1152 = vand.u32 %v269, 4294901760
        %v1153 = vsub.f32 %v269, %v1152
        %1154 = vmatpush2.msra.mxu0 %v1153
        %v1155 = vand.u32 %v268, 4294901760
        %v1156 = vsub.f32 %v268, %v1155
        %1157 = vmatprep.subr.mxu0 %v1156
        %v1158 = vand.u32 %v267, 4294901760
        %v1159 = vsub.f32 %v267, %v1158
        %1160 = vmatpush2.msra.mxu0 %v1159
        %v1161 = vand.u32 %v266, 4294901760
        %v1162 = vsub.f32 %v266, %v1161
        %1163 = vmatprep.subr.mxu0 %v1162
        %v1164 = vand.u32 %v265, 4294901760
        %v1165 = vsub.f32 %v265, %v1164
        %1166 = vmatpush2.msra.mxu0 %v1165
        %v1167 = vand.u32 %v264, 4294901760
        %v1168 = vsub.f32 %v264, %v1167
        %1169 = vmatprep.subr.mxu0 %v1168
        %v1170 = vand.u32 %v263, 4294901760
        %v1171 = vsub.f32 %v263, %v1170
        %1172 = vmatpush2.msra.mxu0 %v1171
        %v1173 = vand.u32 %v262, 4294901760
        %v1174 = vsub.f32 %v262, %v1173
        %1175 = vmatprep.subr.mxu0 %v1174
        %v1176 = vand.u32 %v261, 4294901760
        %v1177 = vsub.f32 %v261, %v1176
        %1178 = vmatpush2.msra.mxu0 %v1177
        %v1179 = vand.u32 %v260, 4294901760
        %v1180 = vsub.f32 %v260, %v1179
        %1181 = vmatprep.subr.mxu0 %v1180
        %v1182 = vand.u32 %v259, 4294901760
        %v1183 = vsub.f32 %v259, %v1182
        %1184 = vmatpush2.msra.mxu0 %v1183
        %v1185 = vand.u32 %v258, 4294901760
        %v1186 = vsub.f32 %v258, %v1185
        %1187 = vmatprep.subr.mxu0 %v1186
        %v1188 = vand.u32 %v257, 4294901760
        %v1189 = vsub.f32 %v257, %v1188
        %1190 = vmatpush2.msra.mxu0 %v1189
        %v1191 = vand.u32 %v256, 4294901760
        %v1192 = vsub.f32 %v256, %v1191
        %1193 = vmatprep.subr.mxu0 %v1192
        %v1194 = vand.u32 %v255, 4294901760
        %v1195 = vsub.f32 %v255, %v1194
        %1196 = vmatpush2.msra.mxu0 %v1195
        %v1197 = vand.u32 %v208, 4294901760
        %v1198 = vsub.f32 %v208, %v1197
        %1199 = vmatprep.mubr.f32.mxu0 %v1198
        %v1200 = vand.u32 %v207, 4294901760
        %v1201 = vsub.f32 %v207, %v1200
        %1202 = vmatmul.mubr.f32.gmra.mxu0 %v1201
        %v1203 = vpop.f32.mrf.mxu0
        %v1204 = vadd.f32 %v945, %v1203
        %v1205 = vpop.f32.mrf.mxu0
        %v1206 = vadd.f32 %v947, %v1205
        %v1207 = vand.u32 %v210, 4294901760
        %v1208 = vsub.f32 %v210, %v1207
        %1209 = vmatprep.mubr.f32.mxu0 %v1208
        %v1210 = vand.u32 %v209, 4294901760
        %v1211 = vsub.f32 %v209, %v1210
        %1212 = vmatmul.mubr.f32.gmra.mxu0 %v1211
        %v1213 = vpop.f32.mrf.mxu0
        %v1214 = vadd.f32 %v953, %v1213
        %v1215 = vpop.f32.mrf.mxu0
        %v1216 = vadd.f32 %v955, %v1215
        %v1217 = vand.u32 %v212, 4294901760
        %v1218 = vsub.f32 %v212, %v1217
        %1219 = vmatprep.mubr.f32.mxu0 %v1218
        %v1220 = vand.u32 %v211, 4294901760
        %v1221 = vsub.f32 %v211, %v1220
        %1222 = vmatmul.mubr.f32.gmra.mxu0 %v1221
        %v1223 = vpop.f32.mrf.mxu0
        %v1224 = vadd.f32 %v961, %v1223
        %v1225 = vpop.f32.mrf.mxu0
        %v1226 = vadd.f32 %v963, %v1225
        %v1227 = vand.u32 %v214, 4294901760
        %v1228 = vsub.f32 %v214, %v1227
        %1229 = vmatprep.mubr.f32.mxu0 %v1228
        %v1230 = vand.u32 %v213, 4294901760
        %v1231 = vsub.f32 %v213, %v1230
        %1232 = vmatmul.mubr.f32.gmra.mxu0 %v1231
        %v1233 = vpop.f32.mrf.mxu0
        %v1234 = vadd.f32 %v969, %v1233
        %v1235 = vpop.f32.mrf.mxu0
        %v1236 = vadd.f32 %v971, %v1235
        %v1237 = vand.u32 %v216, 4294901760
        %v1238 = vsub.f32 %v216, %v1237
        %1239 = vmatprep.mubr.f32.mxu0 %v1238
        %v1240 = vand.u32 %v215, 4294901760
        %v1241 = vsub.f32 %v215, %v1240
        %1242 = vmatmul.mubr.f32.gmra.mxu0 %v1241
        %v1243 = vpop.f32.mrf.mxu0
        %v1244 = vadd.f32 %v977, %v1243
        %v1245 = vpop.f32.mrf.mxu0
        %v1246 = vadd.f32 %v979, %v1245
        %v1247 = vand.u32 %v218, 4294901760
        %v1248 = vsub.f32 %v218, %v1247
        %1249 = vmatprep.mubr.f32.mxu0 %v1248
        %v1250 = vand.u32 %v217, 4294901760
        %v1251 = vsub.f32 %v217, %v1250
        %1252 = vmatmul.mubr.f32.gmra.mxu0 %v1251
        %v1253 = vpop.f32.mrf.mxu0
        %v1254 = vadd.f32 %v985, %v1253
        %v1255 = vpop.f32.mrf.mxu0
        %v1256 = vadd.f32 %v987, %v1255
        %v1257 = vand.u32 %v220, 4294901760
        %v1258 = vsub.f32 %v220, %v1257
        %1259 = vmatprep.mubr.f32.mxu0 %v1258
        %v1260 = vand.u32 %v219, 4294901760
        %v1261 = vsub.f32 %v219, %v1260
        %1262 = vmatmul.mubr.f32.gmra.mxu0 %v1261
        %v1263 = vpop.f32.mrf.mxu0
        %v1264 = vadd.f32 %v993, %v1263
        %v1265 = vpop.f32.mrf.mxu0
        %v1266 = vadd.f32 %v995, %v1265
        %v1267 = vand.u32 %v222, 4294901760
        %v1268 = vsub.f32 %v222, %v1267
        %1269 = vmatprep.mubr.f32.mxu0 %v1268
        %v1270 = vand.u32 %v221, 4294901760
        %v1271 = vsub.f32 %v221, %v1270
        %1272 = vmatmul.mubr.f32.gmra.mxu0 %v1271
        %v1273 = vpop.f32.mrf.mxu0
        %v1274 = vadd.f32 %v1001, %v1273
        %v1275 = vpop.f32.mrf.mxu0
        %v1276 = vadd.f32 %v1003, %v1275
        %1277 = vdwg.mxu0
        %v1278 = vand.u32 %v254, 4294901760
        %1279 = vmatprep.subr.mxu0 %v1278
        %v1280 = vand.u32 %v253, 4294901760
        %1281 = vmatpush1.msra.mxu0 %v1280
        %v1282 = vand.u32 %v252, 4294901760
        %1283 = vmatprep.subr.mxu0 %v1282
        %v1284 = vand.u32 %v251, 4294901760
        %1285 = vmatpush1.msra.mxu0 %v1284
        %v1286 = vand.u32 %v250, 4294901760
        %1287 = vmatprep.subr.mxu0 %v1286
        %v1288 = vand.u32 %v249, 4294901760
        %1289 = vmatpush1.msra.mxu0 %v1288
        %v1290 = vand.u32 %v248, 4294901760
        %1291 = vmatprep.subr.mxu0 %v1290
        %v1292 = vand.u32 %v247, 4294901760
        %1293 = vmatpush1.msra.mxu0 %v1292
        %v1294 = vand.u32 %v246, 4294901760
        %1295 = vmatprep.subr.mxu0 %v1294
        %v1296 = vand.u32 %v245, 4294901760
        %1297 = vmatpush1.msra.mxu0 %v1296
        %v1298 = vand.u32 %v244, 4294901760
        %1299 = vmatprep.subr.mxu0 %v1298
        %v1300 = vand.u32 %v243, 4294901760
        %1301 = vmatpush1.msra.mxu0 %v1300
        %v1302 = vand.u32 %v242, 4294901760
        %1303 = vmatprep.subr.mxu0 %v1302
        %v1304 = vand.u32 %v241, 4294901760
        %1305 = vmatpush1.msra.mxu0 %v1304
        %v1306 = vand.u32 %v240, 4294901760
        %1307 = vmatprep.subr.mxu0 %v1306
        %v1308 = vand.u32 %v239, 4294901760
        %1309 = vmatpush1.msra.mxu0 %v1308
        %v1310 = vand.u32 %v238, 4294901760
        %1311 = vmatprep.subr.mxu0 %v1310
        %v1312 = vand.u32 %v237, 4294901760
        %1313 = vmatpush1.msra.mxu0 %v1312
        %v1314 = vand.u32 %v236, 4294901760
        %1315 = vmatprep.subr.mxu0 %v1314
        %v1316 = vand.u32 %v235, 4294901760
        %1317 = vmatpush1.msra.mxu0 %v1316
        %v1318 = vand.u32 %v234, 4294901760
        %1319 = vmatprep.subr.mxu0 %v1318
        %v1320 = vand.u32 %v233, 4294901760
        %1321 = vmatpush1.msra.mxu0 %v1320
        %v1322 = vand.u32 %v232, 4294901760
        %1323 = vmatprep.subr.mxu0 %v1322
        %v1324 = vand.u32 %v231, 4294901760
        %1325 = vmatpush1.msra.mxu0 %v1324
        %v1326 = vand.u32 %v230, 4294901760
        %1327 = vmatprep.subr.mxu0 %v1326
        %v1328 = vand.u32 %v229, 4294901760
        %1329 = vmatpush1.msra.mxu0 %v1328
        %v1330 = vand.u32 %v228, 4294901760
        %1331 = vmatprep.subr.mxu0 %v1330
        %v1332 = vand.u32 %v227, 4294901760
        %1333 = vmatpush1.msra.mxu0 %v1332
        %v1334 = vand.u32 %v226, 4294901760
        %1335 = vmatprep.subr.mxu0 %v1334
        %v1336 = vand.u32 %v225, 4294901760
        %1337 = vmatpush1.msra.mxu0 %v1336
        %v1338 = vand.u32 %v224, 4294901760
        %1339 = vmatprep.subr.mxu0 %v1338
        %v1340 = vand.u32 %v223, 4294901760
        %1341 = vmatpush1.msra.mxu0 %v1340
        %v1342 = vand.u32 %v286, 4294901760
        %1343 = vmatprep.subr.mxu0 %v1342
        %v1344 = vand.u32 %v285, 4294901760
        %1345 = vmatpush2.msra.mxu0 %v1344
        %v1346 = vand.u32 %v284, 4294901760
        %1347 = vmatprep.subr.mxu0 %v1346
        %v1348 = vand.u32 %v283, 4294901760
        %1349 = vmatpush2.msra.mxu0 %v1348
        %v1350 = vand.u32 %v282, 4294901760
        %1351 = vmatprep.subr.mxu0 %v1350
        %v1352 = vand.u32 %v281, 4294901760
        %1353 = vmatpush2.msra.mxu0 %v1352
        %v1354 = vand.u32 %v280, 4294901760
        %1355 = vmatprep.subr.mxu0 %v1354
        %v1356 = vand.u32 %v279, 4294901760
        %1357 = vmatpush2.msra.mxu0 %v1356
        %v1358 = vand.u32 %v278, 4294901760
        %1359 = vmatprep.subr.mxu0 %v1358
        %v1360 = vand.u32 %v277, 4294901760
        %1361 = vmatpush2.msra.mxu0 %v1360
        %v1362 = vand.u32 %v276, 4294901760
        %1363 = vmatprep.subr.mxu0 %v1362
        %v1364 = vand.u32 %v275, 4294901760
        %1365 = vmatpush2.msra.mxu0 %v1364
        %v1366 = vand.u32 %v274, 4294901760
        %1367 = vmatprep.subr.mxu0 %v1366
        %v1368 = vand.u32 %v273, 4294901760
        %1369 = vmatpush2.msra.mxu0 %v1368
        %v1370 = vand.u32 %v272, 4294901760
        %1371 = vmatprep.subr.mxu0 %v1370
        %v1372 = vand.u32 %v271, 4294901760
        %1373 = vmatpush2.msra.mxu0 %v1372
        %v1374 = vand.u32 %v270, 4294901760
        %1375 = vmatprep.subr.mxu0 %v1374
        %v1376 = vand.u32 %v269, 4294901760
        %1377 = vmatpush2.msra.mxu0 %v1376
        %v1378 = vand.u32 %v268, 4294901760
        %1379 = vmatprep.subr.mxu0 %v1378
        %v1380 = vand.u32 %v267, 4294901760
        %1381 = vmatpush2.msra.mxu0 %v1380
        %v1382 = vand.u32 %v266, 4294901760
        %1383 = vmatprep.subr.mxu0 %v1382
        %v1384 = vand.u32 %v265, 4294901760
        %1385 = vmatpush2.msra.mxu0 %v1384
        %v1386 = vand.u32 %v264, 4294901760
        %1387 = vmatprep.subr.mxu0 %v1386
        %v1388 = vand.u32 %v263, 4294901760
        %1389 = vmatpush2.msra.mxu0 %v1388
        %v1390 = vand.u32 %v262, 4294901760
        %1391 = vmatprep.subr.mxu0 %v1390
        %v1392 = vand.u32 %v261, 4294901760
        %1393 = vmatpush2.msra.mxu0 %v1392
        %v1394 = vand.u32 %v260, 4294901760
        %1395 = vmatprep.subr.mxu0 %v1394
        %v1396 = vand.u32 %v259, 4294901760
        %1397 = vmatpush2.msra.mxu0 %v1396
        %v1398 = vand.u32 %v258, 4294901760
        %1399 = vmatprep.subr.mxu0 %v1398
        %v1400 = vand.u32 %v257, 4294901760
        %1401 = vmatpush2.msra.mxu0 %v1400
        %v1402 = vand.u32 %v256, 4294901760
        %1403 = vmatprep.subr.mxu0 %v1402
        %v1404 = vand.u32 %v255, 4294901760
        %1405 = vmatpush2.msra.mxu0 %v1404
        %v1406 = vand.u32 %v208, 4294901760
        %v1407 = vsub.f32 %v208, %v1406
        %v1408 = vand.u32 %v1407, 4294901760
        %1409 = vmatprep.mubr.f32.mxu0 %v1408
        %v1410 = vand.u32 %v207, 4294901760
        %v1411 = vsub.f32 %v207, %v1410
        %v1412 = vand.u32 %v1411, 4294901760
        %1413 = vmatmul.mubr.f32.gmra.mxu0 %v1412
        %v1414 = vpop.f32.mrf.mxu0
        %v1415 = vadd.f32 %v1204, %v1414
        %v1416 = vpop.f32.mrf.mxu0
        %v1417 = vadd.f32 %v1206, %v1416
        %v1418 = vand.u32 %v210, 4294901760
        %v1419 = vsub.f32 %v210, %v1418
        %v1420 = vand.u32 %v1419, 4294901760
        %1421 = vmatprep.mubr.f32.mxu0 %v1420
        %v1422 = vand.u32 %v209, 4294901760
        %v1423 = vsub.f32 %v209, %v1422
        %v1424 = vand.u32 %v1423, 4294901760
        %1425 = vmatmul.mubr.f32.gmra.mxu0 %v1424
        %v1426 = vpop.f32.mrf.mxu0
        %v1427 = vadd.f32 %v1214, %v1426
        %v1428 = vpop.f32.mrf.mxu0
        %v1429 = vadd.f32 %v1216, %v1428
        %v1430 = vand.u32 %v212, 4294901760
        %v1431 = vsub.f32 %v212, %v1430
        %v1432 = vand.u32 %v1431, 4294901760
        %1433 = vmatprep.mubr.f32.mxu0 %v1432
        %v1434 = vand.u32 %v211, 4294901760
        %v1435 = vsub.f32 %v211, %v1434
        %v1436 = vand.u32 %v1435, 4294901760
        %1437 = vmatmul.mubr.f32.gmra.mxu0 %v1436
        %v1438 = vpop.f32.mrf.mxu0
        %v1439 = vadd.f32 %v1224, %v1438
        %v1440 = vpop.f32.mrf.mxu0
        %v1441 = vadd.f32 %v1226, %v1440
        %v1442 = vand.u32 %v214, 4294901760
        %v1443 = vsub.f32 %v214, %v1442
        %v1444 = vand.u32 %v1443, 4294901760
        %1445 = vmatprep.mubr.f32.mxu0 %v1444
        %v1446 = vand.u32 %v213, 4294901760
        %v1447 = vsub.f32 %v213, %v1446
        %v1448 = vand.u32 %v1447, 4294901760
        %1449 = vmatmul.mubr.f32.gmra.mxu0 %v1448
        %v1450 = vpop.f32.mrf.mxu0
        %v1451 = vadd.f32 %v1234, %v1450
        %v1452 = vpop.f32.mrf.mxu0
        %v1453 = vadd.f32 %v1236, %v1452
        %v1454 = vand.u32 %v216, 4294901760
        %v1455 = vsub.f32 %v216, %v1454
        %v1456 = vand.u32 %v1455, 4294901760
        %1457 = vmatprep.mubr.f32.mxu0 %v1456
        %v1458 = vand.u32 %v215, 4294901760
        %v1459 = vsub.f32 %v215, %v1458
        %v1460 = vand.u32 %v1459, 4294901760
        %1461 = vmatmul.mubr.f32.gmra.mxu0 %v1460
        %v1462 = vpop.f32.mrf.mxu0
        %v1463 = vadd.f32 %v1244, %v1462
        %v1464 = vpop.f32.mrf.mxu0
        %v1465 = vadd.f32 %v1246, %v1464
        %v1466 = vand.u32 %v218, 4294901760
        %v1467 = vsub.f32 %v218, %v1466
        %v1468 = vand.u32 %v1467, 4294901760
        %1469 = vmatprep.mubr.f32.mxu0 %v1468
        %v1470 = vand.u32 %v217, 4294901760
        %v1471 = vsub.f32 %v217, %v1470
        %v1472 = vand.u32 %v1471, 4294901760
        %1473 = vmatmul.mubr.f32.gmra.mxu0 %v1472
        %v1474 = vpop.f32.mrf.mxu0
        %v1475 = vadd.f32 %v1254, %v1474
        %v1476 = vpop.f32.mrf.mxu0
        %v1477 = vadd.f32 %v1256, %v1476
        %v1478 = vand.u32 %v220, 4294901760
        %v1479 = vsub.f32 %v220, %v1478
        %v1480 = vand.u32 %v1479, 4294901760
        %1481 = vmatprep.mubr.f32.mxu0 %v1480
        %v1482 = vand.u32 %v219, 4294901760
        %v1483 = vsub.f32 %v219, %v1482
        %v1484 = vand.u32 %v1483, 4294901760
        %1485 = vmatmul.mubr.f32.gmra.mxu0 %v1484
        %v1486 = vpop.f32.mrf.mxu0
        %v1487 = vadd.f32 %v1264, %v1486
        %v1488 = vpop.f32.mrf.mxu0
        %v1489 = vadd.f32 %v1266, %v1488
        %v1490 = vand.u32 %v222, 4294901760
        %v1491 = vsub.f32 %v222, %v1490
        %v1492 = vand.u32 %v1491, 4294901760
        %1493 = vmatprep.mubr.f32.mxu0 %v1492
        %v1494 = vand.u32 %v221, 4294901760
        %v1495 = vsub.f32 %v221, %v1494
        %v1496 = vand.u32 %v1495, 4294901760
        %1497 = vmatmul.mubr.f32.gmra.mxu0 %v1496
        %v1498 = vpop.f32.mrf.mxu0
        %v1499 = vadd.f32 %v1274, %v1498
        %v1500 = vpop.f32.mrf.mxu0
        %v1501 = vadd.f32 %v1276, %v1500
        %1502 = vdwg.mxu0
        %v1503 = vand.u32 %v254, 4294901760
        %v1504 = vsub.f32 %v254, %v1503
        %v1505 = vand.u32 %v1504, 4294901760
        %1506 = vmatprep.subr.mxu0 %v1505
        %v1507 = vand.u32 %v253, 4294901760
        %v1508 = vsub.f32 %v253, %v1507
        %v1509 = vand.u32 %v1508, 4294901760
        %1510 = vmatpush1.msra.mxu0 %v1509
        %v1511 = vand.u32 %v252, 4294901760
        %v1512 = vsub.f32 %v252, %v1511
        %v1513 = vand.u32 %v1512, 4294901760
        %1514 = vmatprep.subr.mxu0 %v1513
        %v1515 = vand.u32 %v251, 4294901760
        %v1516 = vsub.f32 %v251, %v1515
        %v1517 = vand.u32 %v1516, 4294901760
        %1518 = vmatpush1.msra.mxu0 %v1517
        %v1519 = vand.u32 %v250, 4294901760
        %v1520 = vsub.f32 %v250, %v1519
        %v1521 = vand.u32 %v1520, 4294901760
        %1522 = vmatprep.subr.mxu0 %v1521
        %v1523 = vand.u32 %v249, 4294901760
        %v1524 = vsub.f32 %v249, %v1523
        %v1525 = vand.u32 %v1524, 4294901760
        %1526 = vmatpush1.msra.mxu0 %v1525
        %v1527 = vand.u32 %v248, 4294901760
        %v1528 = vsub.f32 %v248, %v1527
        %v1529 = vand.u32 %v1528, 4294901760
        %1530 = vmatprep.subr.mxu0 %v1529
        %v1531 = vand.u32 %v247, 4294901760
        %v1532 = vsub.f32 %v247, %v1531
        %v1533 = vand.u32 %v1532, 4294901760
        %1534 = vmatpush1.msra.mxu0 %v1533
        %v1535 = vand.u32 %v246, 4294901760
        %v1536 = vsub.f32 %v246, %v1535
        %v1537 = vand.u32 %v1536, 4294901760
        %1538 = vmatprep.subr.mxu0 %v1537
        %v1539 = vand.u32 %v245, 4294901760
        %v1540 = vsub.f32 %v245, %v1539
        %v1541 = vand.u32 %v1540, 4294901760
        %1542 = vmatpush1.msra.mxu0 %v1541
        %v1543 = vand.u32 %v244, 4294901760
        %v1544 = vsub.f32 %v244, %v1543
        %v1545 = vand.u32 %v1544, 4294901760
        %1546 = vmatprep.subr.mxu0 %v1545
        %v1547 = vand.u32 %v243, 4294901760
        %v1548 = vsub.f32 %v243, %v1547
        %v1549 = vand.u32 %v1548, 4294901760
        %1550 = vmatpush1.msra.mxu0 %v1549
        %v1551 = vand.u32 %v242, 4294901760
        %v1552 = vsub.f32 %v242, %v1551
        %v1553 = vand.u32 %v1552, 4294901760
        %1554 = vmatprep.subr.mxu0 %v1553
        %v1555 = vand.u32 %v241, 4294901760
        %v1556 = vsub.f32 %v241, %v1555
        %v1557 = vand.u32 %v1556, 4294901760
        %1558 = vmatpush1.msra.mxu0 %v1557
        %v1559 = vand.u32 %v240, 4294901760
        %v1560 = vsub.f32 %v240, %v1559
        %v1561 = vand.u32 %v1560, 4294901760
        %1562 = vmatprep.subr.mxu0 %v1561
        %v1563 = vand.u32 %v239, 4294901760
        %v1564 = vsub.f32 %v239, %v1563
        %v1565 = vand.u32 %v1564, 4294901760
        %1566 = vmatpush1.msra.mxu0 %v1565
        %v1567 = vand.u32 %v238, 4294901760
        %v1568 = vsub.f32 %v238, %v1567
        %v1569 = vand.u32 %v1568, 4294901760
        %1570 = vmatprep.subr.mxu0 %v1569
        %v1571 = vand.u32 %v237, 4294901760
        %v1572 = vsub.f32 %v237, %v1571
        %v1573 = vand.u32 %v1572, 4294901760
        %1574 = vmatpush1.msra.mxu0 %v1573
        %v1575 = vand.u32 %v236, 4294901760
        %v1576 = vsub.f32 %v236, %v1575
        %v1577 = vand.u32 %v1576, 4294901760
        %1578 = vmatprep.subr.mxu0 %v1577
        %v1579 = vand.u32 %v235, 4294901760
        %v1580 = vsub.f32 %v235, %v1579
        %v1581 = vand.u32 %v1580, 4294901760
        %1582 = vmatpush1.msra.mxu0 %v1581
        %v1583 = vand.u32 %v234, 4294901760
        %v1584 = vsub.f32 %v234, %v1583
        %v1585 = vand.u32 %v1584, 4294901760
        %1586 = vmatprep.subr.mxu0 %v1585
        %v1587 = vand.u32 %v233, 4294901760
        %v1588 = vsub.f32 %v233, %v1587
        %v1589 = vand.u32 %v1588, 4294901760
        %1590 = vmatpush1.msra.mxu0 %v1589
        %v1591 = vand.u32 %v232, 4294901760
        %v1592 = vsub.f32 %v232, %v1591
        %v1593 = vand.u32 %v1592, 4294901760
        %1594 = vmatprep.subr.mxu0 %v1593
        %v1595 = vand.u32 %v231, 4294901760
        %v1596 = vsub.f32 %v231, %v1595
        %v1597 = vand.u32 %v1596, 4294901760
        %1598 = vmatpush1.msra.mxu0 %v1597
        %v1599 = vand.u32 %v230, 4294901760
        %v1600 = vsub.f32 %v230, %v1599
        %v1601 = vand.u32 %v1600, 4294901760
        %1602 = vmatprep.subr.mxu0 %v1601
        %v1603 = vand.u32 %v229, 4294901760
        %v1604 = vsub.f32 %v229, %v1603
        %v1605 = vand.u32 %v1604, 4294901760
        %1606 = vmatpush1.msra.mxu0 %v1605
        %v1607 = vand.u32 %v228, 4294901760
        %v1608 = vsub.f32 %v228, %v1607
        %v1609 = vand.u32 %v1608, 4294901760
        %1610 = vmatprep.subr.mxu0 %v1609
        %v1611 = vand.u32 %v227, 4294901760
        %v1612 = vsub.f32 %v227, %v1611
        %v1613 = vand.u32 %v1612, 4294901760
        %1614 = vmatpush1.msra.mxu0 %v1613
        %v1615 = vand.u32 %v226, 4294901760
        %v1616 = vsub.f32 %v226, %v1615
        %v1617 = vand.u32 %v1616, 4294901760
        %1618 = vmatprep.subr.mxu0 %v1617
        %v1619 = vand.u32 %v225, 4294901760
        %v1620 = vsub.f32 %v225, %v1619
        %v1621 = vand.u32 %v1620, 4294901760
        %1622 = vmatpush1.msra.mxu0 %v1621
        %v1623 = vand.u32 %v224, 4294901760
        %v1624 = vsub.f32 %v224, %v1623
        %v1625 = vand.u32 %v1624, 4294901760
        %1626 = vmatprep.subr.mxu0 %v1625
        %v1627 = vand.u32 %v223, 4294901760
        %v1628 = vsub.f32 %v223, %v1627
        %v1629 = vand.u32 %v1628, 4294901760
        %1630 = vmatpush1.msra.mxu0 %v1629
        %v1631 = vand.u32 %v286, 4294901760
        %v1632 = vsub.f32 %v286, %v1631
        %v1633 = vand.u32 %v1632, 4294901760
        %1634 = vmatprep.subr.mxu0 %v1633
        %v1635 = vand.u32 %v285, 4294901760
        %v1636 = vsub.f32 %v285, %v1635
        %v1637 = vand.u32 %v1636, 4294901760
        %1638 = vmatpush2.msra.mxu0 %v1637
        %v1639 = vand.u32 %v284, 4294901760
        %v1640 = vsub.f32 %v284, %v1639
        %v1641 = vand.u32 %v1640, 4294901760
        %1642 = vmatprep.subr.mxu0 %v1641
        %v1643 = vand.u32 %v283, 4294901760
        %v1644 = vsub.f32 %v283, %v1643
        %v1645 = vand.u32 %v1644, 4294901760
        %1646 = vmatpush2.msra.mxu0 %v1645
        %v1647 = vand.u32 %v282, 4294901760
        %v1648 = vsub.f32 %v282, %v1647
        %v1649 = vand.u32 %v1648, 4294901760
        %1650 = vmatprep.subr.mxu0 %v1649
        %v1651 = vand.u32 %v281, 4294901760
        %v1652 = vsub.f32 %v281, %v1651
        %v1653 = vand.u32 %v1652, 4294901760
        %1654 = vmatpush2.msra.mxu0 %v1653
        %v1655 = vand.u32 %v280, 4294901760
        %v1656 = vsub.f32 %v280, %v1655
        %v1657 = vand.u32 %v1656, 4294901760
        %1658 = vmatprep.subr.mxu0 %v1657
        %v1659 = vand.u32 %v279, 4294901760
        %v1660 = vsub.f32 %v279, %v1659
        %v1661 = vand.u32 %v1660, 4294901760
        %1662 = vmatpush2.msra.mxu0 %v1661
        %v1663 = vand.u32 %v278, 4294901760
        %v1664 = vsub.f32 %v278, %v1663
        %v1665 = vand.u32 %v1664, 4294901760
        %1666 = vmatprep.subr.mxu0 %v1665
        %v1667 = vand.u32 %v277, 4294901760
        %v1668 = vsub.f32 %v277, %v1667
        %v1669 = vand.u32 %v1668, 4294901760
        %1670 = vmatpush2.msra.mxu0 %v1669
        %v1671 = vand.u32 %v276, 4294901760
        %v1672 = vsub.f32 %v276, %v1671
        %v1673 = vand.u32 %v1672, 4294901760
        %1674 = vmatprep.subr.mxu0 %v1673
        %v1675 = vand.u32 %v275, 4294901760
        %v1676 = vsub.f32 %v275, %v1675
        %v1677 = vand.u32 %v1676, 4294901760
        %1678 = vmatpush2.msra.mxu0 %v1677
        %v1679 = vand.u32 %v274, 4294901760
        %v1680 = vsub.f32 %v274, %v1679
        %v1681 = vand.u32 %v1680, 4294901760
        %1682 = vmatprep.subr.mxu0 %v1681
        %v1683 = vand.u32 %v273, 4294901760
        %v1684 = vsub.f32 %v273, %v1683
        %v1685 = vand.u32 %v1684, 4294901760
        %1686 = vmatpush2.msra.mxu0 %v1685
        %v1687 = vand.u32 %v272, 4294901760
        %v1688 = vsub.f32 %v272, %v1687
        %v1689 = vand.u32 %v1688, 4294901760
        %1690 = vmatprep.subr.mxu0 %v1689
        %v1691 = vand.u32 %v271, 4294901760
        %v1692 = vsub.f32 %v271, %v1691
        %v1693 = vand.u32 %v1692, 4294901760
        %1694 = vmatpush2.msra.mxu0 %v1693
        %v1695 = vand.u32 %v270, 4294901760
        %v1696 = vsub.f32 %v270, %v1695
        %v1697 = vand.u32 %v1696, 4294901760
        %1698 = vmatprep.subr.mxu0 %v1697
        %v1699 = vand.u32 %v269, 4294901760
        %v1700 = vsub.f32 %v269, %v1699
        %v1701 = vand.u32 %v1700, 4294901760
        %1702 = vmatpush2.msra.mxu0 %v1701
        %v1703 = vand.u32 %v268, 4294901760
        %v1704 = vsub.f32 %v268, %v1703
        %v1705 = vand.u32 %v1704, 4294901760
        %1706 = vmatprep.subr.mxu0 %v1705
        %v1707 = vand.u32 %v267, 4294901760
        %v1708 = vsub.f32 %v267, %v1707
        %v1709 = vand.u32 %v1708, 4294901760
        %1710 = vmatpush2.msra.mxu0 %v1709
        %v1711 = vand.u32 %v266, 4294901760
        %v1712 = vsub.f32 %v266, %v1711
        %v1713 = vand.u32 %v1712, 4294901760
        %1714 = vmatprep.subr.mxu0 %v1713
        %v1715 = vand.u32 %v265, 4294901760
        %v1716 = vsub.f32 %v265, %v1715
        %v1717 = vand.u32 %v1716, 4294901760
        %1718 = vmatpush2.msra.mxu0 %v1717
        %v1719 = vand.u32 %v264, 4294901760
        %v1720 = vsub.f32 %v264, %v1719
        %v1721 = vand.u32 %v1720, 4294901760
        %1722 = vmatprep.subr.mxu0 %v1721
        %v1723 = vand.u32 %v263, 4294901760
        %v1724 = vsub.f32 %v263, %v1723
        %v1725 = vand.u32 %v1724, 4294901760
        %1726 = vmatpush2.msra.mxu0 %v1725
        %v1727 = vand.u32 %v262, 4294901760
        %v1728 = vsub.f32 %v262, %v1727
        %v1729 = vand.u32 %v1728, 4294901760
        %1730 = vmatprep.subr.mxu0 %v1729
        %v1731 = vand.u32 %v261, 4294901760
        %v1732 = vsub.f32 %v261, %v1731
        %v1733 = vand.u32 %v1732, 4294901760
        %1734 = vmatpush2.msra.mxu0 %v1733
        %v1735 = vand.u32 %v260, 4294901760
        %v1736 = vsub.f32 %v260, %v1735
        %v1737 = vand.u32 %v1736, 4294901760
        %1738 = vmatprep.subr.mxu0 %v1737
        %v1739 = vand.u32 %v259, 4294901760
        %v1740 = vsub.f32 %v259, %v1739
        %v1741 = vand.u32 %v1740, 4294901760
        %1742 = vmatpush2.msra.mxu0 %v1741
        %v1743 = vand.u32 %v258, 4294901760
        %v1744 = vsub.f32 %v258, %v1743
        %v1745 = vand.u32 %v1744, 4294901760
        %1746 = vmatprep.subr.mxu0 %v1745
        %v1747 = vand.u32 %v257, 4294901760
        %v1748 = vsub.f32 %v257, %v1747
        %v1749 = vand.u32 %v1748, 4294901760
        %1750 = vmatpush2.msra.mxu0 %v1749
        %v1751 = vand.u32 %v256, 4294901760
        %v1752 = vsub.f32 %v256, %v1751
        %v1753 = vand.u32 %v1752, 4294901760
        %1754 = vmatprep.subr.mxu0 %v1753
        %v1755 = vand.u32 %v255, 4294901760
        %v1756 = vsub.f32 %v255, %v1755
        %v1757 = vand.u32 %v1756, 4294901760
        %1758 = vmatpush2.msra.mxu0 %v1757
        %v1759 = vand.u32 %v208, 4294901760
        %1760 = vmatprep.mubr.f32.mxu0 %v1759
        %v1761 = vand.u32 %v207, 4294901760
        %1762 = vmatmul.mubr.f32.gmra.mxu0 %v1761
        %v1763 = vpop.f32.mrf.mxu0
        %v1764 = vadd.f32 %v1415, %v1763
        %v1765 = vpop.f32.mrf.mxu0
        %v1766 = vadd.f32 %v1417, %v1765
        %v1767 = vand.u32 %v210, 4294901760
        %1768 = vmatprep.mubr.f32.mxu0 %v1767
        %v1769 = vand.u32 %v209, 4294901760
        %1770 = vmatmul.mubr.f32.gmra.mxu0 %v1769
        %v1771 = vpop.f32.mrf.mxu0
        %v1772 = vadd.f32 %v1427, %v1771
        %v1773 = vpop.f32.mrf.mxu0
        %v1774 = vadd.f32 %v1429, %v1773
        %v1775 = vand.u32 %v212, 4294901760
        %1776 = vmatprep.mubr.f32.mxu0 %v1775
        %v1777 = vand.u32 %v211, 4294901760
        %1778 = vmatmul.mubr.f32.gmra.mxu0 %v1777
        %v1779 = vpop.f32.mrf.mxu0
        %v1780 = vadd.f32 %v1439, %v1779
        %v1781 = vpop.f32.mrf.mxu0
        %v1782 = vadd.f32 %v1441, %v1781
        %v1783 = vand.u32 %v214, 4294901760
        %1784 = vmatprep.mubr.f32.mxu0 %v1783
        %v1785 = vand.u32 %v213, 4294901760
        %1786 = vmatmul.mubr.f32.gmra.mxu0 %v1785
        %v1787 = vpop.f32.mrf.mxu0
        %v1788 = vadd.f32 %v1451, %v1787
        %v1789 = vpop.f32.mrf.mxu0
        %v1790 = vadd.f32 %v1453, %v1789
        %v1791 = vand.u32 %v216, 4294901760
        %1792 = vmatprep.mubr.f32.mxu0 %v1791
        %v1793 = vand.u32 %v215, 4294901760
        %1794 = vmatmul.mubr.f32.gmra.mxu0 %v1793
        %v1795 = vpop.f32.mrf.mxu0
        %v1796 = vadd.f32 %v1463, %v1795
        %v1797 = vpop.f32.mrf.mxu0
        %v1798 = vadd.f32 %v1465, %v1797
        %v1799 = vand.u32 %v218, 4294901760
        %1800 = vmatprep.mubr.f32.mxu0 %v1799
        %v1801 = vand.u32 %v217, 4294901760
        %1802 = vmatmul.mubr.f32.gmra.mxu0 %v1801
        %v1803 = vpop.f32.mrf.mxu0
        %v1804 = vadd.f32 %v1475, %v1803
        %v1805 = vpop.f32.mrf.mxu0
        %v1806 = vadd.f32 %v1477, %v1805
        %v1807 = vand.u32 %v220, 4294901760
        %1808 = vmatprep.mubr.f32.mxu0 %v1807
        %v1809 = vand.u32 %v219, 4294901760
        %1810 = vmatmul.mubr.f32.gmra.mxu0 %v1809
        %v1811 = vpop.f32.mrf.mxu0
        %v1812 = vadd.f32 %v1487, %v1811
        %v1813 = vpop.f32.mrf.mxu0
        %v1814 = vadd.f32 %v1489, %v1813
        %v1815 = vand.u32 %v222, 4294901760
        %1816 = vmatprep.mubr.f32.mxu0 %v1815
        %v1817 = vand.u32 %v221, 4294901760
        %1818 = vmatmul.mubr.f32.gmra.mxu0 %v1817
        %v1819 = vpop.f32.mrf.mxu0
        %v1820 = vadd.f32 %v1499, %v1819
        %v1821 = vpop.f32.mrf.mxu0
        %v1822 = vadd.f32 %v1501, %v1821
        %1823 = vdwg.mxu0
        %v1824 = vand.u32 %v254, 4294901760
        %1825 = vmatprep.subr.mxu0 %v1824
        %v1826 = vand.u32 %v253, 4294901760
        %1827 = vmatpush1.msra.mxu0 %v1826
        %v1828 = vand.u32 %v252, 4294901760
        %1829 = vmatprep.subr.mxu0 %v1828
        %v1830 = vand.u32 %v251, 4294901760
        %1831 = vmatpush1.msra.mxu0 %v1830
        %v1832 = vand.u32 %v250, 4294901760
        %1833 = vmatprep.subr.mxu0 %v1832
        %v1834 = vand.u32 %v249, 4294901760
        %1835 = vmatpush1.msra.mxu0 %v1834
        %v1836 = vand.u32 %v248, 4294901760
        %1837 = vmatprep.subr.mxu0 %v1836
        %v1838 = vand.u32 %v247, 4294901760
        %1839 = vmatpush1.msra.mxu0 %v1838
        %v1840 = vand.u32 %v246, 4294901760
        %1841 = vmatprep.subr.mxu0 %v1840
        %v1842 = vand.u32 %v245, 4294901760
        %1843 = vmatpush1.msra.mxu0 %v1842
        %v1844 = vand.u32 %v244, 4294901760
        %1845 = vmatprep.subr.mxu0 %v1844
        %v1846 = vand.u32 %v243, 4294901760
        %1847 = vmatpush1.msra.mxu0 %v1846
        %v1848 = vand.u32 %v242, 4294901760
        %1849 = vmatprep.subr.mxu0 %v1848
        %v1850 = vand.u32 %v241, 4294901760
        %1851 = vmatpush1.msra.mxu0 %v1850
        %v1852 = vand.u32 %v240, 4294901760
        %1853 = vmatprep.subr.mxu0 %v1852
        %v1854 = vand.u32 %v239, 4294901760
        %1855 = vmatpush1.msra.mxu0 %v1854
        %v1856 = vand.u32 %v238, 4294901760
        %1857 = vmatprep.subr.mxu0 %v1856
        %v1858 = vand.u32 %v237, 4294901760
        %1859 = vmatpush1.msra.mxu0 %v1858
        %v1860 = vand.u32 %v236, 4294901760
        %1861 = vmatprep.subr.mxu0 %v1860
        %v1862 = vand.u32 %v235, 4294901760
        %1863 = vmatpush1.msra.mxu0 %v1862
        %v1864 = vand.u32 %v234, 4294901760
        %1865 = vmatprep.subr.mxu0 %v1864
        %v1866 = vand.u32 %v233, 4294901760
        %1867 = vmatpush1.msra.mxu0 %v1866
        %v1868 = vand.u32 %v232, 4294901760
        %1869 = vmatprep.subr.mxu0 %v1868
        %v1870 = vand.u32 %v231, 4294901760
        %1871 = vmatpush1.msra.mxu0 %v1870
        %v1872 = vand.u32 %v230, 4294901760
        %1873 = vmatprep.subr.mxu0 %v1872
        %v1874 = vand.u32 %v229, 4294901760
        %1875 = vmatpush1.msra.mxu0 %v1874
        %v1876 = vand.u32 %v228, 4294901760
        %1877 = vmatprep.subr.mxu0 %v1876
        %v1878 = vand.u32 %v227, 4294901760
        %1879 = vmatpush1.msra.mxu0 %v1878
        %v1880 = vand.u32 %v226, 4294901760
        %1881 = vmatprep.subr.mxu0 %v1880
        %v1882 = vand.u32 %v225, 4294901760
        %1883 = vmatpush1.msra.mxu0 %v1882
        %v1884 = vand.u32 %v224, 4294901760
        %1885 = vmatprep.subr.mxu0 %v1884
        %v1886 = vand.u32 %v223, 4294901760
        %1887 = vmatpush1.msra.mxu0 %v1886
        %v1888 = vand.u32 %v286, 4294901760
        %1889 = vmatprep.subr.mxu0 %v1888
        %v1890 = vand.u32 %v285, 4294901760
        %1891 = vmatpush2.msra.mxu0 %v1890
        %v1892 = vand.u32 %v284, 4294901760
        %1893 = vmatprep.subr.mxu0 %v1892
        %v1894 = vand.u32 %v283, 4294901760
        %1895 = vmatpush2.msra.mxu0 %v1894
        %v1896 = vand.u32 %v282, 4294901760
        %1897 = vmatprep.subr.mxu0 %v1896
        %v1898 = vand.u32 %v281, 4294901760
        %1899 = vmatpush2.msra.mxu0 %v1898
        %v1900 = vand.u32 %v280, 4294901760
        %1901 = vmatprep.subr.mxu0 %v1900
        %v1902 = vand.u32 %v279, 4294901760
        %1903 = vmatpush2.msra.mxu0 %v1902
        %v1904 = vand.u32 %v278, 4294901760
        %1905 = vmatprep.subr.mxu0 %v1904
        %v1906 = vand.u32 %v277, 4294901760
        %1907 = vmatpush2.msra.mxu0 %v1906
        %v1908 = vand.u32 %v276, 4294901760
        %1909 = vmatprep.subr.mxu0 %v1908
        %v1910 = vand.u32 %v275, 4294901760
        %1911 = vmatpush2.msra.mxu0 %v1910
        %v1912 = vand.u32 %v274, 4294901760
        %1913 = vmatprep.subr.mxu0 %v1912
        %v1914 = vand.u32 %v273, 4294901760
        %1915 = vmatpush2.msra.mxu0 %v1914
        %v1916 = vand.u32 %v272, 4294901760
        %1917 = vmatprep.subr.mxu0 %v1916
        %v1918 = vand.u32 %v271, 4294901760
        %1919 = vmatpush2.msra.mxu0 %v1918
        %v1920 = vand.u32 %v270, 4294901760
        %1921 = vmatprep.subr.mxu0 %v1920
        %v1922 = vand.u32 %v269, 4294901760
        %1923 = vmatpush2.msra.mxu0 %v1922
        %v1924 = vand.u32 %v268, 4294901760
        %1925 = vmatprep.subr.mxu0 %v1924
        %v1926 = vand.u32 %v267, 4294901760
        %1927 = vmatpush2.msra.mxu0 %v1926
        %v1928 = vand.u32 %v266, 4294901760
        %1929 = vmatprep.subr.mxu0 %v1928
        %v1930 = vand.u32 %v265, 4294901760
        %1931 = vmatpush2.msra.mxu0 %v1930
        %v1932 = vand.u32 %v264, 4294901760
        %1933 = vmatprep.subr.mxu0 %v1932
        %v1934 = vand.u32 %v263, 4294901760
        %1935 = vmatpush2.msra.mxu0 %v1934
        %v1936 = vand.u32 %v262, 4294901760
        %1937 = vmatprep.subr.mxu0 %v1936
        %v1938 = vand.u32 %v261, 4294901760
        %1939 = vmatpush2.msra.mxu0 %v1938
        %v1940 = vand.u32 %v260, 4294901760
        %1941 = vmatprep.subr.mxu0 %v1940
        %v1942 = vand.u32 %v259, 4294901760
        %1943 = vmatpush2.msra.mxu0 %v1942
        %v1944 = vand.u32 %v258, 4294901760
        %1945 = vmatprep.subr.mxu0 %v1944
        %v1946 = vand.u32 %v257, 4294901760
        %1947 = vmatpush2.msra.mxu0 %v1946
        %v1948 = vand.u32 %v256, 4294901760
        %1949 = vmatprep.subr.mxu0 %v1948
        %v1950 = vand.u32 %v255, 4294901760
        %1951 = vmatpush2.msra.mxu0 %v1950
        %v1952 = vand.u32 %v208, 4294901760
        %1953 = vmatprep.mubr.f32.mxu0 %v1952
        %v1954 = vand.u32 %v207, 4294901760
        %1955 = vmatmul.mubr.f32.gmra.mxu0 %v1954
        %v1956 = vpop.f32.mrf.mxu0
        %v1957 = vadd.f32 %v1764, %v1956
        %v1958 = vpop.f32.mrf.mxu0
        %v1959 = vadd.f32 %v1766, %v1958
        %v1960 = vand.u32 %v210, 4294901760
        %1961 = vmatprep.mubr.f32.mxu0 %v1960
        %v1962 = vand.u32 %v209, 4294901760
        %1963 = vmatmul.mubr.f32.gmra.mxu0 %v1962
        %v1964 = vpop.f32.mrf.mxu0
        %v1965 = vadd.f32 %v1772, %v1964
        %v1966 = vpop.f32.mrf.mxu0
        %v1967 = vadd.f32 %v1774, %v1966
        %v1968 = vand.u32 %v212, 4294901760
        %1969 = vmatprep.mubr.f32.mxu0 %v1968
        %v1970 = vand.u32 %v211, 4294901760
        %1971 = vmatmul.mubr.f32.gmra.mxu0 %v1970
        %v1972 = vpop.f32.mrf.mxu0
        %v1973 = vadd.f32 %v1780, %v1972
        %v1974 = vpop.f32.mrf.mxu0
        %v1975 = vadd.f32 %v1782, %v1974
        %v1976 = vand.u32 %v214, 4294901760
        %1977 = vmatprep.mubr.f32.mxu0 %v1976
        %v1978 = vand.u32 %v213, 4294901760
        %1979 = vmatmul.mubr.f32.gmra.mxu0 %v1978
        %v1980 = vpop.f32.mrf.mxu0
        %v1981 = vadd.f32 %v1788, %v1980
        %v1982 = vpop.f32.mrf.mxu0
        %v1983 = vadd.f32 %v1790, %v1982
        %v1984 = vand.u32 %v216, 4294901760
        %1985 = vmatprep.mubr.f32.mxu0 %v1984
        %v1986 = vand.u32 %v215, 4294901760
        %1987 = vmatmul.mubr.f32.gmra.mxu0 %v1986
        %v1988 = vpop.f32.mrf.mxu0
        %v1989 = vadd.f32 %v1796, %v1988
        %v1990 = vpop.f32.mrf.mxu0
        %v1991 = vadd.f32 %v1798, %v1990
        %v1992 = vand.u32 %v218, 4294901760
        %1993 = vmatprep.mubr.f32.mxu0 %v1992
        %v1994 = vand.u32 %v217, 4294901760
        %1995 = vmatmul.mubr.f32.gmra.mxu0 %v1994
        %v1996 = vpop.f32.mrf.mxu0
        %v1997 = vadd.f32 %v1804, %v1996
        %v1998 = vpop.f32.mrf.mxu0
        %v1999 = vadd.f32 %v1806, %v1998
        %v2000 = vand.u32 %v220, 4294901760
        %2001 = vmatprep.mubr.f32.mxu0 %v2000
        %v2002 = vand.u32 %v219, 4294901760
        %2003 = vmatmul.mubr.f32.gmra.mxu0 %v2002
        %v2004 = vpop.f32.mrf.mxu0
        %v2005 = vadd.f32 %v1812, %v2004
        %v2006 = vpop.f32.mrf.mxu0
        %v2007 = vadd.f32 %v1814, %v2006
        %v2008 = vand.u32 %v222, 4294901760
        %2009 = vmatprep.mubr.f32.mxu0 %v2008
        %v2010 = vand.u32 %v221, 4294901760
        %2011 = vmatmul.mubr.f32.gmra.mxu0 %v2010
        %v2012 = vpop.f32.mrf.mxu0
        %v2013 = vadd.f32 %v1820, %v2012
        %v2014 = vpop.f32.mrf.mxu0
        %v2015 = vadd.f32 %v1822, %v2014
        %2016 = vdwg.mxu0
        %v2017 = vadd.f32 %v1957, %v207
        %v2018 = vadd.f32 %v1959, %v208
        %v2019 = vadd.f32 %v1965, %v209
        %v2020 = vadd.f32 %v1967, %v210
        %v2021 = vadd.f32 %v1973, %v211
        %v2022 = vadd.f32 %v1975, %v212
        %v2023 = vadd.f32 %v1981, %v213
        %v2024 = vadd.f32 %v1983, %v214
        %v2025 = vadd.f32 %v1989, %v215
        %v2026 = vadd.f32 %v1991, %v216
        %v2027 = vadd.f32 %v1997, %v217
        %v2028 = vadd.f32 %v1999, %v218
        %v2029 = vadd.f32 %v2005, %v219
        %v2030 = vadd.f32 %v2007, %v220
        %v2031 = vadd.f32 %v2013, %v221
        %v2032 = vadd.f32 %v2015, %v222
        %2033 = vst [vmem:[%s204] sm:$0xff] %v2017
        %2034 = vst [vmem:[%s204 + $0x8] sm:$0xff] %v2018
        %2035 = vst [vmem:[%s204 + $0x10] sm:$0xff] %v2019
        %2036 = vst [vmem:[%s204 + $0x18] sm:$0xff] %v2020
        %2037 = vst [vmem:[%s204 + $0x20] sm:$0xff] %v2021
        %2038 = vst [vmem:[%s204 + $0x28] sm:$0xff] %v2022
        %2039 = vst [vmem:[%s204 + $0x30] sm:$0xff] %v2023
        %2040 = vst [vmem:[%s204 + $0x38] sm:$0xff] %v2024
        %2041 = vst [vmem:[%s204 + $0x40] sm:$0xff] %v2025
        %2042 = vst [vmem:[%s204 + $0x48] sm:$0xff] %v2026
        %2043 = vst [vmem:[%s204 + $0x50] sm:$0xff] %v2027
        %2044 = vst [vmem:[%s204 + $0x58] sm:$0xff] %v2028
        %2045 = vst [vmem:[%s204 + $0x60] sm:$0xff] %v2029
        %2046 = vst [vmem:[%s204 + $0x68] sm:$0xff] %v2030
        %2047 = vst [vmem:[%s204 + $0x70] sm:$0xff] %v2031
        %2048 = vst [vmem:[%s204 + $0x78] sm:$0xff] %v2032
        %s2049 = sand.u32 %s97, 1
        %s2050 = scalar_lea.sflag [#allocation4], %s2049
        %s2051 = sand.u32 %s97, 1
        %s2052 = smul.addr %s2051, 128
        %s2053 = scalar_lea.vmem [#allocation7], %s2052
        // Predicated region
        $region41: #{tpu_custom_call.1} parent=31 // pred_check
          %p2054 = pneg %p107
        $region42: #{tpu_custom_call.1} parent=31 // pred_check_branch
          %2056 = sbr.rel (%p2054) target = $region44
        $region43: #{tpu_custom_call.1} parent=31 // pred_region
          %s2057 = smul.u32 8, %s21
          %s2059 = ssub.s32 2048, 2048
          %2060 = vsyncadd %s2050, %s2059
          %s2061 = smul.addr %s2057, 2
          %s2062 = smul.addr %s2061, 128
          %s2063 = scalar_lea.hbm %s3, %s2062
          %s2064 = sshll.u32 %s2053, 4
          %s2065 = int_to_ptr.vmem [resolvable:$true] %s2064
          %2070 = dma.vmem_to_hbm [thread:$0]  %s2065, 2048, %s2063, %s2050, 256, 256, 16
        $region44: #{tpu_custom_call.1} parent=31 // pred_fallthru
          _
      $region32: #{tpu_custom_call.1} parent=5 // pred_fallthru
        _
      %p2071 = scmp.le.s32.totalorder 2, %s16
      // Predicated region
      $region45: #{tpu_custom_call.1} parent=5 // pred_check
        %p2072 = pneg %p2071
      $region46: #{tpu_custom_call.1} parent=5 // pred_check_branch
        %2074 = sbr.rel (%p2072) target = $region48
      $region47: #{tpu_custom_call.1} parent=5 // pred_region
        %s2075 = ssub.s32 %s16, 2
        // Predicated region
        $region49: #{tpu_custom_call.1} parent=47 // pred_check
          %p2076 = pneg %p113
        $region50: #{tpu_custom_call.1} parent=47 // pred_check_branch
          %2078 = sbr.rel (%p2076) target = $region52
        $region51: #{tpu_custom_call.1} parent=47 // pred_region
          %s2079 = sand.u32 %s98, 1
          %s2080 = scalar_lea.sflag [#allocation4], %s2079
          %s2081 = sand.u32 %s98, 1
          %s2082 = smul.addr %s2081, 128
          %s2083 = scalar_lea.vmem [#allocation7], %s2082
          %2084 = dma.done %s2080, 2048
        $region52: #{tpu_custom_call.1} parent=47 // pred_fallthru
          _
      $region48: #{tpu_custom_call.1} parent=5 // pred_fallthru
        _
    $region6: #{tpu_custom_call.1} parent=1 // loop_footer
      %s20 = sadd.s32 1, %s16
    $region7: #{tpu_custom_call.1} parent=1 // loop_footer_branch
      %15 = sbr.rel target = $region3
    $region8: #{tpu_custom_call.1} parent=1 // loop_exit
      _
    %2085 = vsyncpa [#allocation3], 1
    %s2086 = scalar_lea.sflag [#allocation3], 1
    %2087 = vsyncpa %s2086, 1
    %2088 = vsyncpa [#allocation6], 1
    %2089 = vsyncpa [#allocation4], 1
    %s2090 = scalar_lea.sflag [#allocation4], 1
    %2091 = vsyncpa %s2090, 1

</llo_original>
